<compile_context>
chip_gen: v7x
topology: tpu7x:2x2x1
jax: 0.10.0
libtpu: 0.0.40
codegen_flags: <defaults>
</compile_context>

<pallas_src>
import functools

import jax
import jax.numpy as jnp
from jax.experimental import pallas as pl
from jax.experimental.pallas import tpu as pltpu


# ----------------------------------------------------------------------------
# In-kernel helpers
# ----------------------------------------------------------------------------

def _mm(a, b):
    """MXU matmul: bf16 operands, f32 accumulation."""
    return jnp.dot(a.astype(jnp.bfloat16), b.astype(jnp.bfloat16),
                   preferred_element_type=jnp.float32)


def _cln(h, cond, wg, bg, wb, bb):
    """Conditional LayerNorm: LN(h) * (cond @ Wg + bg) + (cond @ Wb + bb).
    LayerNorm statistics are kept in f32; only matmul operands are bf16."""
    gamma = _mm(cond, wg) + bg                                   # (1, D)
    beta = _mm(cond, wb) + bb                                    # (1, D)
    mean = jnp.mean(h, axis=-1, keepdims=True)
    var = jnp.mean((h - mean) ** 2, axis=-1, keepdims=True)
    normed = (h - mean) * jax.lax.rsqrt(var + 1e-12)
    return normed * gamma + beta


def _mhsa(x, wq, bq, wk, bk, wv, bv, wo, bo, *, n_head, d_head):
    """Multi-head self-attention, all heads in one batched contraction."""
    S = x.shape[0]
    q = _mm(x, wq) + bq                                          # (S, H*dh)
    k = _mm(x, wk) + bk
    v = _mm(x, wv) + bv
    qh = jnp.transpose(q.reshape(S, n_head, d_head), (1, 0, 2))  # (H, S, dh)
    kh = jnp.transpose(k.reshape(S, n_head, d_head), (1, 0, 2))
    vh = jnp.transpose(v.reshape(S, n_head, d_head), (1, 0, 2))
    scale = 1.0 / (float(d_head) ** 0.5)
    scores = jnp.einsum("hqd,hkd->hqk",
                        qh.astype(jnp.bfloat16), kh.astype(jnp.bfloat16),
                        preferred_element_type=jnp.float32) * scale      # (H, S, S)
    # softmax in f32; denominator on the EUP via approx reciprocal.
    scores = scores - jnp.max(scores, axis=-1, keepdims=True)
    p = jnp.exp(scores)
    p = p * pl.reciprocal(jnp.sum(p, axis=-1, keepdims=True), approx=True)
    ctx = jnp.einsum("hqk,hkd->hqd",
                     p.astype(jnp.bfloat16), vh.astype(jnp.bfloat16),
                     preferred_element_type=jnp.float32)                 # (H, S, dh)
    ctx = jnp.transpose(ctx, (1, 0, 2)).reshape(S, n_head * d_head)      # (S, H*dh)
    return _mm(ctx, wo) + bo


# ----------------------------------------------------------------------------
# Fused JointEE kernel (one grid step == one batch element)
# ----------------------------------------------------------------------------

def _joint_ee_kernel(
        # scalar prefetch (SMEM): inclusive gt trigger spans
        trig_s_ref, trig_e_ref,
        # per-batch tensors
        h_ref, type_ref,
        # SentenceRepresentation CLN
        swg_ref, sbg_ref, swb_ref, sbb_ref,
        # TEM self-attention
        twq_ref, tbq_ref, twk_ref, tbk_ref, twv_ref, tbv_ref, two_ref, tbo_ref,
        # TEM classifier (split weights: [H_styp | attn])
        tw1_ref, tw2_ref, tb_ref,
        # TriggeredSentenceRepresentation CLN
        gwg_ref, gbg_ref, gwb_ref, gbb_ref,
        # rel-pos table already projected by AEM's third weight slab: (R, 2*n_roles)
        rpew_ref,
        # AEM self-attention
        awq_ref, abq_ref, awk_ref, abk_ref, awv_ref, abv_ref, awo_ref, abo_ref,
        # AEM classifier (split weights: [arg_H | attn] ; RPE slab folded into rpew)
        aw1_ref, aw2_ref, ab_ref,
        # outputs
        trig_out_ref, arg_out_ref,
        *, n_head, d_head, max_rel):
    b = pl.program_id(0)
    S = h_ref.shape[1]
    R = 2 * max_rel + 1

    h = h_ref[0]                                   # (S, D) PLM token embeddings
    c = type_ref[0]                                # (1, D) event-type representation

    # --- SentenceRepresentation: CLN conditioned on event type ------------------
    H_styp = _cln(h, c, swg_ref[...], sbg_ref[...], swb_ref[...], sbb_ref[...])

    # --- TEM: MHSA + split-weight start/end classifier (sigmoid) ----------------
    t_attn = _mhsa(H_styp,
                   twq_ref[...], tbq_ref[...], twk_ref[...], tbk_ref[...],
                   twv_ref[...], tbv_ref[...], two_ref[...], tbo_ref[...],
                   n_head=n_head, d_head=d_head)
    trig_logits = _mm(H_styp, tw1_ref[...]) + _mm(t_attn, tw2_ref[...]) + tb_ref[...]
    trig_out_ref[0] = jax.nn.sigmoid(trig_logits)                        # (S, 2)

    # --- TriggeredSentenceRepresentation: span pooling + CLN + rel-pos ----------
    s_idx = trig_s_ref[b]
    e_idx = trig_e_ref[b]
    pos = jax.lax.broadcasted_iota(jnp.int32, (S, 1), 0)                 # (S, 1)
    span_mask = jnp.logical_and(pos >= s_idx, pos <= e_idx).astype(jnp.float32)
    count = jnp.maximum(jnp.sum(span_mask, axis=0, keepdims=True), 1.0)  # (1, 1)
    trig_repr = jnp.sum(H_styp * span_mask, axis=0, keepdims=True) / count   # (1, D)

    arg_H = _cln(H_styp, trig_repr,
                 gwg_ref[...], gbg_ref[...], gwb_ref[...], gbb_ref[...])

    # relative positions -> one-hot -> pre-projected RPE slab (MXU; no (S,D) gather)
    rel = jnp.where(pos < s_idx, pos - s_idx,
                    jnp.where(pos > e_idx, pos - e_idx, 0))              # (S, 1)
    rel = jnp.clip(rel, -max_rel, max_rel) + max_rel
    col = jax.lax.broadcasted_iota(jnp.int32, (S, R), 1)
    onehot = (col == rel).astype(jnp.float32)                            # (S, R)
    rpe_logits = _mm(onehot, rpew_ref[...])                              # (S, 2*n_roles)

    # --- AEM: MHSA + split-weight role start/end classifier (sigmoid) -----------
    a_attn = _mhsa(arg_H,
                   awq_ref[...], abq_ref[...], awk_ref[...], abk_ref[...],
                   awv_ref[...], abv_ref[...], awo_ref[...], abo_ref[...],
                   n_head=n_head, d_head=d_head)
    arg_logits = (_mm(arg_H, aw1_ref[...]) + _mm(a_attn, aw2_ref[...])
                  + rpe_logits + ab_ref[...])
    arg_out_ref[0] = jax.nn.sigmoid(arg_logits)                          # (S, 2*n_roles)


# ----------------------------------------------------------------------------
# Wrapper
# ----------------------------------------------------------------------------

def joint_ee_forward(params, h_plm, type_repr, trig_start_idx, trig_end_idx,
                     *, n_head, d_head, n_roles, max_rel):
    B, S, D = h_plm.shape
    dh = n_head * d_head
    R = 2 * max_rel + 1
    n_out = 2 * n_roles

    # Weight-only transform: fold RPE @ W3 into a (R, 2*n_roles) table once.
    rpe_proj = jnp.dot(params["rpe_table"], params["aem_w3"],
                       preferred_element_type=jnp.float32)

    weights = [
        params["sent_cln"]["wg"], params["sent_cln"]["bg"],
        params["sent_cln"]["wb"], params["sent_cln"]["bb"],
        params["tem_attn"]["wq"], params["tem_attn"]["bq"],
        params["tem_attn"]["wk"], params["tem_attn"]["bk"],
        params["tem_attn"]["wv"], params["tem_attn"]["bv"],
        params["tem_attn"]["wo"], params["tem_attn"]["bo"],
        params["tem_w1"], params["tem_w2"], params["tem_b"],
        params["trig_cln"]["wg"], params["trig_cln"]["bg"],
        params["trig_cln"]["wb"], params["trig_cln"]["bb"],
        rpe_proj,
        params["aem_attn"]["wq"], params["aem_attn"]["bq"],
        params["aem_attn"]["wk"], params["aem_attn"]["bk"],
        params["aem_attn"]["wv"], params["aem_attn"]["bv"],
        params["aem_attn"]["wo"], params["aem_attn"]["bo"],
        params["aem_w1"], params["aem_w2"], params["aem_b"],
    ]

    def _wspec(shape):
        nd = len(shape)
        return pl.BlockSpec(shape, lambda b, ts, te, _nd=nd: (0,) * _nd)

    in_specs = [
        pl.BlockSpec((1, S, D), lambda b, ts, te: (b, 0, 0)),       # h_plm
        pl.BlockSpec((1, 1, D), lambda b, ts, te: (b, 0, 0)),       # type_repr
    ] + [_wspec(w.shape) for w in weights]

    out_specs = [
        pl.BlockSpec((1, S, 2), lambda b, ts, te: (b, 0, 0)),
        pl.BlockSpec((1, S, n_out), lambda b, ts, te: (b, 0, 0)),
    ]

    kernel = functools.partial(_joint_ee_kernel, n_head=n_head, d_head=d_head,
                               max_rel=max_rel)

    # Advisory cost estimate for XLA scheduling around the custom call.
    flops_cln = 2 * 2 * 2 * D * D
    flops_attn = 2 * (2 * 3 * S * D * dh + 2 * S * dh * D
                      + 2 * 2 * n_head * S * S * d_head)
    flops_heads = (2 * 2 * S * D * 2) + (2 * 2 * S * D * n_out) + (2 * S * R * n_out)
    flops = B * (flops_cln + flops_attn + flops_heads)
    transcendentals = B * (2 * n_head * S * S + S * (2 + n_out))
    bytes_accessed = 4 * (h_plm.size + type_repr.size
                          + sum(int(w.size) for w in weights)
                          + B * S * (2 + n_out))

    trig_out, arg_out = pl.pallas_call(
        kernel,
        out_shape=(jax.ShapeDtypeStruct((B, S, 2), jnp.float32),
                   jax.ShapeDtypeStruct((B, S, n_out), jnp.float32)),
        grid_spec=pltpu.PrefetchScalarGridSpec(
            num_scalar_prefetch=2,
            grid=(B,),
            in_specs=in_specs,
            out_specs=out_specs,
        ),
        compiler_params=pltpu.CompilerParams(
            dimension_semantics=("parallel",)),
        cost_estimate=pl.CostEstimate(flops=int(flops),
                                      transcendentals=int(transcendentals),
                                      bytes_accessed=int(bytes_accessed)),
    )(trig_start_idx, trig_end_idx, h_plm, type_repr, *weights)

    return {
        "trigger_start": trig_out[..., 0],                               # (B, S)
        "trigger_end": trig_out[..., 1],                                 # (B, S)
        "argument_start": arg_out[..., :n_roles],                        # (B, S, n_roles)
        "argument_end": arg_out[..., n_roles:],                          # (B, S, n_roles)
    }


# ----------------------------------------------------------------------------
# Parameter construction (deterministic, synthetic)
# ----------------------------------------------------------------------------

def init_params(key, D, n_head, d_head, n_roles, max_rel):
    dh = n_head * d_head
    ks = jax.random.split(key, 32)
    it = iter(range(32))

    def nrm(k_idx, shape, scale=0.02):
        return scale * jax.random.normal(ks[k_idx], shape, dtype=jnp.float32)

    def cln_params():
        return dict(
            wg=nrm(next(it), (D, D)), bg=jnp.ones((1, D), jnp.float32),    # gamma bias = 1
            wb=nrm(next(it), (D, D)), bb=jnp.zeros((1, D), jnp.float32),   # beta  bias = 0
        )

    def attn_params():
        return dict(
            wq=nrm(next(it), (D, dh)), bq=jnp.zeros((1, dh), jnp.float32),
            wk=nrm(next(it), (D, dh)), bk=jnp.zeros((1, dh), jnp.float32),
            wv=nrm(next(it), (D, dh)), bv=jnp.zeros((1, dh), jnp.float32),
            wo=nrm(next(it), (dh, D)), bo=jnp.zeros((1, D), jnp.float32),
        )

    params = dict(
        sent_cln=cln_params(),                     # SentenceRepresentation.CLN
        tem_attn=attn_params(),                    # TriggerExtractionLayer MHSA
        # trigger head split: Linear(2D -> 2) == H_styp @ W1 + attn @ W2
        tem_w1=nrm(next(it), (D, 2)),
        tem_w2=nrm(next(it), (D, 2)),
        tem_b=jnp.zeros((1, 2), jnp.float32),
        trig_cln=cln_params(),                     # TriggeredSentenceRepresentation.CLN
        rpe_table=nrm(next(it), (2 * max_rel + 1, D)),  # relative-position embedding table
        aem_attn=attn_params(),                    # ArgumentExtractionModel MHSA
        # argument head split: Linear(3D -> 2*n_roles) == arg_H @ W1 + attn @ W2 + RPE @ W3
        aem_w1=nrm(next(it), (D, 2 * n_roles)),
        aem_w2=nrm(next(it), (D, 2 * n_roles)),
        aem_w3=nrm(next(it), (D, 2 * n_roles)),
        aem_b=jnp.zeros((1, 2 * n_roles), jnp.float32),
    )
    return params


# ----------------------------------------------------------------------------
# Main
# ----------------------------------------------------------------------------

if __name__ == "__main__":
    B, S, D = 2, 8, 32
    N_HEAD, D_HEAD = 4, 8
    N_ROLES = 5
    MAX_REL = S  # clip range for relative positions

    root = jax.random.PRNGKey(0)
    k_params, k_plm, k_type = jax.random.split(root, 3)

    params = init_params(k_params, D, N_HEAD, D_HEAD, N_ROLES, MAX_REL)

    # Synthetic stand-ins for the PLM (BERT) token embeddings and event-type representations.
    h_plm = jax.random.normal(k_plm, (B, S, D), dtype=jnp.float32)         # (B, S, D)
    type_repr = jax.random.normal(k_type, (B, 1, D), dtype=jnp.float32)    # (B, 1, D)

    # Ground-truth trigger spans (training mode uses gt spans), inclusive [start, end].
    trig_start_idx = jnp.array([1, 2], dtype=jnp.int32)
    trig_end_idx = jnp.array([3, 5], dtype=jnp.int32)

    out = joint_ee_forward(params, h_plm, type_repr, trig_start_idx, trig_end_idx,
                           n_head=N_HEAD, d_head=D_HEAD, n_roles=N_ROLES, max_rel=MAX_REL)
    out = jax.tree_util.tree_map(jax.block_until_ready, out)

    assert out["trigger_start"].shape == (B, S)
    assert out["trigger_end"].shape == (B, S)
    assert out["argument_start"].shape == (B, S, N_ROLES)
    assert out["argument_end"].shape == (B, S, N_ROLES)
    assert all(bool(jnp.all(jnp.isfinite(v))) for v in out.values())

    print("KERNEL_OK")
</pallas_src>

<mosaic_0001>
module attributes {stable_mosaic.version = 11 : i64} {
  func.func @_joint_ee_kernel(%arg0: i32, %arg1: memref<2xi32, #tpu.memory_space<smem>>, %arg2: memref<2xi32, #tpu.memory_space<smem>>, %arg3: memref<1x8x32xf32, #tpu.memory_space<vmem>>, %arg4: memref<1x1x32xf32, #tpu.memory_space<vmem>>, %arg5: memref<32x32xf32, #tpu.memory_space<vmem>>, %arg6: memref<1x32xf32, #tpu.memory_space<vmem>>, %arg7: memref<32x32xf32, #tpu.memory_space<vmem>>, %arg8: memref<1x32xf32, #tpu.memory_space<vmem>>, %arg9: memref<32x32xf32, #tpu.memory_space<vmem>>, %arg10: memref<1x32xf32, #tpu.memory_space<vmem>>, %arg11: memref<32x32xf32, #tpu.memory_space<vmem>>, %arg12: memref<1x32xf32, #tpu.memory_space<vmem>>, %arg13: memref<32x32xf32, #tpu.memory_space<vmem>>, %arg14: memref<1x32xf32, #tpu.memory_space<vmem>>, %arg15: memref<32x32xf32, #tpu.memory_space<vmem>>, %arg16: memref<1x32xf32, #tpu.memory_space<vmem>>, %arg17: memref<32x2xf32, #tpu.memory_space<vmem>>, %arg18: memref<32x2xf32, #tpu.memory_space<vmem>>, %arg19: memref<1x2xf32, #tpu.memory_space<vmem>>, %arg20: memref<32x32xf32, #tpu.memory_space<vmem>>, %arg21: memref<1x32xf32, #tpu.memory_space<vmem>>, %arg22: memref<32x32xf32, #tpu.memory_space<vmem>>, %arg23: memref<1x32xf32, #tpu.memory_space<vmem>>, %arg24: memref<17x10xf32, #tpu.memory_space<vmem>>, %arg25: memref<32x32xf32, #tpu.memory_space<vmem>>, %arg26: memref<1x32xf32, #tpu.memory_space<vmem>>, %arg27: memref<32x32xf32, #tpu.memory_space<vmem>>, %arg28: memref<1x32xf32, #tpu.memory_space<vmem>>, %arg29: memref<32x32xf32, #tpu.memory_space<vmem>>, %arg30: memref<1x32xf32, #tpu.memory_space<vmem>>, %arg31: memref<32x32xf32, #tpu.memory_space<vmem>>, %arg32: memref<1x32xf32, #tpu.memory_space<vmem>>, %arg33: memref<32x10xf32, #tpu.memory_space<vmem>>, %arg34: memref<32x10xf32, #tpu.memory_space<vmem>>, %arg35: memref<1x10xf32, #tpu.memory_space<vmem>>, %arg36: memref<1x8x2xf32, #tpu.memory_space<vmem>>, %arg37: memref<1x8x10xf32, #tpu.memory_space<vmem>>) attributes {dimension_semantics = [#tpu.dimension_semantics<parallel>], iteration_bounds = array<i64: 2>, scalar_prefetch = 2 : i64, scratch_operands = 0 : i64, tpu.core_type = #tpu.core_type<tc>, window_params = [{transform_indices = @transform_0, window_bounds = array<i64: 1, 8, 32>}, {transform_indices = @transform_1, window_bounds = array<i64: 1, 1, 32>}, {pipeline_mode = #tpu.pipeline_mode<synchronous>, transform_indices = @transform_2, window_bounds = array<i64: 32, 32>}, {pipeline_mode = #tpu.pipeline_mode<synchronous>, transform_indices = @transform_3, window_bounds = array<i64: 1, 32>}, {pipeline_mode = #tpu.pipeline_mode<synchronous>, transform_indices = @transform_4, window_bounds = array<i64: 32, 32>}, {pipeline_mode = #tpu.pipeline_mode<synchronous>, transform_indices = @transform_5, window_bounds = array<i64: 1, 32>}, {pipeline_mode = #tpu.pipeline_mode<synchronous>, transform_indices = @transform_6, window_bounds = array<i64: 32, 32>}, {pipeline_mode = #tpu.pipeline_mode<synchronous>, transform_indices = @transform_7, window_bounds = array<i64: 1, 32>}, {pipeline_mode = #tpu.pipeline_mode<synchronous>, transform_indices = @transform_8, window_bounds = array<i64: 32, 32>}, {pipeline_mode = #tpu.pipeline_mode<synchronous>, transform_indices = @transform_9, window_bounds = array<i64: 1, 32>}, {pipeline_mode = #tpu.pipeline_mode<synchronous>, transform_indices = @transform_10, window_bounds = array<i64: 32, 32>}, {pipeline_mode = #tpu.pipeline_mode<synchronous>, transform_indices = @transform_11, window_bounds = array<i64: 1, 32>}, {pipeline_mode = #tpu.pipeline_mode<synchronous>, transform_indices = @transform_12, window_bounds = array<i64: 32, 32>}, {pipeline_mode = #tpu.pipeline_mode<synchronous>, transform_indices = @transform_13, window_bounds = array<i64: 1, 32>}, {pipeline_mode = #tpu.pipeline_mode<synchronous>, transform_indices = @transform_14, window_bounds = array<i64: 32, 2>}, {pipeline_mode = #tpu.pipeline_mode<synchronous>, transform_indices = @transform_15, window_bounds = array<i64: 32, 2>}, {pipeline_mode = #tpu.pipeline_mode<synchronous>, transform_indices = @transform_16, window_bounds = array<i64: 1, 2>}, {pipeline_mode = #tpu.pipeline_mode<synchronous>, transform_indices = @transform_17, window_bounds = array<i64: 32, 32>}, {pipeline_mode = #tpu.pipeline_mode<synchronous>, transform_indices = @transform_18, window_bounds = array<i64: 1, 32>}, {pipeline_mode = #tpu.pipeline_mode<synchronous>, transform_indices = @transform_19, window_bounds = array<i64: 32, 32>}, {pipeline_mode = #tpu.pipeline_mode<synchronous>, transform_indices = @transform_20, window_bounds = array<i64: 1, 32>}, {pipeline_mode = #tpu.pipeline_mode<synchronous>, transform_indices = @transform_21, window_bounds = array<i64: 17, 10>}, {pipeline_mode = #tpu.pipeline_mode<synchronous>, transform_indices = @transform_22, window_bounds = array<i64: 32, 32>}, {pipeline_mode = #tpu.pipeline_mode<synchronous>, transform_indices = @transform_23, window_bounds = array<i64: 1, 32>}, {pipeline_mode = #tpu.pipeline_mode<synchronous>, transform_indices = @transform_24, window_bounds = array<i64: 32, 32>}, {pipeline_mode = #tpu.pipeline_mode<synchronous>, transform_indices = @transform_25, window_bounds = array<i64: 1, 32>}, {pipeline_mode = #tpu.pipeline_mode<synchronous>, transform_indices = @transform_26, window_bounds = array<i64: 32, 32>}, {pipeline_mode = #tpu.pipeline_mode<synchronous>, transform_indices = @transform_27, window_bounds = array<i64: 1, 32>}, {pipeline_mode = #tpu.pipeline_mode<synchronous>, transform_indices = @transform_28, window_bounds = array<i64: 32, 32>}, {pipeline_mode = #tpu.pipeline_mode<synchronous>, transform_indices = @transform_29, window_bounds = array<i64: 1, 32>}, {pipeline_mode = #tpu.pipeline_mode<synchronous>, transform_indices = @transform_30, window_bounds = array<i64: 32, 10>}, {pipeline_mode = #tpu.pipeline_mode<synchronous>, transform_indices = @transform_31, window_bounds = array<i64: 32, 10>}, {pipeline_mode = #tpu.pipeline_mode<synchronous>, transform_indices = @transform_32, window_bounds = array<i64: 1, 10>}, {transform_indices = @transform_33, window_bounds = array<i64: 1, 8, 2>}, {transform_indices = @transform_34, window_bounds = array<i64: 1, 8, 10>}]} {
    %c0 = arith.constant 0 : index
    %c0_0 = arith.constant 0 : index
    %c0_1 = arith.constant 0 : index
    %0 = vector.load %arg3[%c0, %c0_0, %c0_1] : memref<1x8x32xf32, #tpu.memory_space<vmem>>, vector<1x8x32xf32>
    %1 = vector.shape_cast %0 : vector<1x8x32xf32> to vector<8x32xf32>
    %c0_2 = arith.constant 0 : index
    %c0_3 = arith.constant 0 : index
    %c0_4 = arith.constant 0 : index
    %2 = vector.load %arg4[%c0_2, %c0_3, %c0_4] : memref<1x1x32xf32, #tpu.memory_space<vmem>>, vector<1x1x32xf32>
    %3 = vector.shape_cast %2 : vector<1x1x32xf32> to vector<1x32xf32>
    %c0_5 = arith.constant 0 : index
    %c0_6 = arith.constant 0 : index
    %4 = vector.load %arg5[%c0_5, %c0_6] : memref<32x32xf32, #tpu.memory_space<vmem>>, vector<32x32xf32>
    %c0_7 = arith.constant 0 : index
    %c0_8 = arith.constant 0 : index
    %5 = vector.load %arg6[%c0_7, %c0_8] : memref<1x32xf32, #tpu.memory_space<vmem>>, vector<1x32xf32>
    %c0_9 = arith.constant 0 : index
    %c0_10 = arith.constant 0 : index
    %6 = vector.load %arg7[%c0_9, %c0_10] : memref<32x32xf32, #tpu.memory_space<vmem>>, vector<32x32xf32>
    %c0_11 = arith.constant 0 : index
    %c0_12 = arith.constant 0 : index
    %7 = vector.load %arg8[%c0_11, %c0_12] : memref<1x32xf32, #tpu.memory_space<vmem>>, vector<1x32xf32>
    %8 = arith.truncf %3 : vector<1x32xf32> to vector<1x32xbf16>
    %9 = arith.truncf %4 : vector<32x32xf32> to vector<32x32xbf16>
    %cst = arith.constant dense<0.000000e+00> : vector<1x32xf32>
    %10 = tpu.matmul %8, %9, %cst {dimension_numbers = #tpu.dot_dimension_numbers<[1], [0], [0], [1], [0, 0, 1, 1], [], []>} : vector<1x32xbf16>, vector<32x32xbf16>, vector<1x32xf32> -> vector<1x32xf32>
    %11 = arith.addf %10, %5 : vector<1x32xf32>
    %12 = arith.truncf %3 : vector<1x32xf32> to vector<1x32xbf16>
    %13 = arith.truncf %6 : vector<32x32xf32> to vector<32x32xbf16>
    %cst_13 = arith.constant dense<0.000000e+00> : vector<1x32xf32>
    %14 = tpu.matmul %12, %13, %cst_13 {dimension_numbers = #tpu.dot_dimension_numbers<[1], [0], [0], [1], [0, 0, 1, 1], [], []>} : vector<1x32xbf16>, vector<32x32xbf16>, vector<1x32xf32> -> vector<1x32xf32>
    %15 = arith.addf %14, %7 : vector<1x32xf32>
    %cst_14 = arith.constant dense<0.000000e+00> : vector<8xf32>
    %16 = vector.multi_reduction <add>, %1, %cst_14 [1] : vector<8x32xf32> to vector<8xf32>
    %17 = vector.shape_cast %16 : vector<8xf32> to vector<8x1xf32>
    %cst_15 = arith.constant 3.200000e+01 : f32
    %18 = vector.broadcast %cst_15 : f32 to vector<8x1xf32>
    %19 = arith.divf %17, %18 : vector<8x1xf32>
    %20 = vector.broadcast %19 : vector<8x1xf32> to vector<8x32xf32>
    %21 = arith.subf %1, %20 : vector<8x32xf32>
    %22 = arith.mulf %21, %21 : vector<8x32xf32>
    %cst_16 = arith.constant dense<0.000000e+00> : vector<8xf32>
    %23 = vector.multi_reduction <add>, %22, %cst_16 [1] : vector<8x32xf32> to vector<8xf32>
    %24 = vector.shape_cast %23 : vector<8xf32> to vector<8x1xf32>
    %cst_17 = arith.constant 3.200000e+01 : f32
    %25 = vector.broadcast %cst_17 : f32 to vector<8x1xf32>
    %26 = arith.divf %24, %25 : vector<8x1xf32>
    %27 = vector.broadcast %19 : vector<8x1xf32> to vector<8x32xf32>
    %28 = arith.subf %1, %27 : vector<8x32xf32>
    %cst_18 = arith.constant 9.99999996E-13 : f32
    %29 = vector.broadcast %cst_18 : f32 to vector<8x1xf32>
    %30 = arith.addf %26, %29 : vector<8x1xf32>
    %31 = math.rsqrt %30 : vector<8x1xf32>
    %32 = vector.broadcast %31 : vector<8x1xf32> to vector<8x32xf32>
    %33 = arith.mulf %28, %32 : vector<8x32xf32>
    %34 = vector.broadcast %11 : vector<1x32xf32> to vector<8x32xf32>
    %35 = arith.mulf %33, %34 : vector<8x32xf32>
    %36 = vector.broadcast %15 : vector<1x32xf32> to vector<8x32xf32>
    %37 = arith.addf %35, %36 : vector<8x32xf32>
    %c0_19 = arith.constant 0 : index
    %c0_20 = arith.constant 0 : index
    %38 = vector.load %arg9[%c0_19, %c0_20] : memref<32x32xf32, #tpu.memory_space<vmem>>, vector<32x32xf32>
    %c0_21 = arith.constant 0 : index
    %c0_22 = arith.constant 0 : index
    %39 = vector.load %arg10[%c0_21, %c0_22] : memref<1x32xf32, #tpu.memory_space<vmem>>, vector<1x32xf32>
    %c0_23 = arith.constant 0 : index
    %c0_24 = arith.constant 0 : index
    %40 = vector.load %arg11[%c0_23, %c0_24] : memref<32x32xf32, #tpu.memory_space<vmem>>, vector<32x32xf32>
    %c0_25 = arith.constant 0 : index
    %c0_26 = arith.constant 0 : index
    %41 = vector.load %arg12[%c0_25, %c0_26] : memref<1x32xf32, #tpu.memory_space<vmem>>, vector<1x32xf32>
    %c0_27 = arith.constant 0 : index
    %c0_28 = arith.constant 0 : index
    %42 = vector.load %arg13[%c0_27, %c0_28] : memref<32x32xf32, #tpu.memory_space<vmem>>, vector<32x32xf32>
    %c0_29 = arith.constant 0 : index
    %c0_30 = arith.constant 0 : index
    %43 = vector.load %arg14[%c0_29, %c0_30] : memref<1x32xf32, #tpu.memory_space<vmem>>, vector<1x32xf32>
    %c0_31 = arith.constant 0 : index
    %c0_32 = arith.constant 0 : index
    %44 = vector.load %arg15[%c0_31, %c0_32] : memref<32x32xf32, #tpu.memory_space<vmem>>, vector<32x32xf32>
    %c0_33 = arith.constant 0 : index
    %c0_34 = arith.constant 0 : index
    %45 = vector.load %arg16[%c0_33, %c0_34] : memref<1x32xf32, #tpu.memory_space<vmem>>, vector<1x32xf32>
    %46 = arith.truncf %37 : vector<8x32xf32> to vector<8x32xbf16>
    %47 = arith.truncf %38 : vector<32x32xf32> to vector<32x32xbf16>
    %cst_35 = arith.constant dense<0.000000e+00> : vector<8x32xf32>
    %48 = tpu.matmul %46, %47, %cst_35 {dimension_numbers = #tpu.dot_dimension_numbers<[1], [0], [0], [1], [0, 0, 1, 1], [], []>} : vector<8x32xbf16>, vector<32x32xbf16>, vector<8x32xf32> -> vector<8x32xf32>
    %49 = vector.broadcast %39 : vector<1x32xf32> to vector<8x32xf32>
    %50 = arith.addf %48, %49 : vector<8x32xf32>
    %51 = arith.truncf %37 : vector<8x32xf32> to vector<8x32xbf16>
    %52 = arith.truncf %40 : vector<32x32xf32> to vector<32x32xbf16>
    %cst_36 = arith.constant dense<0.000000e+00> : vector<8x32xf32>
    %53 = tpu.matmul %51, %52, %cst_36 {dimension_numbers = #tpu.dot_dimension_numbers<[1], [0], [0], [1], [0, 0, 1, 1], [], []>} : vector<8x32xbf16>, vector<32x32xbf16>, vector<8x32xf32> -> vector<8x32xf32>
    %54 = vector.broadcast %41 : vector<1x32xf32> to vector<8x32xf32>
    %55 = arith.addf %53, %54 : vector<8x32xf32>
    %56 = arith.truncf %37 : vector<8x32xf32> to vector<8x32xbf16>
    %57 = arith.truncf %42 : vector<32x32xf32> to vector<32x32xbf16>
    %cst_37 = arith.constant dense<0.000000e+00> : vector<8x32xf32>
    %58 = tpu.matmul %56, %57, %cst_37 {dimension_numbers = #tpu.dot_dimension_numbers<[1], [0], [0], [1], [0, 0, 1, 1], [], []>} : vector<8x32xbf16>, vector<32x32xbf16>, vector<8x32xf32> -> vector<8x32xf32>
    %59 = vector.broadcast %43 : vector<1x32xf32> to vector<8x32xf32>
    %60 = arith.addf %58, %59 : vector<8x32xf32>
    %61 = vector.shape_cast %50 : vector<8x32xf32> to vector<8x4x8xf32>
    %62 = tpu.transpose %61, [1, 0, 2] : vector<8x4x8xf32> -> vector<4x8x8xf32>
    %63 = vector.shape_cast %55 : vector<8x32xf32> to vector<8x4x8xf32>
    %64 = tpu.transpose %63, [1, 0, 2] : vector<8x4x8xf32> -> vector<4x8x8xf32>
    %65 = vector.shape_cast %60 : vector<8x32xf32> to vector<8x4x8xf32>
    %66 = tpu.transpose %65, [1, 0, 2] : vector<8x4x8xf32> -> vector<4x8x8xf32>
    %67 = arith.truncf %62 : vector<4x8x8xf32> to vector<4x8x8xbf16>
    %68 = arith.truncf %64 : vector<4x8x8xf32> to vector<4x8x8xbf16>
    "tpu.trace_start"() <{level = 10 : i32, message = "hqd,hkd->hqk"}> : () -> ()
    %cst_38 = arith.constant dense<0.000000e+00> : vector<4x8x8xf32>
    %69 = tpu.matmul %67, %68, %cst_38 {dimension_numbers = #tpu.dot_dimension_numbers<[2], [2], [1], [1], [0, 0, 0, 1, 1, 1], [0], [0]>} : vector<4x8x8xbf16>, vector<4x8x8xbf16>, vector<4x8x8xf32> -> vector<4x8x8xf32>
    "tpu.trace_stop"() : () -> ()
    %cst_39 = arith.constant 0.353553385 : f32
    %70 = vector.broadcast %cst_39 : f32 to vector<4x8x8xf32>
    %71 = arith.mulf %69, %70 : vector<4x8x8xf32>
    %cst_40 = arith.constant dense<0xFF800000> : vector<4x8xf32>
    %72 = vector.multi_reduction <maximumf>, %71, %cst_40 [2] : vector<4x8x8xf32> to vector<4x8xf32>
    %73 = vector.shape_cast %72 : vector<4x8xf32> to vector<4x8x1xf32>
    %74 = vector.broadcast %73 : vector<4x8x1xf32> to vector<4x8x8xf32>
    %75 = arith.subf %71, %74 : vector<4x8x8xf32>
    %76 = math.exp %75 : vector<4x8x8xf32>
    %cst_41 = arith.constant dense<0.000000e+00> : vector<4x8xf32>
    %77 = vector.multi_reduction <add>, %76, %cst_41 [2] : vector<4x8x8xf32> to vector<4x8xf32>
    %78 = vector.shape_cast %77 : vector<4x8xf32> to vector<4x8x1xf32>
    %79 = tpu.reciprocal %78 {approx = true} : vector<4x8x1xf32> -> vector<4x8x1xf32>
    %80 = vector.broadcast %79 : vector<4x8x1xf32> to vector<4x8x8xf32>
    %81 = arith.mulf %76, %80 : vector<4x8x8xf32>
    %82 = arith.truncf %81 : vector<4x8x8xf32> to vector<4x8x8xbf16>
    %83 = arith.truncf %66 : vector<4x8x8xf32> to vector<4x8x8xbf16>
    "tpu.trace_start"() <{level = 10 : i32, message = "hqk,hkd->hqd"}> : () -> ()
    %cst_42 = arith.constant dense<0.000000e+00> : vector<4x8x8xf32>
    %84 = tpu.matmul %82, %83, %cst_42 {dimension_numbers = #tpu.dot_dimension_numbers<[2], [1], [1], [2], [0, 0, 0, 1, 1, 2], [0], [0]>} : vector<4x8x8xbf16>, vector<4x8x8xbf16>, vector<4x8x8xf32> -> vector<4x8x8xf32>
    "tpu.trace_stop"() : () -> ()
    %85 = tpu.transpose %84, [1, 0, 2] : vector<4x8x8xf32> -> vector<8x4x8xf32>
    %86 = vector.shape_cast %85 : vector<8x4x8xf32> to vector<8x32xf32>
    %87 = arith.truncf %86 : vector<8x32xf32> to vector<8x32xbf16>
    %88 = arith.truncf %44 : vector<32x32xf32> to vector<32x32xbf16>
    %cst_43 = arith.constant dense<0.000000e+00> : vector<8x32xf32>
    %89 = tpu.matmul %87, %88, %cst_43 {dimension_numbers = #tpu.dot_dimension_numbers<[1], [0], [0], [1], [0, 0, 1, 1], [], []>} : vector<8x32xbf16>, vector<32x32xbf16>, vector<8x32xf32> -> vector<8x32xf32>
    %90 = vector.broadcast %45 : vector<1x32xf32> to vector<8x32xf32>
    %91 = arith.addf %89, %90 : vector<8x32xf32>
    %c0_44 = arith.constant 0 : index
    %c0_45 = arith.constant 0 : index
    %92 = vector.load %arg17[%c0_44, %c0_45] : memref<32x2xf32, #tpu.memory_space<vmem>>, vector<32x2xf32>
    %93 = arith.truncf %37 : vector<8x32xf32> to vector<8x32xbf16>
    %94 = arith.truncf %92 : vector<32x2xf32> to vector<32x2xbf16>
    %cst_46 = arith.constant dense<0.000000e+00> : vector<8x2xf32>
    %95 = tpu.matmul %93, %94, %cst_46 {dimension_numbers = #tpu.dot_dimension_numbers<[1], [0], [0], [1], [0, 0, 1, 1], [], []>} : vector<8x32xbf16>, vector<32x2xbf16>, vector<8x2xf32> -> vector<8x2xf32>
    %c0_47 = arith.constant 0 : index
    %c0_48 = arith.constant 0 : index
    %96 = vector.load %arg18[%c0_47, %c0_48] : memref<32x2xf32, #tpu.memory_space<vmem>>, vector<32x2xf32>
    %97 = arith.truncf %91 : vector<8x32xf32> to vector<8x32xbf16>
    %98 = arith.truncf %96 : vector<32x2xf32> to vector<32x2xbf16>
    %cst_49 = arith.constant dense<0.000000e+00> : vector<8x2xf32>
    %99 = tpu.matmul %97, %98, %cst_49 {dimension_numbers = #tpu.dot_dimension_numbers<[1], [0], [0], [1], [0, 0, 1, 1], [], []>} : vector<8x32xbf16>, vector<32x2xbf16>, vector<8x2xf32> -> vector<8x2xf32>
    %100 = arith.addf %95, %99 : vector<8x2xf32>
    %c0_50 = arith.constant 0 : index
    %c0_51 = arith.constant 0 : index
    %101 = vector.load %arg19[%c0_50, %c0_51] : memref<1x2xf32, #tpu.memory_space<vmem>>, vector<1x2xf32>
    %102 = vector.broadcast %101 : vector<1x2xf32> to vector<8x2xf32>
    %103 = arith.addf %100, %102 : vector<8x2xf32>
    %104 = arith.negf %103 : vector<8x2xf32>
    %105 = math.exp %104 : vector<8x2xf32>
    %cst_52 = arith.constant 1.000000e+00 : f32
    %106 = vector.broadcast %cst_52 : f32 to vector<8x2xf32>
    %107 = arith.addf %106, %105 : vector<8x2xf32>
    %108 = arith.divf %106, %107 : vector<8x2xf32>
    %c0_53 = arith.constant 0 : index
    %c0_54 = arith.constant 0 : index
    %c0_55 = arith.constant 0 : index
    %109 = vector.load %arg36[%c0_53, %c0_54, %c0_55] : memref<1x8x2xf32, #tpu.memory_space<vmem>>, vector<1x8x2xf32>
    %110 = vector.shape_cast %109 : vector<1x8x2xf32> to vector<8x2xf32>
    %111 = vector.shape_cast %108 : vector<8x2xf32> to vector<1x8x2xf32>
    tpu.vector_store %arg36[%c0_53, %c0_54, %c0_55], %111 {strides = array<i32>} : memref<1x8x2xf32, #tpu.memory_space<vmem>>, vector<1x8x2xf32>,
    %112 = arith.index_cast %arg0 : i32 to index
    %113 = memref.load %arg1[%112] : memref<2xi32, #tpu.memory_space<smem>>
    %114 = arith.index_cast %arg0 : i32 to index
    %115 = memref.load %arg2[%114] : memref<2xi32, #tpu.memory_space<smem>>
    %116 = tpu.iota {dimensions = array<i32: 0>} : vector<8x1xi32>
    %117 = vector.broadcast %113 : i32 to vector<8x1xi32>
    %118 = arith.cmpi sge, %116, %117 : vector<8x1xi32>
    %119 = vector.broadcast %115 : i32 to vector<8x1xi32>
    %120 = arith.cmpi sle, %116, %119 : vector<8x1xi32>
    %121 = arith.andi %118, %120 : vector<8x1xi1>
    %122 = arith.extui %121 : vector<8x1xi1> to vector<8x1xi32>
    %123 = arith.sitofp %122 : vector<8x1xi32> to vector<8x1xf32>
    %cst_56 = arith.constant dense<0.000000e+00> : vector<1xf32>
    %124 = vector.multi_reduction <add>, %123, %cst_56 [0] : vector<8x1xf32> to vector<1xf32>
    %125 = vector.shape_cast %124 : vector<1xf32> to vector<1x1xf32>
    %cst_57 = arith.constant 1.000000e+00 : f32
    %126 = vector.broadcast %cst_57 : f32 to vector<1x1xf32>
    %127 = arith.maximumf %125, %126 : vector<1x1xf32>
    %128 = vector.broadcast %123 : vector<8x1xf32> to vector<8x32xf32>
    %129 = arith.mulf %37, %128 : vector<8x32xf32>
    %cst_58 = arith.constant dense<0.000000e+00> : vector<32xf32>
    %130 = vector.multi_reduction <add>, %129, %cst_58 [0] : vector<8x32xf32> to vector<32xf32>
    %131 = vector.shape_cast %130 : vector<32xf32> to vector<1x32xf32>
    %132 = vector.broadcast %127 : vector<1x1xf32> to vector<1x32xf32>
    %133 = arith.divf %131, %132 : vector<1x32xf32>
    %c0_59 = arith.constant 0 : index
    %c0_60 = arith.constant 0 : index
    %134 = vector.load %arg20[%c0_59, %c0_60] : memref<32x32xf32, #tpu.memory_space<vmem>>, vector<32x32xf32>
    %c0_61 = arith.constant 0 : index
    %c0_62 = arith.constant 0 : index
    %135 = vector.load %arg21[%c0_61, %c0_62] : memref<1x32xf32, #tpu.memory_space<vmem>>, vector<1x32xf32>
    %c0_63 = arith.constant 0 : index
    %c0_64 = arith.constant 0 : index
    %136 = vector.load %arg22[%c0_63, %c0_64] : memref<32x32xf32, #tpu.memory_space<vmem>>, vector<32x32xf32>
    %c0_65 = arith.constant 0 : index
    %c0_66 = arith.constant 0 : index
    %137 = vector.load %arg23[%c0_65, %c0_66] : memref<1x32xf32, #tpu.memory_space<vmem>>, vector<1x32xf32>
    %138 = arith.truncf %133 : vector<1x32xf32> to vector<1x32xbf16>
    %139 = arith.truncf %134 : vector<32x32xf32> to vector<32x32xbf16>
    %cst_67 = arith.constant dense<0.000000e+00> : vector<1x32xf32>
    %140 = tpu.matmul %138, %139, %cst_67 {dimension_numbers = #tpu.dot_dimension_numbers<[1], [0], [0], [1], [0, 0, 1, 1], [], []>} : vector<1x32xbf16>, vector<32x32xbf16>, vector<1x32xf32> -> vector<1x32xf32>
    %141 = arith.addf %140, %135 : vector<1x32xf32>
    %142 = arith.truncf %133 : vector<1x32xf32> to vector<1x32xbf16>
    %143 = arith.truncf %136 : vector<32x32xf32> to vector<32x32xbf16>
    %cst_68 = arith.constant dense<0.000000e+00> : vector<1x32xf32>
    %144 = tpu.matmul %142, %143, %cst_68 {dimension_numbers = #tpu.dot_dimension_numbers<[1], [0], [0], [1], [0, 0, 1, 1], [], []>} : vector<1x32xbf16>, vector<32x32xbf16>, vector<1x32xf32> -> vector<1x32xf32>
    %145 = arith.addf %144, %137 : vector<1x32xf32>
    %cst_69 = arith.constant dense<0.000000e+00> : vector<8xf32>
    %146 = vector.multi_reduction <add>, %37, %cst_69 [1] : vector<8x32xf32> to vector<8xf32>
    %147 = vector.shape_cast %146 : vector<8xf32> to vector<8x1xf32>
    %cst_70 = arith.constant 3.200000e+01 : f32
    %148 = vector.broadcast %cst_70 : f32 to vector<8x1xf32>
    %149 = arith.divf %147, %148 : vector<8x1xf32>
    %150 = vector.broadcast %149 : vector<8x1xf32> to vector<8x32xf32>
    %151 = arith.subf %37, %150 : vector<8x32xf32>
    %152 = arith.mulf %151, %151 : vector<8x32xf32>
    %cst_71 = arith.constant dense<0.000000e+00> : vector<8xf32>
    %153 = vector.multi_reduction <add>, %152, %cst_71 [1] : vector<8x32xf32> to vector<8xf32>
    %154 = vector.shape_cast %153 : vector<8xf32> to vector<8x1xf32>
    %cst_72 = arith.constant 3.200000e+01 : f32
    %155 = vector.broadcast %cst_72 : f32 to vector<8x1xf32>
    %156 = arith.divf %154, %155 : vector<8x1xf32>
    %157 = vector.broadcast %149 : vector<8x1xf32> to vector<8x32xf32>
    %158 = arith.subf %37, %157 : vector<8x32xf32>
    %cst_73 = arith.constant 9.99999996E-13 : f32
    %159 = vector.broadcast %cst_73 : f32 to vector<8x1xf32>
    %160 = arith.addf %156, %159 : vector<8x1xf32>
    %161 = math.rsqrt %160 : vector<8x1xf32>
    %162 = vector.broadcast %161 : vector<8x1xf32> to vector<8x32xf32>
    %163 = arith.mulf %158, %162 : vector<8x32xf32>
    %164 = vector.broadcast %141 : vector<1x32xf32> to vector<8x32xf32>
    %165 = arith.mulf %163, %164 : vector<8x32xf32>
    %166 = vector.broadcast %145 : vector<1x32xf32> to vector<8x32xf32>
    %167 = arith.addf %165, %166 : vector<8x32xf32>
    %168 = vector.broadcast %113 : i32 to vector<8x1xi32>
    %169 = arith.cmpi slt, %116, %168 : vector<8x1xi32>
    %170 = vector.broadcast %113 : i32 to vector<8x1xi32>
    %171 = arith.subi %116, %170 : vector<8x1xi32>
    %172 = vector.broadcast %115 : i32 to vector<8x1xi32>
    %173 = arith.cmpi sgt, %116, %172 : vector<8x1xi32>
    %174 = vector.broadcast %115 : i32 to vector<8x1xi32>
    %175 = arith.subi %116, %174 : vector<8x1xi32>
    %c0_i32 = arith.constant 0 : i32
    %176 = vector.broadcast %c0_i32 : i32 to vector<8x1xi32>
    %177 = arith.select %173, %175, %176 : vector<8x1xi1>, vector<8x1xi32>
    %178 = arith.select %169, %171, %177 : vector<8x1xi1>, vector<8x1xi32>
    %c-8_i32 = arith.constant -8 : i32
    %c8_i32 = arith.constant 8 : i32
    %179 = vector.broadcast %c-8_i32 : i32 to vector<8x1xi32>
    %180 = arith.maxsi %179, %178 : vector<8x1xi32>
    %181 = vector.broadcast %c8_i32 : i32 to vector<8x1xi32>
    %182 = arith.minsi %181, %180 : vector<8x1xi32>
    %c8_i32_74 = arith.constant 8 : i32
    %183 = vector.broadcast %c8_i32_74 : i32 to vector<8x1xi32>
    %184 = arith.addi %182, %183 : vector<8x1xi32>
    %185 = tpu.iota {dimensions = array<i32: 1>} : vector<8x17xi32>
    %186 = vector.broadcast %184 : vector<8x1xi32> to vector<8x17xi32>
    %187 = arith.cmpi eq, %185, %186 : vector<8x17xi32>
    %188 = arith.extui %187 : vector<8x17xi1> to vector<8x17xi32>
    %189 = arith.sitofp %188 : vector<8x17xi32> to vector<8x17xf32>
    %c0_75 = arith.constant 0 : index
    %c0_76 = arith.constant 0 : index
    %190 = vector.load %arg24[%c0_75, %c0_76] : memref<17x10xf32, #tpu.memory_space<vmem>>, vector<17x10xf32>
    %191 = arith.truncf %189 : vector<8x17xf32> to vector<8x17xbf16>
    %192 = arith.truncf %190 : vector<17x10xf32> to vector<17x10xbf16>
    %cst_77 = arith.constant dense<0.000000e+00> : vector<8x10xf32>
    %193 = tpu.matmul %191, %192, %cst_77 {dimension_numbers = #tpu.dot_dimension_numbers<[1], [0], [0], [1], [0, 0, 1, 1], [], []>} : vector<8x17xbf16>, vector<17x10xbf16>, vector<8x10xf32> -> vector<8x10xf32>
    %c0_78 = arith.constant 0 : index
    %c0_79 = arith.constant 0 : index
    %194 = vector.load %arg25[%c0_78, %c0_79] : memref<32x32xf32, #tpu.memory_space<vmem>>, vector<32x32xf32>
    %c0_80 = arith.constant 0 : index
    %c0_81 = arith.constant 0 : index
    %195 = vector.load %arg26[%c0_80, %c0_81] : memref<1x32xf32, #tpu.memory_space<vmem>>, vector<1x32xf32>
    %c0_82 = arith.constant 0 : index
    %c0_83 = arith.constant 0 : index
    %196 = vector.load %arg27[%c0_82, %c0_83] : memref<32x32xf32, #tpu.memory_space<vmem>>, vector<32x32xf32>
    %c0_84 = arith.constant 0 : index
    %c0_85 = arith.constant 0 : index
    %197 = vector.load %arg28[%c0_84, %c0_85] : memref<1x32xf32, #tpu.memory_space<vmem>>, vector<1x32xf32>
    %c0_86 = arith.constant 0 : index
    %c0_87 = arith.constant 0 : index
    %198 = vector.load %arg29[%c0_86, %c0_87] : memref<32x32xf32, #tpu.memory_space<vmem>>, vector<32x32xf32>
    %c0_88 = arith.constant 0 : index
    %c0_89 = arith.constant 0 : index
    %199 = vector.load %arg30[%c0_88, %c0_89] : memref<1x32xf32, #tpu.memory_space<vmem>>, vector<1x32xf32>
    %c0_90 = arith.constant 0 : index
    %c0_91 = arith.constant 0 : index
    %200 = vector.load %arg31[%c0_90, %c0_91] : memref<32x32xf32, #tpu.memory_space<vmem>>, vector<32x32xf32>
    %c0_92 = arith.constant 0 : index
    %c0_93 = arith.constant 0 : index
    %201 = vector.load %arg32[%c0_92, %c0_93] : memref<1x32xf32, #tpu.memory_space<vmem>>, vector<1x32xf32>
    %202 = arith.truncf %167 : vector<8x32xf32> to vector<8x32xbf16>
    %203 = arith.truncf %194 : vector<32x32xf32> to vector<32x32xbf16>
    %cst_94 = arith.constant dense<0.000000e+00> : vector<8x32xf32>
    %204 = tpu.matmul %202, %203, %cst_94 {dimension_numbers = #tpu.dot_dimension_numbers<[1], [0], [0], [1], [0, 0, 1, 1], [], []>} : vector<8x32xbf16>, vector<32x32xbf16>, vector<8x32xf32> -> vector<8x32xf32>
    %205 = vector.broadcast %195 : vector<1x32xf32> to vector<8x32xf32>
    %206 = arith.addf %204, %205 : vector<8x32xf32>
    %207 = arith.truncf %167 : vector<8x32xf32> to vector<8x32xbf16>
    %208 = arith.truncf %196 : vector<32x32xf32> to vector<32x32xbf16>
    %cst_95 = arith.constant dense<0.000000e+00> : vector<8x32xf32>
    %209 = tpu.matmul %207, %208, %cst_95 {dimension_numbers = #tpu.dot_dimension_numbers<[1], [0], [0], [1], [0, 0, 1, 1], [], []>} : vector<8x32xbf16>, vector<32x32xbf16>, vector<8x32xf32> -> vector<8x32xf32>
    %210 = vector.broadcast %197 : vector<1x32xf32> to vector<8x32xf32>
    %211 = arith.addf %209, %210 : vector<8x32xf32>
    %212 = arith.truncf %167 : vector<8x32xf32> to vector<8x32xbf16>
    %213 = arith.truncf %198 : vector<32x32xf32> to vector<32x32xbf16>
    %cst_96 = arith.constant dense<0.000000e+00> : vector<8x32xf32>
    %214 = tpu.matmul %212, %213, %cst_96 {dimension_numbers = #tpu.dot_dimension_numbers<[1], [0], [0], [1], [0, 0, 1, 1], [], []>} : vector<8x32xbf16>, vector<32x32xbf16>, vector<8x32xf32> -> vector<8x32xf32>
    %215 = vector.broadcast %199 : vector<1x32xf32> to vector<8x32xf32>
    %216 = arith.addf %214, %215 : vector<8x32xf32>
    %217 = vector.shape_cast %206 : vector<8x32xf32> to vector<8x4x8xf32>
    %218 = tpu.transpose %217, [1, 0, 2] : vector<8x4x8xf32> -> vector<4x8x8xf32>
    %219 = vector.shape_cast %211 : vector<8x32xf32> to vector<8x4x8xf32>
    %220 = tpu.transpose %219, [1, 0, 2] : vector<8x4x8xf32> -> vector<4x8x8xf32>
    %221 = vector.shape_cast %216 : vector<8x32xf32> to vector<8x4x8xf32>
    %222 = tpu.transpose %221, [1, 0, 2] : vector<8x4x8xf32> -> vector<4x8x8xf32>
    %223 = arith.truncf %218 : vector<4x8x8xf32> to vector<4x8x8xbf16>
    %224 = arith.truncf %220 : vector<4x8x8xf32> to vector<4x8x8xbf16>
    "tpu.trace_start"() <{level = 10 : i32, message = "hqd,hkd->hqk"}> : () -> ()
    %cst_97 = arith.constant dense<0.000000e+00> : vector<4x8x8xf32>
    %225 = tpu.matmul %223, %224, %cst_97 {dimension_numbers = #tpu.dot_dimension_numbers<[2], [2], [1], [1], [0, 0, 0, 1, 1, 1], [0], [0]>} : vector<4x8x8xbf16>, vector<4x8x8xbf16>, vector<4x8x8xf32> -> vector<4x8x8xf32>
    "tpu.trace_stop"() : () -> ()
    %cst_98 = arith.constant 0.353553385 : f32
    %226 = vector.broadcast %cst_98 : f32 to vector<4x8x8xf32>
    %227 = arith.mulf %225, %226 : vector<4x8x8xf32>
    %cst_99 = arith.constant dense<0xFF800000> : vector<4x8xf32>
    %228 = vector.multi_reduction <maximumf>, %227, %cst_99 [2] : vector<4x8x8xf32> to vector<4x8xf32>
    %229 = vector.shape_cast %228 : vector<4x8xf32> to vector<4x8x1xf32>
    %230 = vector.broadcast %229 : vector<4x8x1xf32> to vector<4x8x8xf32>
    %231 = arith.subf %227, %230 : vector<4x8x8xf32>
    %232 = math.exp %231 : vector<4x8x8xf32>
    %cst_100 = arith.constant dense<0.000000e+00> : vector<4x8xf32>
    %233 = vector.multi_reduction <add>, %232, %cst_100 [2] : vector<4x8x8xf32> to vector<4x8xf32>
    %234 = vector.shape_cast %233 : vector<4x8xf32> to vector<4x8x1xf32>
    %235 = tpu.reciprocal %234 {approx = true} : vector<4x8x1xf32> -> vector<4x8x1xf32>
    %236 = vector.broadcast %235 : vector<4x8x1xf32> to vector<4x8x8xf32>
    %237 = arith.mulf %232, %236 : vector<4x8x8xf32>
    %238 = arith.truncf %237 : vector<4x8x8xf32> to vector<4x8x8xbf16>
    %239 = arith.truncf %222 : vector<4x8x8xf32> to vector<4x8x8xbf16>
    "tpu.trace_start"() <{level = 10 : i32, message = "hqk,hkd->hqd"}> : () -> ()
    %cst_101 = arith.constant dense<0.000000e+00> : vector<4x8x8xf32>
    %240 = tpu.matmul %238, %239, %cst_101 {dimension_numbers = #tpu.dot_dimension_numbers<[2], [1], [1], [2], [0, 0, 0, 1, 1, 2], [0], [0]>} : vector<4x8x8xbf16>, vector<4x8x8xbf16>, vector<4x8x8xf32> -> vector<4x8x8xf32>
    "tpu.trace_stop"() : () -> ()
    %241 = tpu.transpose %240, [1, 0, 2] : vector<4x8x8xf32> -> vector<8x4x8xf32>
    %242 = vector.shape_cast %241 : vector<8x4x8xf32> to vector<8x32xf32>
    %243 = arith.truncf %242 : vector<8x32xf32> to vector<8x32xbf16>
    %244 = arith.truncf %200 : vector<32x32xf32> to vector<32x32xbf16>
    %cst_102 = arith.constant dense<0.000000e+00> : vector<8x32xf32>
    %245 = tpu.matmul %243, %244, %cst_102 {dimension_numbers = #tpu.dot_dimension_numbers<[1], [0], [0], [1], [0, 0, 1, 1], [], []>} : vector<8x32xbf16>, vector<32x32xbf16>, vector<8x32xf32> -> vector<8x32xf32>
    %246 = vector.broadcast %201 : vector<1x32xf32> to vector<8x32xf32>
    %247 = arith.addf %245, %246 : vector<8x32xf32>
    %c0_103 = arith.constant 0 : index
    %c0_104 = arith.constant 0 : index
    %248 = vector.load %arg33[%c0_103, %c0_104] : memref<32x10xf32, #tpu.memory_space<vmem>>, vector<32x10xf32>
    %249 = arith.truncf %167 : vector<8x32xf32> to vector<8x32xbf16>
    %250 = arith.truncf %248 : vector<32x10xf32> to vector<32x10xbf16>
    %cst_105 = arith.constant dense<0.000000e+00> : vector<8x10xf32>
    %251 = tpu.matmul %249, %250, %cst_105 {dimension_numbers = #tpu.dot_dimension_numbers<[1], [0], [0], [1], [0, 0, 1, 1], [], []>} : vector<8x32xbf16>, vector<32x10xbf16>, vector<8x10xf32> -> vector<8x10xf32>
    %c0_106 = arith.constant 0 : index
    %c0_107 = arith.constant 0 : index
    %252 = vector.load %arg34[%c0_106, %c0_107] : memref<32x10xf32, #tpu.memory_space<vmem>>, vector<32x10xf32>
    %253 = arith.truncf %247 : vector<8x32xf32> to vector<8x32xbf16>
    %254 = arith.truncf %252 : vector<32x10xf32> to vector<32x10xbf16>
    %cst_108 = arith.constant dense<0.000000e+00> : vector<8x10xf32>
    %255 = tpu.matmul %253, %254, %cst_108 {dimension_numbers = #tpu.dot_dimension_numbers<[1], [0], [0], [1], [0, 0, 1, 1], [], []>} : vector<8x32xbf16>, vector<32x10xbf16>, vector<8x10xf32> -> vector<8x10xf32>
    %256 = arith.addf %251, %255 : vector<8x10xf32>
    %257 = arith.addf %256, %193 : vector<8x10xf32>
    %c0_109 = arith.constant 0 : index
    %c0_110 = arith.constant 0 : index
    %258 = vector.load %arg35[%c0_109, %c0_110] : memref<1x10xf32, #tpu.memory_space<vmem>>, vector<1x10xf32>
    %259 = vector.broadcast %258 : vector<1x10xf32> to vector<8x10xf32>
    %260 = arith.addf %257, %259 : vector<8x10xf32>
    %261 = arith.negf %260 : vector<8x10xf32>
    %262 = math.exp %261 : vector<8x10xf32>
    %cst_111 = arith.constant 1.000000e+00 : f32
    %263 = vector.broadcast %cst_111 : f32 to vector<8x10xf32>
    %264 = arith.addf %263, %262 : vector<8x10xf32>
    %265 = arith.divf %263, %264 : vector<8x10xf32>
    %c0_112 = arith.constant 0 : index
    %c0_113 = arith.constant 0 : index
    %c0_114 = arith.constant 0 : index
    %266 = vector.load %arg37[%c0_112, %c0_113, %c0_114] : memref<1x8x10xf32, #tpu.memory_space<vmem>>, vector<1x8x10xf32>
    %267 = vector.shape_cast %266 : vector<1x8x10xf32> to vector<8x10xf32>
    %268 = vector.shape_cast %265 : vector<8x10xf32> to vector<1x8x10xf32>
    tpu.vector_store %arg37[%c0_112, %c0_113, %c0_114], %268 {strides = array<i32>} : memref<1x8x10xf32, #tpu.memory_space<vmem>>, vector<1x8x10xf32>,
    return
  }
  func.func @transform_0(%arg0: i32, %arg1: memref<2xi32, #tpu.memory_space<smem>>, %arg2: memref<2xi32, #tpu.memory_space<smem>>) -> (i32, i32, i32) {
    %c0_i32 = arith.constant 0 : i32
    %c0_i32_0 = arith.constant 0 : i32
    %c0_i32_1 = arith.constant 0 : i32
    return %arg0, %c0_i32, %c0_i32_0 : i32, i32, i32
  }
  func.func @transform_1(%arg0: i32, %arg1: memref<2xi32, #tpu.memory_space<smem>>, %arg2: memref<2xi32, #tpu.memory_space<smem>>) -> (i32, i32, i32) {
    %c0_i32 = arith.constant 0 : i32
    %c0_i32_0 = arith.constant 0 : i32
    %c0_i32_1 = arith.constant 0 : i32
    return %arg0, %c0_i32, %c0_i32_0 : i32, i32, i32
  }
  func.func @transform_2(%arg0: i32, %arg1: memref<2xi32, #tpu.memory_space<smem>>, %arg2: memref<2xi32, #tpu.memory_space<smem>>) -> (i32, i32) {
    %c0_i32 = arith.constant 0 : i32
    %c0_i32_0 = arith.constant 0 : i32
    %c0_i32_1 = arith.constant 0 : i32
    return %c0_i32, %c0_i32_0 : i32, i32
  }
  func.func @transform_3(%arg0: i32, %arg1: memref<2xi32, #tpu.memory_space<smem>>, %arg2: memref<2xi32, #tpu.memory_space<smem>>) -> (i32, i32) {
    %c0_i32 = arith.constant 0 : i32
    %c0_i32_0 = arith.constant 0 : i32
    %c0_i32_1 = arith.constant 0 : i32
    return %c0_i32, %c0_i32_0 : i32, i32
  }
  func.func @transform_4(%arg0: i32, %arg1: memref<2xi32, #tpu.memory_space<smem>>, %arg2: memref<2xi32, #tpu.memory_space<smem>>) -> (i32, i32) {
    %c0_i32 = arith.constant 0 : i32
    %c0_i32_0 = arith.constant 0 : i32
    %c0_i32_1 = arith.constant 0 : i32
    return %c0_i32, %c0_i32_0 : i32, i32
  }
  func.func @transform_5(%arg0: i32, %arg1: memref<2xi32, #tpu.memory_space<smem>>, %arg2: memref<2xi32, #tpu.memory_space<smem>>) -> (i32, i32) {
    %c0_i32 = arith.constant 0 : i32
    %c0_i32_0 = arith.constant 0 : i32
    %c0_i32_1 = arith.constant 0 : i32
    return %c0_i32, %c0_i32_0 : i32, i32
  }
  func.func @transform_6(%arg0: i32, %arg1: memref<2xi32, #tpu.memory_space<smem>>, %arg2: memref<2xi32, #tpu.memory_space<smem>>) -> (i32, i32) {
    %c0_i32 = arith.constant 0 : i32
    %c0_i32_0 = arith.constant 0 : i32
    %c0_i32_1 = arith.constant 0 : i32
    return %c0_i32, %c0_i32_0 : i32, i32
  }
  func.func @transform_7(%arg0: i32, %arg1: memref<2xi32, #tpu.memory_space<smem>>, %arg2: memref<2xi32, #tpu.memory_space<smem>>) -> (i32, i32) {
    %c0_i32 = arith.constant 0 : i32
    %c0_i32_0 = arith.constant 0 : i32
    %c0_i32_1 = arith.constant 0 : i32
    return %c0_i32, %c0_i32_0 : i32, i32
  }
  func.func @transform_8(%arg0: i32, %arg1: memref<2xi32, #tpu.memory_space<smem>>, %arg2: memref<2xi32, #tpu.memory_space<smem>>) -> (i32, i32) {
    %c0_i32 = arith.constant 0 : i32
    %c0_i32_0 = arith.constant 0 : i32
    %c0_i32_1 = arith.constant 0 : i32
    return %c0_i32, %c0_i32_0 : i32, i32
  }
  func.func @transform_9(%arg0: i32, %arg1: memref<2xi32, #tpu.memory_space<smem>>, %arg2: memref<2xi32, #tpu.memory_space<smem>>) -> (i32, i32) {
    %c0_i32 = arith.constant 0 : i32
    %c0_i32_0 = arith.constant 0 : i32
    %c0_i32_1 = arith.constant 0 : i32
    return %c0_i32, %c0_i32_0 : i32, i32
  }
  func.func @transform_10(%arg0: i32, %arg1: memref<2xi32, #tpu.memory_space<smem>>, %arg2: memref<2xi32, #tpu.memory_space<smem>>) -> (i32, i32) {
    %c0_i32 = arith.constant 0 : i32
    %c0_i32_0 = arith.constant 0 : i32
    %c0_i32_1 = arith.constant 0 : i32
    return %c0_i32, %c0_i32_0 : i32, i32
  }
  func.func @transform_11(%arg0: i32, %arg1: memref<2xi32, #tpu.memory_space<smem>>, %arg2: memref<2xi32, #tpu.memory_space<smem>>) -> (i32, i32) {
    %c0_i32 = arith.constant 0 : i32
    %c0_i32_0 = arith.constant 0 : i32
    %c0_i32_1 = arith.constant 0 : i32
    return %c0_i32, %c0_i32_0 : i32, i32
  }
  func.func @transform_12(%arg0: i32, %arg1: memref<2xi32, #tpu.memory_space<smem>>, %arg2: memref<2xi32, #tpu.memory_space<smem>>) -> (i32, i32) {
    %c0_i32 = arith.constant 0 : i32
    %c0_i32_0 = arith.constant 0 : i32
    %c0_i32_1 = arith.constant 0 : i32
    return %c0_i32, %c0_i32_0 : i32, i32
  }
  func.func @transform_13(%arg0: i32, %arg1: memref<2xi32, #tpu.memory_space<smem>>, %arg2: memref<2xi32, #tpu.memory_space<smem>>) -> (i32, i32) {
    %c0_i32 = arith.constant 0 : i32
    %c0_i32_0 = arith.constant 0 : i32
    %c0_i32_1 = arith.constant 0 : i32
    return %c0_i32, %c0_i32_0 : i32, i32
  }
  func.func @transform_14(%arg0: i32, %arg1: memref<2xi32, #tpu.memory_space<smem>>, %arg2: memref<2xi32, #tpu.memory_space<smem>>) -> (i32, i32) {
    %c0_i32 = arith.constant 0 : i32
    %c0_i32_0 = arith.constant 0 : i32
    %c0_i32_1 = arith.constant 0 : i32
    return %c0_i32, %c0_i32_0 : i32, i32
  }
  func.func @transform_15(%arg0: i32, %arg1: memref<2xi32, #tpu.memory_space<smem>>, %arg2: memref<2xi32, #tpu.memory_space<smem>>) -> (i32, i32) {
    %c0_i32 = arith.constant 0 : i32
    %c0_i32_0 = arith.constant 0 : i32
    %c0_i32_1 = arith.constant 0 : i32
    return %c0_i32, %c0_i32_0 : i32, i32
  }
  func.func @transform_16(%arg0: i32, %arg1: memref<2xi32, #tpu.memory_space<smem>>, %arg2: memref<2xi32, #tpu.memory_space<smem>>) -> (i32, i32) {
    %c0_i32 = arith.constant 0 : i32
    %c0_i32_0 = arith.constant 0 : i32
    %c0_i32_1 = arith.constant 0 : i32
    return %c0_i32, %c0_i32_0 : i32, i32
  }
  func.func @transform_17(%arg0: i32, %arg1: memref<2xi32, #tpu.memory_space<smem>>, %arg2: memref<2xi32, #tpu.memory_space<smem>>) -> (i32, i32) {
    %c0_i32 = arith.constant 0 : i32
    %c0_i32_0 = arith.constant 0 : i32
    %c0_i32_1 = arith.constant 0 : i32
    return %c0_i32, %c0_i32_0 : i32, i32
  }
  func.func @transform_18(%arg0: i32, %arg1: memref<2xi32, #tpu.memory_space<smem>>, %arg2: memref<2xi32, #tpu.memory_space<smem>>) -> (i32, i32) {
    %c0_i32 = arith.constant 0 : i32
    %c0_i32_0 = arith.constant 0 : i32
    %c0_i32_1 = arith.constant 0 : i32
    return %c0_i32, %c0_i32_0 : i32, i32
  }
  func.func @transform_19(%arg0: i32, %arg1: memref<2xi32, #tpu.memory_space<smem>>, %arg2: memref<2xi32, #tpu.memory_space<smem>>) -> (i32, i32) {
    %c0_i32 = arith.constant 0 : i32
    %c0_i32_0 = arith.constant 0 : i32
    %c0_i32_1 = arith.constant 0 : i32
    return %c0_i32, %c0_i32_0 : i32, i32
  }
  func.func @transform_20(%arg0: i32, %arg1: memref<2xi32, #tpu.memory_space<smem>>, %arg2: memref<2xi32, #tpu.memory_space<smem>>) -> (i32, i32) {
    %c0_i32 = arith.constant 0 : i32
    %c0_i32_0 = arith.constant 0 : i32
    %c0_i32_1 = arith.constant 0 : i32
    return %c0_i32, %c0_i32_0 : i32, i32
  }
  func.func @transform_21(%arg0: i32, %arg1: memref<2xi32, #tpu.memory_space<smem>>, %arg2: memref<2xi32, #tpu.memory_space<smem>>) -> (i32, i32) {
    %c0_i32 = arith.constant 0 : i32
    %c0_i32_0 = arith.constant 0 : i32
    %c0_i32_1 = arith.constant 0 : i32
    return %c0_i32, %c0_i32_0 : i32, i32
  }
  func.func @transform_22(%arg0: i32, %arg1: memref<2xi32, #tpu.memory_space<smem>>, %arg2: memref<2xi32, #tpu.memory_space<smem>>) -> (i32, i32) {
    %c0_i32 = arith.constant 0 : i32
    %c0_i32_0 = arith.constant 0 : i32
    %c0_i32_1 = arith.constant 0 : i32
    return %c0_i32, %c0_i32_0 : i32, i32
  }
  func.func @transform_23(%arg0: i32, %arg1: memref<2xi32, #tpu.memory_space<smem>>, %arg2: memref<2xi32, #tpu.memory_space<smem>>) -> (i32, i32) {
    %c0_i32 = arith.constant 0 : i32
    %c0_i32_0 = arith.constant 0 : i32
    %c0_i32_1 = arith.constant 0 : i32
    return %c0_i32, %c0_i32_0 : i32, i32
  }
  func.func @transform_24(%arg0: i32, %arg1: memref<2xi32, #tpu.memory_space<smem>>, %arg2: memref<2xi32, #tpu.memory_space<smem>>) -> (i32, i32) {
    %c0_i32 = arith.constant 0 : i32
    %c0_i32_0 = arith.constant 0 : i32
    %c0_i32_1 = arith.constant 0 : i32
    return %c0_i32, %c0_i32_0 : i32, i32
  }
  func.func @transform_25(%arg0: i32, %arg1: memref<2xi32, #tpu.memory_space<smem>>, %arg2: memref<2xi32, #tpu.memory_space<smem>>) -> (i32, i32) {
    %c0_i32 = arith.constant 0 : i32
    %c0_i32_0 = arith.constant 0 : i32
    %c0_i32_1 = arith.constant 0 : i32
    return %c0_i32, %c0_i32_0 : i32, i32
  }
  func.func @transform_26(%arg0: i32, %arg1: memref<2xi32, #tpu.memory_space<smem>>, %arg2: memref<2xi32, #tpu.memory_space<smem>>) -> (i32, i32) {
    %c0_i32 = arith.constant 0 : i32
    %c0_i32_0 = arith.constant 0 : i32
    %c0_i32_1 = arith.constant 0 : i32
    return %c0_i32, %c0_i32_0 : i32, i32
  }
  func.func @transform_27(%arg0: i32, %arg1: memref<2xi32, #tpu.memory_space<smem>>, %arg2: memref<2xi32, #tpu.memory_space<smem>>) -> (i32, i32) {
    %c0_i32 = arith.constant 0 : i32
    %c0_i32_0 = arith.constant 0 : i32
    %c0_i32_1 = arith.constant 0 : i32
    return %c0_i32, %c0_i32_0 : i32, i32
  }
  func.func @transform_28(%arg0: i32, %arg1: memref<2xi32, #tpu.memory_space<smem>>, %arg2: memref<2xi32, #tpu.memory_space<smem>>) -> (i32, i32) {
    %c0_i32 = arith.constant 0 : i32
    %c0_i32_0 = arith.constant 0 : i32
    %c0_i32_1 = arith.constant 0 : i32
    return %c0_i32, %c0_i32_0 : i32, i32
  }
  func.func @transform_29(%arg0: i32, %arg1: memref<2xi32, #tpu.memory_space<smem>>, %arg2: memref<2xi32, #tpu.memory_space<smem>>) -> (i32, i32) {
    %c0_i32 = arith.constant 0 : i32
    %c0_i32_0 = arith.constant 0 : i32
    %c0_i32_1 = arith.constant 0 : i32
    return %c0_i32, %c0_i32_0 : i32, i32
  }
  func.func @transform_30(%arg0: i32, %arg1: memref<2xi32, #tpu.memory_space<smem>>, %arg2: memref<2xi32, #tpu.memory_space<smem>>) -> (i32, i32) {
    %c0_i32 = arith.constant 0 : i32
    %c0_i32_0 = arith.constant 0 : i32
    %c0_i32_1 = arith.constant 0 : i32
    return %c0_i32, %c0_i32_0 : i32, i32
  }
  func.func @transform_31(%arg0: i32, %arg1: memref<2xi32, #tpu.memory_space<smem>>, %arg2: memref<2xi32, #tpu.memory_space<smem>>) -> (i32, i32) {
    %c0_i32 = arith.constant 0 : i32
    %c0_i32_0 = arith.constant 0 : i32
    %c0_i32_1 = arith.constant 0 : i32
    return %c0_i32, %c0_i32_0 : i32, i32
  }
  func.func @transform_32(%arg0: i32, %arg1: memref<2xi32, #tpu.memory_space<smem>>, %arg2: memref<2xi32, #tpu.memory_space<smem>>) -> (i32, i32) {
    %c0_i32 = arith.constant 0 : i32
    %c0_i32_0 = arith.constant 0 : i32
    %c0_i32_1 = arith.constant 0 : i32
    return %c0_i32, %c0_i32_0 : i32, i32
  }
  func.func @transform_33(%arg0: i32, %arg1: memref<2xi32, #tpu.memory_space<smem>>, %arg2: memref<2xi32, #tpu.memory_space<smem>>) -> (i32, i32, i32) {
    %c0_i32 = arith.constant 0 : i32
    %c0_i32_0 = arith.constant 0 : i32
    %c0_i32_1 = arith.constant 0 : i32
    return %arg0, %c0_i32, %c0_i32_0 : i32, i32, i32
  }
  func.func @transform_34(%arg0: i32, %arg1: memref<2xi32, #tpu.memory_space<smem>>, %arg2: memref<2xi32, #tpu.memory_space<smem>>) -> (i32, i32, i32) {
    %c0_i32 = arith.constant 0 : i32
    %c0_i32_0 = arith.constant 0 : i32
    %c0_i32_1 = arith.constant 0 : i32
    return %arg0, %c0_i32, %c0_i32_0 : i32, i32, i32
  }
}

</mosaic_0001>

<llo_original>
// kernel: tpu_custom_call.1
$region0: #{tpu_custom_call.1}
  #allocation0 [shape = 'u32[]', space=smem, size = 0x4, offset = 0x4, fixed_abs, tag = 'smem constant byte address 0x4 - core index']
  #allocation1 [shape = 'u32[144,128]{1,0:T(1,128)}', space=vmem, size = 0x12000, scoped, tag = 'internal scratch']
  #allocation2 [shape = 's32[1]{0}', space=sflag, size = 0x4, scoped, tag = 'scoped memory for tpu_custom_call.1']
  #allocation3 [shape = 'u8[512]{0}', space=smem, size = 0x200, scoped, tag = 'prefetched SMEM operand 0']
  #allocation4 [shape = 'u8[512]{0}', space=smem, size = 0x200, scoped, tag = 'prefetched SMEM operand 1']
  %s0 = inlined_call_operand.smem [shape: u32[37], index: -1, kind: input, shape index: {}]
  %s1 = sld [smem:[%s0]]
  %s2 = scalar_lea.smem %s0, 1
  %s3 = sld [smem:[%s2]]
  %s4 = scalar_lea.smem %s0, 2
  %s5 = sld [smem:[%s4]]
  %s6 = scalar_lea.smem %s0, 3
  %s7 = sld [smem:[%s6]]
  %s8 = scalar_lea.smem %s0, 4
  %s9 = sld [smem:[%s8]]
  %s10 = scalar_lea.smem %s0, 5
  %s11 = sld [smem:[%s10]]
  %s12 = scalar_lea.smem %s0, 6
  %s13 = sld [smem:[%s12]]
  %s14 = scalar_lea.smem %s0, 7
  %s15 = sld [smem:[%s14]]
  %s16 = scalar_lea.smem %s0, 8
  %s17 = sld [smem:[%s16]]
  %s18 = scalar_lea.smem %s0, 9
  %s19 = sld [smem:[%s18]]
  %s20 = scalar_lea.smem %s0, 10
  %s21 = sld [smem:[%s20]]
  %s22 = scalar_lea.smem %s0, 11
  %s23 = sld [smem:[%s22]]
  %s24 = scalar_lea.smem %s0, 12
  %s25 = sld [smem:[%s24]]
  %s26 = scalar_lea.smem %s0, 13
  %s27 = sld [smem:[%s26]]
  %s28 = scalar_lea.smem %s0, 14
  %s29 = sld [smem:[%s28]]
  %s30 = scalar_lea.smem %s0, 15
  %s31 = sld [smem:[%s30]]
  %s32 = scalar_lea.smem %s0, 16
  %s33 = sld [smem:[%s32]]
  %s34 = scalar_lea.smem %s0, 17
  %s35 = sld [smem:[%s34]]
  %s36 = scalar_lea.smem %s0, 18
  %s37 = sld [smem:[%s36]]
  %s38 = scalar_lea.smem %s0, 19
  %s39 = sld [smem:[%s38]]
  %s40 = scalar_lea.smem %s0, 20
  %s41 = sld [smem:[%s40]]
  %s42 = scalar_lea.smem %s0, 21
  %s43 = sld [smem:[%s42]]
  %s44 = scalar_lea.smem %s0, 22
  %s45 = sld [smem:[%s44]]
  %s46 = scalar_lea.smem %s0, 23
  %s47 = sld [smem:[%s46]]
  %s48 = scalar_lea.smem %s0, 24
  %s49 = sld [smem:[%s48]]
  %s50 = scalar_lea.smem %s0, 25
  %s51 = sld [smem:[%s50]]
  %s52 = scalar_lea.smem %s0, 26
  %s53 = sld [smem:[%s52]]
  %s54 = scalar_lea.smem %s0, 27
  %s55 = sld [smem:[%s54]]
  %s56 = scalar_lea.smem %s0, 28
  %s57 = sld [smem:[%s56]]
  %s58 = scalar_lea.smem %s0, 29
  %s59 = sld [smem:[%s58]]
  %s60 = scalar_lea.smem %s0, 30
  %s61 = sld [smem:[%s60]]
  %s62 = scalar_lea.smem %s0, 31
  %s63 = sld [smem:[%s62]]
  %s64 = scalar_lea.smem %s0, 32
  %s65 = sld [smem:[%s64]]
  %s66 = scalar_lea.smem %s0, 33
  %s67 = sld [smem:[%s66]]
  %s68 = scalar_lea.smem %s0, 34
  %s69 = sld [smem:[%s68]]
  %s70 = scalar_lea.smem %s0, 35
  %s71 = sld [smem:[%s70]]
  %s72 = scalar_lea.smem %s0, 36
  %s73 = sld [smem:[%s72]]
  %74 = xla_tuple %s71, %s73
  %s75 = sld [smem:[#allocation0]]
  $region241: #{tpu_custom_call.1} parent=0
    _
  %s77 = ssub.s32 1, %s75
  %s78 = scalar_select 0, %s77, %s75
  %80 = dma.hbm_to_smem %s1, 16, [#allocation3], [#allocation2]
  %82 = dma.hbm_to_smem %s3, 16, [#allocation4], [#allocation2]
  %83 = dma.done [#allocation2], 32
  %84 = sfence
  $region1: #{tpu_custom_call.1} parent=0
    #allocation5 [shape = 'u8[8192]{0}', space=vmem, size = 0x2000, scoped, tag = 'input window, operand 2']
    #allocation6 [shape = 's32[2]{0}', space=sflag, size = 0x8, scoped, tag = 'scoped memory for tpu_custom_call.1']
    #allocation7 [shape = 's32[2]{0}', space=sflag, size = 0x8, scoped, tag = 'scoped memory for tpu_custom_call.1']
    #allocation8 [shape = 'u8[1024]{0}', space=vmem, size = 0x400, scoped, tag = 'input window, operand 3']
    #allocation9 [shape = 's32[2]{0}', space=sflag, size = 0x8, scoped, tag = 'scoped memory for tpu_custom_call.1']
    #allocation10 [shape = 'u8[512]{0}', space=vmem, size = 0x400, scoped, tag = 'input window, operand 5, single buffered']
    #allocation11 [shape = 'u8[512]{0}', space=vmem, size = 0x400, scoped, tag = 'input window, operand 7, single buffered']
    #allocation12 [shape = 's32[1]{0}', space=sflag, size = 0x4, scoped, tag = 'scoped memory for tpu_custom_call.1']
    #allocation13 [shape = 'u8[512]{0}', space=vmem, size = 0x400, scoped, tag = 'input window, operand 9, single buffered']
    #allocation14 [shape = 'u8[512]{0}', space=vmem, size = 0x400, scoped, tag = 'input window, operand 11, single buffered']
    #allocation15 [shape = 's32[1]{0}', space=sflag, size = 0x4, scoped, tag = 'scoped memory for tpu_custom_call.1']
    #allocation16 [shape = 'u8[512]{0}', space=vmem, size = 0x400, scoped, tag = 'input window, operand 13, single buffered']
    #allocation17 [shape = 'u8[512]{0}', space=vmem, size = 0x400, scoped, tag = 'input window, operand 18, single buffered']
    #allocation18 [shape = 's32[1]{0}', space=sflag, size = 0x4, scoped, tag = 'scoped memory for tpu_custom_call.1']
    #allocation19 [shape = 'u8[512]{0}', space=vmem, size = 0x400, scoped, tag = 'input window, operand 20, single buffered']
    #allocation20 [shape = 'u8[512]{0}', space=vmem, size = 0x400, scoped, tag = 'input window, operand 22, single buffered']
    #allocation21 [shape = 's32[1]{0}', space=sflag, size = 0x4, scoped, tag = 'scoped memory for tpu_custom_call.1']
    #allocation22 [shape = 'u8[512]{0}', space=vmem, size = 0x400, scoped, tag = 'input window, operand 25, single buffered']
    #allocation23 [shape = 'u8[16384]{0}', space=vmem, size = 0x4000, scoped, tag = 'input window, operand 26, single buffered']
    #allocation24 [shape = 's32[1]{0}', space=sflag, size = 0x4, scoped, tag = 'scoped memory for tpu_custom_call.1']
    #allocation25 [shape = 'u8[512]{0}', space=vmem, size = 0x400, scoped, tag = 'input window, operand 27, single buffered']
    #allocation26 [shape = 'u8[16384]{0}', space=vmem, size = 0x4000, scoped, tag = 'input window, operand 28, single buffered']
    #allocation27 [shape = 's32[1]{0}', space=sflag, size = 0x4, scoped, tag = 'scoped memory for tpu_custom_call.1']
    #allocation28 [shape = 'u8[512]{0}', space=vmem, size = 0x400, scoped, tag = 'input window, operand 29, single buffered']
    #allocation29 [shape = 'u8[16384]{0}', space=vmem, size = 0x4000, scoped, tag = 'input window, operand 30, single buffered']
    #allocation30 [shape = 's32[1]{0}', space=sflag, size = 0x4, scoped, tag = 'scoped memory for tpu_custom_call.1']
    #allocation31 [shape = 'u8[512]{0}', space=vmem, size = 0x400, scoped, tag = 'input window, operand 31, single buffered']
    #allocation32 [shape = 'u8[8192]{0}', space=vmem, size = 0x2000, scoped, tag = 'output window, operand 1']
    %85 = vsyncpa [#allocation6], 0
    %s86 = scalar_lea.sflag [#allocation6], 1
    %87 = vsyncpa %s86, 0
    %88 = vsyncpa [#allocation9], 0
    %s89 = scalar_lea.sflag [#allocation9], 1
    %90 = vsyncpa %s89, 0
    %91 = vsyncpa [#allocation12], 0
    %92 = vsyncpa [#allocation15], 0
    %93 = vsyncpa [#allocation18], 0
    %94 = vsyncpa [#allocation21], 0
    %95 = vsyncpa [#allocation24], 0
    %96 = vsyncpa [#allocation27], 0
    %97 = vsyncpa [#allocation30], 0
    %98 = vsyncpa [#allocation7], 0
    %s99 = scalar_lea.sflag [#allocation7], 1
    %100 = vsyncpa %s99, 0
    loop: start=0, step=1, limit=4
    $region2: #{tpu_custom_call.1} parent=1 // loop_pre_header
      _
    $region3: #{tpu_custom_call.1} parent=1 // loop_header
      %s102 = sphi 0, %s106
      %p103 = scmp.ge.s32.totalorder %s102, 4
      %s112 = sphi 0, %s114
      %s115 = sphi 0, %s112
      %s116 = sphi 0, %s115
      %s132 = sphi 0, %s116
      %s138 = sphi 0, %s140
      %s141 = sphi 0, %s138
      %s142 = sphi 0, %s141
      %s158 = sphi 0, %s142
      %s162 = sphi 0, %s162
      %s164 = sphi 0, %s162
      %s165 = sphi 0, %s164
      %s179 = sphi 0, %s165
      %s183 = sphi 0, %s183
      %s185 = sphi 0, %s183
      %s186 = sphi 0, %s185
      %s200 = sphi 0, %s186
      %s204 = sphi 0, %s204
      %s206 = sphi 0, %s204
      %s207 = sphi 0, %s206
      %s221 = sphi 0, %s207
      %s225 = sphi 0, %s225
      %s227 = sphi 0, %s225
      %s228 = sphi 0, %s227
      %s242 = sphi 0, %s228
      %s246 = sphi 0, %s246
      %s248 = sphi 0, %s246
      %s249 = sphi 0, %s248
      %s263 = sphi 0, %s249
      %s267 = sphi 0, %s267
      %s269 = sphi 0, %s267
      %s270 = sphi 0, %s269
      %s284 = sphi 0, %s270
      %s288 = sphi 0, %s288
      %s290 = sphi 0, %s288
      %s291 = sphi 0, %s290
      %s305 = sphi 0, %s291
      %s309 = sphi 0, %s309
      %s311 = sphi 0, %s309
      %s312 = sphi 0, %s311
      %s326 = sphi 0, %s312
      %s330 = sphi 0, %s330
      %s332 = sphi 0, %s330
      %s333 = sphi 0, %s332
      %s347 = sphi 0, %s333
      %s351 = sphi 0, %s351
      %s353 = sphi 0, %s351
      %s354 = sphi 0, %s353
      %s368 = sphi 0, %s354
      %s372 = sphi 0, %s372
      %s374 = sphi 0, %s372
      %s375 = sphi 0, %s374
      %s389 = sphi 0, %s375
      %s393 = sphi 0, %s393
      %s395 = sphi 0, %s393
      %s396 = sphi 0, %s395
      %s410 = sphi 0, %s396
      %s414 = sphi 0, %s414
      %s416 = sphi 0, %s414
      %s417 = sphi 0, %s416
      %s431 = sphi 0, %s417
      %s435 = sphi 0, %s435
      %s437 = sphi 0, %s435
      %s438 = sphi 0, %s437
      %s452 = sphi 0, %s438
      %s456 = sphi 0, %s456
      %s458 = sphi 0, %s456
      %s459 = sphi 0, %s458
      %s473 = sphi 0, %s459
      %s477 = sphi 0, %s477
      %s479 = sphi 0, %s477
      %s480 = sphi 0, %s479
      %s494 = sphi 0, %s480
      %s498 = sphi 0, %s498
      %s500 = sphi 0, %s498
      %s501 = sphi 0, %s500
      %s515 = sphi 0, %s501
      %s519 = sphi 0, %s519
      %s521 = sphi 0, %s519
      %s522 = sphi 0, %s521
      %s536 = sphi 0, %s522
      %s540 = sphi 0, %s540
      %s542 = sphi 0, %s540
      %s543 = sphi 0, %s542
      %s557 = sphi 0, %s543
      %s561 = sphi 0, %s561
      %s563 = sphi 0, %s561
      %s564 = sphi 0, %s563
      %s578 = sphi 0, %s564
      %s582 = sphi 0, %s582
      %s584 = sphi 0, %s582
      %s585 = sphi 0, %s584
      %s599 = sphi 0, %s585
      %s603 = sphi 0, %s603
      %s605 = sphi 0, %s603
      %s606 = sphi 0, %s605
      %s620 = sphi 0, %s606
      %s624 = sphi 0, %s624
      %s626 = sphi 0, %s624
      %s627 = sphi 0, %s626
      %s641 = sphi 0, %s627
      %s645 = sphi 0, %s645
      %s647 = sphi 0, %s645
      %s648 = sphi 0, %s647
      %s662 = sphi 0, %s648
      %s666 = sphi 0, %s666
      %s668 = sphi 0, %s666
      %s669 = sphi 0, %s668
      %s683 = sphi 0, %s669
      %s687 = sphi 0, %s687
      %s689 = sphi 0, %s687
      %s690 = sphi 0, %s689
      %s704 = sphi 0, %s690
      %s708 = sphi 0, %s708
      %s710 = sphi 0, %s708
      %s711 = sphi 0, %s710
      %s725 = sphi 0, %s711
      %s729 = sphi 0, %s729
      %s731 = sphi 0, %s729
      %s732 = sphi 0, %s731
      %s746 = sphi 0, %s732
      %s750 = sphi 0, %s750
      %s752 = sphi 0, %s750
      %s753 = sphi 0, %s752
      %s767 = sphi 0, %s753
      %s771 = sphi 0, %s771
      %s773 = sphi 0, %s771
      %s774 = sphi 0, %s773
      %s788 = sphi 0, %s774
      %s792 = sphi 0, %s792
      %s794 = sphi 0, %s792
      %s795 = sphi 0, %s794
      %s809 = sphi 0, %s795
      %s815 = sphi 0, %s817
      %s818 = sphi 0, %s815
      %s819 = sphi 0, %s818
      %s835 = sphi 0, %s819
      %s841 = sphi 0, %s843
      %s844 = sphi 0, %s841
      %s845 = sphi 0, %s844
      %s861 = sphi 0, %s845
    $region4: #{tpu_custom_call.1} parent=1 // loop_header_branch
      %105 = sbr.rel (%p103) target = $region8
    $region5: #{tpu_custom_call.1} parent=1 // loop_body
      %s107 = ssub.s32 %s102, 1
      %s108 = ssub.s32 %s102, 2
      %s109 = sadd.s32 %s102, 1
      %s110 = ssub.s32 %s102, %s109
      %p111 = scmp.eq.s32.totalorder %s110, 0
      %s113 = sadd.s32 %s112, 1
      %s114 = scalar_select %p111, %s112, %s113
      %p117 = pneg %p111
      %p118 = scmp.eq.s32.totalorder %s102, 1
      %p119 = por %p117, %p118
      %p120 = scmp.ne.s32.totalorder %s112, %s115
      %p121 = scmp.eq.s32.totalorder %s102, 0
      %p122 = por %p120, %p121
      %p123 = scmp.ne.s32.totalorder %s112, %s115
      %p124 = scmp.eq.s32.totalorder %s107, 1
      %p125 = por %p123, %p124
      %p126 = scmp.ne.s32.totalorder %s115, %s116
      %p127 = scmp.eq.s32.totalorder %s107, 0
      %p128 = por %p126, %p127
      %p129 = scmp.ne.s32.totalorder %s115, %s116
      %p130 = scmp.eq.s32.totalorder %s108, 1
      %p131 = por %p129, %p130
      %p133 = scmp.ne.s32.totalorder %s116, %s132
      %p134 = scmp.eq.s32.totalorder %s108, 0
      %p135 = por %p133, %p134
      %s136 = ssub.s32 %s102, %s109
      %p137 = scmp.eq.s32.totalorder %s136, 0
      %s139 = sadd.s32 %s138, 1
      %s140 = scalar_select %p137, %s138, %s139
      %p143 = pneg %p137
      %p144 = scmp.eq.s32.totalorder %s102, 1
      %p145 = por %p143, %p144
      %p146 = scmp.ne.s32.totalorder %s138, %s141
      %p147 = scmp.eq.s32.totalorder %s102, 0
      %p148 = por %p146, %p147
      %p149 = scmp.ne.s32.totalorder %s138, %s141
      %p150 = scmp.eq.s32.totalorder %s107, 1
      %p151 = por %p149, %p150
      %p152 = scmp.ne.s32.totalorder %s141, %s142
      %p153 = scmp.eq.s32.totalorder %s107, 0
      %p154 = por %p152, %p153
      %p155 = scmp.ne.s32.totalorder %s141, %s142
      %p156 = scmp.eq.s32.totalorder %s108, 1
      %p157 = por %p155, %p156
      %p159 = scmp.ne.s32.totalorder %s142, %s158
      %p160 = scmp.eq.s32.totalorder %s108, 0
      %p161 = por %p159, %p160
      %s163 = sadd.s32 %s162, 1
      %p166 = scmp.eq.s32.totalorder %s102, 1
      %p167 = scmp.ne.s32.totalorder %s162, %s164
      %p168 = scmp.eq.s32.totalorder %s102, 0
      %p169 = por %p167, %p168
      %p170 = scmp.ne.s32.totalorder %s162, %s164
      %p171 = scmp.eq.s32.totalorder %s107, 1
      %p172 = por %p170, %p171
      %p173 = scmp.ne.s32.totalorder %s164, %s165
      %p174 = scmp.eq.s32.totalorder %s107, 0
      %p175 = por %p173, %p174
      %p176 = scmp.ne.s32.totalorder %s164, %s165
      %p177 = scmp.eq.s32.totalorder %s108, 1
      %p178 = por %p176, %p177
      %p180 = scmp.ne.s32.totalorder %s165, %s179
      %p181 = scmp.eq.s32.totalorder %s108, 0
      %p182 = por %p180, %p181
      %s184 = sadd.s32 %s183, 1
      %p187 = scmp.eq.s32.totalorder %s102, 1
      %p188 = scmp.ne.s32.totalorder %s183, %s185
      %p189 = scmp.eq.s32.totalorder %s102, 0
      %p190 = por %p188, %p189
      %p191 = scmp.ne.s32.totalorder %s183, %s185
      %p192 = scmp.eq.s32.totalorder %s107, 1
      %p193 = por %p191, %p192
      %p194 = scmp.ne.s32.totalorder %s185, %s186
      %p195 = scmp.eq.s32.totalorder %s107, 0
      %p196 = por %p194, %p195
      %p197 = scmp.ne.s32.totalorder %s185, %s186
      %p198 = scmp.eq.s32.totalorder %s108, 1
      %p199 = por %p197, %p198
      %p201 = scmp.ne.s32.totalorder %s186, %s200
      %p202 = scmp.eq.s32.totalorder %s108, 0
      %p203 = por %p201, %p202
      %s205 = sadd.s32 %s204, 1
      %p208 = scmp.eq.s32.totalorder %s102, 1
      %p209 = scmp.ne.s32.totalorder %s204, %s206
      %p210 = scmp.eq.s32.totalorder %s102, 0
      %p211 = por %p209, %p210
      %p212 = scmp.ne.s32.totalorder %s204, %s206
      %p213 = scmp.eq.s32.totalorder %s107, 1
      %p214 = por %p212, %p213
      %p215 = scmp.ne.s32.totalorder %s206, %s207
      %p216 = scmp.eq.s32.totalorder %s107, 0
      %p217 = por %p215, %p216
      %p218 = scmp.ne.s32.totalorder %s206, %s207
      %p219 = scmp.eq.s32.totalorder %s108, 1
      %p220 = por %p218, %p219
      %p222 = scmp.ne.s32.totalorder %s207, %s221
      %p223 = scmp.eq.s32.totalorder %s108, 0
      %p224 = por %p222, %p223
      %s226 = sadd.s32 %s225, 1
      %p229 = scmp.eq.s32.totalorder %s102, 1
      %p230 = scmp.ne.s32.totalorder %s225, %s227
      %p231 = scmp.eq.s32.totalorder %s102, 0
      %p232 = por %p230, %p231
      %p233 = scmp.ne.s32.totalorder %s225, %s227
      %p234 = scmp.eq.s32.totalorder %s107, 1
      %p235 = por %p233, %p234
      %p236 = scmp.ne.s32.totalorder %s227, %s228
      %p237 = scmp.eq.s32.totalorder %s107, 0
      %p238 = por %p236, %p237
      %p239 = scmp.ne.s32.totalorder %s227, %s228
      %p240 = scmp.eq.s32.totalorder %s108, 1
      %p241 = por %p239, %p240
      %p243 = scmp.ne.s32.totalorder %s228, %s242
      %p244 = scmp.eq.s32.totalorder %s108, 0
      %p245 = por %p243, %p244
      %s247 = sadd.s32 %s246, 1
      %p250 = scmp.eq.s32.totalorder %s102, 1
      %p251 = scmp.ne.s32.totalorder %s246, %s248
      %p252 = scmp.eq.s32.totalorder %s102, 0
      %p253 = por %p251, %p252
      %p254 = scmp.ne.s32.totalorder %s246, %s248
      %p255 = scmp.eq.s32.totalorder %s107, 1
      %p256 = por %p254, %p255
      %p257 = scmp.ne.s32.totalorder %s248, %s249
      %p258 = scmp.eq.s32.totalorder %s107, 0
      %p259 = por %p257, %p258
      %p260 = scmp.ne.s32.totalorder %s248, %s249
      %p261 = scmp.eq.s32.totalorder %s108, 1
      %p262 = por %p260, %p261
      %p264 = scmp.ne.s32.totalorder %s249, %s263
      %p265 = scmp.eq.s32.totalorder %s108, 0
      %p266 = por %p264, %p265
      %s268 = sadd.s32 %s267, 1
      %p271 = scmp.eq.s32.totalorder %s102, 1
      %p272 = scmp.ne.s32.totalorder %s267, %s269
      %p273 = scmp.eq.s32.totalorder %s102, 0
      %p274 = por %p272, %p273
      %p275 = scmp.ne.s32.totalorder %s267, %s269
      %p276 = scmp.eq.s32.totalorder %s107, 1
      %p277 = por %p275, %p276
      %p278 = scmp.ne.s32.totalorder %s269, %s270
      %p279 = scmp.eq.s32.totalorder %s107, 0
      %p280 = por %p278, %p279
      %p281 = scmp.ne.s32.totalorder %s269, %s270
      %p282 = scmp.eq.s32.totalorder %s108, 1
      %p283 = por %p281, %p282
      %p285 = scmp.ne.s32.totalorder %s270, %s284
      %p286 = scmp.eq.s32.totalorder %s108, 0
      %p287 = por %p285, %p286
      %s289 = sadd.s32 %s288, 1
      %p292 = scmp.eq.s32.totalorder %s102, 1
      %p293 = scmp.ne.s32.totalorder %s288, %s290
      %p294 = scmp.eq.s32.totalorder %s102, 0
      %p295 = por %p293, %p294
      %p296 = scmp.ne.s32.totalorder %s288, %s290
      %p297 = scmp.eq.s32.totalorder %s107, 1
      %p298 = por %p296, %p297
      %p299 = scmp.ne.s32.totalorder %s290, %s291
      %p300 = scmp.eq.s32.totalorder %s107, 0
      %p301 = por %p299, %p300
      %p302 = scmp.ne.s32.totalorder %s290, %s291
      %p303 = scmp.eq.s32.totalorder %s108, 1
      %p304 = por %p302, %p303
      %p306 = scmp.ne.s32.totalorder %s291, %s305
      %p307 = scmp.eq.s32.totalorder %s108, 0
      %p308 = por %p306, %p307
      %s310 = sadd.s32 %s309, 1
      %p313 = scmp.eq.s32.totalorder %s102, 1
      %p314 = scmp.ne.s32.totalorder %s309, %s311
      %p315 = scmp.eq.s32.totalorder %s102, 0
      %p316 = por %p314, %p315
      %p317 = scmp.ne.s32.totalorder %s309, %s311
      %p318 = scmp.eq.s32.totalorder %s107, 1
      %p319 = por %p317, %p318
      %p320 = scmp.ne.s32.totalorder %s311, %s312
      %p321 = scmp.eq.s32.totalorder %s107, 0
      %p322 = por %p320, %p321
      %p323 = scmp.ne.s32.totalorder %s311, %s312
      %p324 = scmp.eq.s32.totalorder %s108, 1
      %p325 = por %p323, %p324
      %p327 = scmp.ne.s32.totalorder %s312, %s326
      %p328 = scmp.eq.s32.totalorder %s108, 0
      %p329 = por %p327, %p328
      %s331 = sadd.s32 %s330, 1
      %p334 = scmp.eq.s32.totalorder %s102, 1
      %p335 = scmp.ne.s32.totalorder %s330, %s332
      %p336 = scmp.eq.s32.totalorder %s102, 0
      %p337 = por %p335, %p336
      %p338 = scmp.ne.s32.totalorder %s330, %s332
      %p339 = scmp.eq.s32.totalorder %s107, 1
      %p340 = por %p338, %p339
      %p341 = scmp.ne.s32.totalorder %s332, %s333
      %p342 = scmp.eq.s32.totalorder %s107, 0
      %p343 = por %p341, %p342
      %p344 = scmp.ne.s32.totalorder %s332, %s333
      %p345 = scmp.eq.s32.totalorder %s108, 1
      %p346 = por %p344, %p345
      %p348 = scmp.ne.s32.totalorder %s333, %s347
      %p349 = scmp.eq.s32.totalorder %s108, 0
      %p350 = por %p348, %p349
      %s352 = sadd.s32 %s351, 1
      %p355 = scmp.eq.s32.totalorder %s102, 1
      %p356 = scmp.ne.s32.totalorder %s351, %s353
      %p357 = scmp.eq.s32.totalorder %s102, 0
      %p358 = por %p356, %p357
      %p359 = scmp.ne.s32.totalorder %s351, %s353
      %p360 = scmp.eq.s32.totalorder %s107, 1
      %p361 = por %p359, %p360
      %p362 = scmp.ne.s32.totalorder %s353, %s354
      %p363 = scmp.eq.s32.totalorder %s107, 0
      %p364 = por %p362, %p363
      %p365 = scmp.ne.s32.totalorder %s353, %s354
      %p366 = scmp.eq.s32.totalorder %s108, 1
      %p367 = por %p365, %p366
      %p369 = scmp.ne.s32.totalorder %s354, %s368
      %p370 = scmp.eq.s32.totalorder %s108, 0
      %p371 = por %p369, %p370
      %s373 = sadd.s32 %s372, 1
      %p376 = scmp.eq.s32.totalorder %s102, 1
      %p377 = scmp.ne.s32.totalorder %s372, %s374
      %p378 = scmp.eq.s32.totalorder %s102, 0
      %p379 = por %p377, %p378
      %p380 = scmp.ne.s32.totalorder %s372, %s374
      %p381 = scmp.eq.s32.totalorder %s107, 1
      %p382 = por %p380, %p381
      %p383 = scmp.ne.s32.totalorder %s374, %s375
      %p384 = scmp.eq.s32.totalorder %s107, 0
      %p385 = por %p383, %p384
      %p386 = scmp.ne.s32.totalorder %s374, %s375
      %p387 = scmp.eq.s32.totalorder %s108, 1
      %p388 = por %p386, %p387
      %p390 = scmp.ne.s32.totalorder %s375, %s389
      %p391 = scmp.eq.s32.totalorder %s108, 0
      %p392 = por %p390, %p391
      %s394 = sadd.s32 %s393, 1
      %p397 = scmp.eq.s32.totalorder %s102, 1
      %p398 = scmp.ne.s32.totalorder %s393, %s395
      %p399 = scmp.eq.s32.totalorder %s102, 0
      %p400 = por %p398, %p399
      %p401 = scmp.ne.s32.totalorder %s393, %s395
      %p402 = scmp.eq.s32.totalorder %s107, 1
      %p403 = por %p401, %p402
      %p404 = scmp.ne.s32.totalorder %s395, %s396
      %p405 = scmp.eq.s32.totalorder %s107, 0
      %p406 = por %p404, %p405
      %p407 = scmp.ne.s32.totalorder %s395, %s396
      %p408 = scmp.eq.s32.totalorder %s108, 1
      %p409 = por %p407, %p408
      %p411 = scmp.ne.s32.totalorder %s396, %s410
      %p412 = scmp.eq.s32.totalorder %s108, 0
      %p413 = por %p411, %p412
      %s415 = sadd.s32 %s414, 1
      %p418 = scmp.eq.s32.totalorder %s102, 1
      %p419 = scmp.ne.s32.totalorder %s414, %s416
      %p420 = scmp.eq.s32.totalorder %s102, 0
      %p421 = por %p419, %p420
      %p422 = scmp.ne.s32.totalorder %s414, %s416
      %p423 = scmp.eq.s32.totalorder %s107, 1
      %p424 = por %p422, %p423
      %p425 = scmp.ne.s32.totalorder %s416, %s417
      %p426 = scmp.eq.s32.totalorder %s107, 0
      %p427 = por %p425, %p426
      %p428 = scmp.ne.s32.totalorder %s416, %s417
      %p429 = scmp.eq.s32.totalorder %s108, 1
      %p430 = por %p428, %p429
      %p432 = scmp.ne.s32.totalorder %s417, %s431
      %p433 = scmp.eq.s32.totalorder %s108, 0
      %p434 = por %p432, %p433
      %s436 = sadd.s32 %s435, 1
      %p439 = scmp.eq.s32.totalorder %s102, 1
      %p440 = scmp.ne.s32.totalorder %s435, %s437
      %p441 = scmp.eq.s32.totalorder %s102, 0
      %p442 = por %p440, %p441
      %p443 = scmp.ne.s32.totalorder %s435, %s437
      %p444 = scmp.eq.s32.totalorder %s107, 1
      %p445 = por %p443, %p444
      %p446 = scmp.ne.s32.totalorder %s437, %s438
      %p447 = scmp.eq.s32.totalorder %s107, 0
      %p448 = por %p446, %p447
      %p449 = scmp.ne.s32.totalorder %s437, %s438
      %p450 = scmp.eq.s32.totalorder %s108, 1
      %p451 = por %p449, %p450
      %p453 = scmp.ne.s32.totalorder %s438, %s452
      %p454 = scmp.eq.s32.totalorder %s108, 0
      %p455 = por %p453, %p454
      %s457 = sadd.s32 %s456, 1
      %p460 = scmp.eq.s32.totalorder %s102, 1
      %p461 = scmp.ne.s32.totalorder %s456, %s458
      %p462 = scmp.eq.s32.totalorder %s102, 0
      %p463 = por %p461, %p462
      %p464 = scmp.ne.s32.totalorder %s456, %s458
      %p465 = scmp.eq.s32.totalorder %s107, 1
      %p466 = por %p464, %p465
      %p467 = scmp.ne.s32.totalorder %s458, %s459
      %p468 = scmp.eq.s32.totalorder %s107, 0
      %p469 = por %p467, %p468
      %p470 = scmp.ne.s32.totalorder %s458, %s459
      %p471 = scmp.eq.s32.totalorder %s108, 1
      %p472 = por %p470, %p471
      %p474 = scmp.ne.s32.totalorder %s459, %s473
      %p475 = scmp.eq.s32.totalorder %s108, 0
      %p476 = por %p474, %p475
      %s478 = sadd.s32 %s477, 1
      %p481 = scmp.eq.s32.totalorder %s102, 1
      %p482 = scmp.ne.s32.totalorder %s477, %s479
      %p483 = scmp.eq.s32.totalorder %s102, 0
      %p484 = por %p482, %p483
      %p485 = scmp.ne.s32.totalorder %s477, %s479
      %p486 = scmp.eq.s32.totalorder %s107, 1
      %p487 = por %p485, %p486
      %p488 = scmp.ne.s32.totalorder %s479, %s480
      %p489 = scmp.eq.s32.totalorder %s107, 0
      %p490 = por %p488, %p489
      %p491 = scmp.ne.s32.totalorder %s479, %s480
      %p492 = scmp.eq.s32.totalorder %s108, 1
      %p493 = por %p491, %p492
      %p495 = scmp.ne.s32.totalorder %s480, %s494
      %p496 = scmp.eq.s32.totalorder %s108, 0
      %p497 = por %p495, %p496
      %s499 = sadd.s32 %s498, 1
      %p502 = scmp.eq.s32.totalorder %s102, 1
      %p503 = scmp.ne.s32.totalorder %s498, %s500
      %p504 = scmp.eq.s32.totalorder %s102, 0
      %p505 = por %p503, %p504
      %p506 = scmp.ne.s32.totalorder %s498, %s500
      %p507 = scmp.eq.s32.totalorder %s107, 1
      %p508 = por %p506, %p507
      %p509 = scmp.ne.s32.totalorder %s500, %s501
      %p510 = scmp.eq.s32.totalorder %s107, 0
      %p511 = por %p509, %p510
      %p512 = scmp.ne.s32.totalorder %s500, %s501
      %p513 = scmp.eq.s32.totalorder %s108, 1
      %p514 = por %p512, %p513
      %p516 = scmp.ne.s32.totalorder %s501, %s515
      %p517 = scmp.eq.s32.totalorder %s108, 0
      %p518 = por %p516, %p517
      %s520 = sadd.s32 %s519, 1
      %p523 = scmp.eq.s32.totalorder %s102, 1
      %p524 = scmp.ne.s32.totalorder %s519, %s521
      %p525 = scmp.eq.s32.totalorder %s102, 0
      %p526 = por %p524, %p525
      %p527 = scmp.ne.s32.totalorder %s519, %s521
      %p528 = scmp.eq.s32.totalorder %s107, 1
      %p529 = por %p527, %p528
      %p530 = scmp.ne.s32.totalorder %s521, %s522
      %p531 = scmp.eq.s32.totalorder %s107, 0
      %p532 = por %p530, %p531
      %p533 = scmp.ne.s32.totalorder %s521, %s522
      %p534 = scmp.eq.s32.totalorder %s108, 1
      %p535 = por %p533, %p534
      %p537 = scmp.ne.s32.totalorder %s522, %s536
      %p538 = scmp.eq.s32.totalorder %s108, 0
      %p539 = por %p537, %p538
      %s541 = sadd.s32 %s540, 1
      %p544 = scmp.eq.s32.totalorder %s102, 1
      %p545 = scmp.ne.s32.totalorder %s540, %s542
      %p546 = scmp.eq.s32.totalorder %s102, 0
      %p547 = por %p545, %p546
      %p548 = scmp.ne.s32.totalorder %s540, %s542
      %p549 = scmp.eq.s32.totalorder %s107, 1
      %p550 = por %p548, %p549
      %p551 = scmp.ne.s32.totalorder %s542, %s543
      %p552 = scmp.eq.s32.totalorder %s107, 0
      %p553 = por %p551, %p552
      %p554 = scmp.ne.s32.totalorder %s542, %s543
      %p555 = scmp.eq.s32.totalorder %s108, 1
      %p556 = por %p554, %p555
      %p558 = scmp.ne.s32.totalorder %s543, %s557
      %p559 = scmp.eq.s32.totalorder %s108, 0
      %p560 = por %p558, %p559
      %s562 = sadd.s32 %s561, 1
      %p565 = scmp.eq.s32.totalorder %s102, 1
      %p566 = scmp.ne.s32.totalorder %s561, %s563
      %p567 = scmp.eq.s32.totalorder %s102, 0
      %p568 = por %p566, %p567
      %p569 = scmp.ne.s32.totalorder %s561, %s563
      %p570 = scmp.eq.s32.totalorder %s107, 1
      %p571 = por %p569, %p570
      %p572 = scmp.ne.s32.totalorder %s563, %s564
      %p573 = scmp.eq.s32.totalorder %s107, 0
      %p574 = por %p572, %p573
      %p575 = scmp.ne.s32.totalorder %s563, %s564
      %p576 = scmp.eq.s32.totalorder %s108, 1
      %p577 = por %p575, %p576
      %p579 = scmp.ne.s32.totalorder %s564, %s578
      %p580 = scmp.eq.s32.totalorder %s108, 0
      %p581 = por %p579, %p580
      %s583 = sadd.s32 %s582, 1
      %p586 = scmp.eq.s32.totalorder %s102, 1
      %p587 = scmp.ne.s32.totalorder %s582, %s584
      %p588 = scmp.eq.s32.totalorder %s102, 0
      %p589 = por %p587, %p588
      %p590 = scmp.ne.s32.totalorder %s582, %s584
      %p591 = scmp.eq.s32.totalorder %s107, 1
      %p592 = por %p590, %p591
      %p593 = scmp.ne.s32.totalorder %s584, %s585
      %p594 = scmp.eq.s32.totalorder %s107, 0
      %p595 = por %p593, %p594
      %p596 = scmp.ne.s32.totalorder %s584, %s585
      %p597 = scmp.eq.s32.totalorder %s108, 1
      %p598 = por %p596, %p597
      %p600 = scmp.ne.s32.totalorder %s585, %s599
      %p601 = scmp.eq.s32.totalorder %s108, 0
      %p602 = por %p600, %p601
      %s604 = sadd.s32 %s603, 1
      %p607 = scmp.eq.s32.totalorder %s102, 1
      %p608 = scmp.ne.s32.totalorder %s603, %s605
      %p609 = scmp.eq.s32.totalorder %s102, 0
      %p610 = por %p608, %p609
      %p611 = scmp.ne.s32.totalorder %s603, %s605
      %p612 = scmp.eq.s32.totalorder %s107, 1
      %p613 = por %p611, %p612
      %p614 = scmp.ne.s32.totalorder %s605, %s606
      %p615 = scmp.eq.s32.totalorder %s107, 0
      %p616 = por %p614, %p615
      %p617 = scmp.ne.s32.totalorder %s605, %s606
      %p618 = scmp.eq.s32.totalorder %s108, 1
      %p619 = por %p617, %p618
      %p621 = scmp.ne.s32.totalorder %s606, %s620
      %p622 = scmp.eq.s32.totalorder %s108, 0
      %p623 = por %p621, %p622
      %s625 = sadd.s32 %s624, 1
      %p628 = scmp.eq.s32.totalorder %s102, 1
      %p629 = scmp.ne.s32.totalorder %s624, %s626
      %p630 = scmp.eq.s32.totalorder %s102, 0
      %p631 = por %p629, %p630
      %p632 = scmp.ne.s32.totalorder %s624, %s626
      %p633 = scmp.eq.s32.totalorder %s107, 1
      %p634 = por %p632, %p633
      %p635 = scmp.ne.s32.totalorder %s626, %s627
      %p636 = scmp.eq.s32.totalorder %s107, 0
      %p637 = por %p635, %p636
      %p638 = scmp.ne.s32.totalorder %s626, %s627
      %p639 = scmp.eq.s32.totalorder %s108, 1
      %p640 = por %p638, %p639
      %p642 = scmp.ne.s32.totalorder %s627, %s641
      %p643 = scmp.eq.s32.totalorder %s108, 0
      %p644 = por %p642, %p643
      %s646 = sadd.s32 %s645, 1
      %p649 = scmp.eq.s32.totalorder %s102, 1
      %p650 = scmp.ne.s32.totalorder %s645, %s647
      %p651 = scmp.eq.s32.totalorder %s102, 0
      %p652 = por %p650, %p651
      %p653 = scmp.ne.s32.totalorder %s645, %s647
      %p654 = scmp.eq.s32.totalorder %s107, 1
      %p655 = por %p653, %p654
      %p656 = scmp.ne.s32.totalorder %s647, %s648
      %p657 = scmp.eq.s32.totalorder %s107, 0
      %p658 = por %p656, %p657
      %p659 = scmp.ne.s32.totalorder %s647, %s648
      %p660 = scmp.eq.s32.totalorder %s108, 1
      %p661 = por %p659, %p660
      %p663 = scmp.ne.s32.totalorder %s648, %s662
      %p664 = scmp.eq.s32.totalorder %s108, 0
      %p665 = por %p663, %p664
      %s667 = sadd.s32 %s666, 1
      %p670 = scmp.eq.s32.totalorder %s102, 1
      %p671 = scmp.ne.s32.totalorder %s666, %s668
      %p672 = scmp.eq.s32.totalorder %s102, 0
      %p673 = por %p671, %p672
      %p674 = scmp.ne.s32.totalorder %s666, %s668
      %p675 = scmp.eq.s32.totalorder %s107, 1
      %p676 = por %p674, %p675
      %p677 = scmp.ne.s32.totalorder %s668, %s669
      %p678 = scmp.eq.s32.totalorder %s107, 0
      %p679 = por %p677, %p678
      %p680 = scmp.ne.s32.totalorder %s668, %s669
      %p681 = scmp.eq.s32.totalorder %s108, 1
      %p682 = por %p680, %p681
      %p684 = scmp.ne.s32.totalorder %s669, %s683
      %p685 = scmp.eq.s32.totalorder %s108, 0
      %p686 = por %p684, %p685
      %s688 = sadd.s32 %s687, 1
      %p691 = scmp.eq.s32.totalorder %s102, 1
      %p692 = scmp.ne.s32.totalorder %s687, %s689
      %p693 = scmp.eq.s32.totalorder %s102, 0
      %p694 = por %p692, %p693
      %p695 = scmp.ne.s32.totalorder %s687, %s689
      %p696 = scmp.eq.s32.totalorder %s107, 1
      %p697 = por %p695, %p696
      %p698 = scmp.ne.s32.totalorder %s689, %s690
      %p699 = scmp.eq.s32.totalorder %s107, 0
      %p700 = por %p698, %p699
      %p701 = scmp.ne.s32.totalorder %s689, %s690
      %p702 = scmp.eq.s32.totalorder %s108, 1
      %p703 = por %p701, %p702
      %p705 = scmp.ne.s32.totalorder %s690, %s704
      %p706 = scmp.eq.s32.totalorder %s108, 0
      %p707 = por %p705, %p706
      %s709 = sadd.s32 %s708, 1
      %p712 = scmp.eq.s32.totalorder %s102, 1
      %p713 = scmp.ne.s32.totalorder %s708, %s710
      %p714 = scmp.eq.s32.totalorder %s102, 0
      %p715 = por %p713, %p714
      %p716 = scmp.ne.s32.totalorder %s708, %s710
      %p717 = scmp.eq.s32.totalorder %s107, 1
      %p718 = por %p716, %p717
      %p719 = scmp.ne.s32.totalorder %s710, %s711
      %p720 = scmp.eq.s32.totalorder %s107, 0
      %p721 = por %p719, %p720
      %p722 = scmp.ne.s32.totalorder %s710, %s711
      %p723 = scmp.eq.s32.totalorder %s108, 1
      %p724 = por %p722, %p723
      %p726 = scmp.ne.s32.totalorder %s711, %s725
      %p727 = scmp.eq.s32.totalorder %s108, 0
      %p728 = por %p726, %p727
      %s730 = sadd.s32 %s729, 1
      %p733 = scmp.eq.s32.totalorder %s102, 1
      %p734 = scmp.ne.s32.totalorder %s729, %s731
      %p735 = scmp.eq.s32.totalorder %s102, 0
      %p736 = por %p734, %p735
      %p737 = scmp.ne.s32.totalorder %s729, %s731
      %p738 = scmp.eq.s32.totalorder %s107, 1
      %p739 = por %p737, %p738
      %p740 = scmp.ne.s32.totalorder %s731, %s732
      %p741 = scmp.eq.s32.totalorder %s107, 0
      %p742 = por %p740, %p741
      %p743 = scmp.ne.s32.totalorder %s731, %s732
      %p744 = scmp.eq.s32.totalorder %s108, 1
      %p745 = por %p743, %p744
      %p747 = scmp.ne.s32.totalorder %s732, %s746
      %p748 = scmp.eq.s32.totalorder %s108, 0
      %p749 = por %p747, %p748
      %s751 = sadd.s32 %s750, 1
      %p754 = scmp.eq.s32.totalorder %s102, 1
      %p755 = scmp.ne.s32.totalorder %s750, %s752
      %p756 = scmp.eq.s32.totalorder %s102, 0
      %p757 = por %p755, %p756
      %p758 = scmp.ne.s32.totalorder %s750, %s752
      %p759 = scmp.eq.s32.totalorder %s107, 1
      %p760 = por %p758, %p759
      %p761 = scmp.ne.s32.totalorder %s752, %s753
      %p762 = scmp.eq.s32.totalorder %s107, 0
      %p763 = por %p761, %p762
      %p764 = scmp.ne.s32.totalorder %s752, %s753
      %p765 = scmp.eq.s32.totalorder %s108, 1
      %p766 = por %p764, %p765
      %p768 = scmp.ne.s32.totalorder %s753, %s767
      %p769 = scmp.eq.s32.totalorder %s108, 0
      %p770 = por %p768, %p769
      %s772 = sadd.s32 %s771, 1
      %p775 = scmp.eq.s32.totalorder %s102, 1
      %p776 = scmp.ne.s32.totalorder %s771, %s773
      %p777 = scmp.eq.s32.totalorder %s102, 0
      %p778 = por %p776, %p777
      %p779 = scmp.ne.s32.totalorder %s771, %s773
      %p780 = scmp.eq.s32.totalorder %s107, 1
      %p781 = por %p779, %p780
      %p782 = scmp.ne.s32.totalorder %s773, %s774
      %p783 = scmp.eq.s32.totalorder %s107, 0
      %p784 = por %p782, %p783
      %p785 = scmp.ne.s32.totalorder %s773, %s774
      %p786 = scmp.eq.s32.totalorder %s108, 1
      %p787 = por %p785, %p786
      %p789 = scmp.ne.s32.totalorder %s774, %s788
      %p790 = scmp.eq.s32.totalorder %s108, 0
      %p791 = por %p789, %p790
      %s793 = sadd.s32 %s792, 1
      %p796 = scmp.eq.s32.totalorder %s102, 1
      %p797 = scmp.ne.s32.totalorder %s792, %s794
      %p798 = scmp.eq.s32.totalorder %s102, 0
      %p799 = por %p797, %p798
      %p800 = scmp.ne.s32.totalorder %s792, %s794
      %p801 = scmp.eq.s32.totalorder %s107, 1
      %p802 = por %p800, %p801
      %p803 = scmp.ne.s32.totalorder %s794, %s795
      %p804 = scmp.eq.s32.totalorder %s107, 0
      %p805 = por %p803, %p804
      %p806 = scmp.ne.s32.totalorder %s794, %s795
      %p807 = scmp.eq.s32.totalorder %s108, 1
      %p808 = por %p806, %p807
      %p810 = scmp.ne.s32.totalorder %s795, %s809
      %p811 = scmp.eq.s32.totalorder %s108, 0
      %p812 = por %p810, %p811
      %s813 = ssub.s32 %s102, %s109
      %p814 = scmp.eq.s32.totalorder %s813, 0
      %s816 = sadd.s32 %s815, 1
      %s817 = scalar_select %p814, %s815, %s816
      %p820 = pneg %p814
      %p821 = scmp.eq.s32.totalorder %s102, 1
      %p822 = por %p820, %p821
      %p823 = scmp.ne.s32.totalorder %s815, %s818
      %p824 = scmp.eq.s32.totalorder %s102, 0
      %p825 = por %p823, %p824
      %p826 = scmp.ne.s32.totalorder %s815, %s818
      %p827 = scmp.eq.s32.totalorder %s107, 1
      %p828 = por %p826, %p827
      %p829 = scmp.ne.s32.totalorder %s818, %s819
      %p830 = scmp.eq.s32.totalorder %s107, 0
      %p831 = por %p829, %p830
      %p832 = scmp.ne.s32.totalorder %s818, %s819
      %p833 = scmp.eq.s32.totalorder %s108, 1
      %p834 = por %p832, %p833
      %p836 = scmp.ne.s32.totalorder %s819, %s835
      %p837 = scmp.eq.s32.totalorder %s108, 0
      %p838 = por %p836, %p837
      %s839 = ssub.s32 %s102, %s109
      %p840 = scmp.eq.s32.totalorder %s839, 0
      %s842 = sadd.s32 %s841, 1
      %s843 = scalar_select %p840, %s841, %s842
      %p846 = pneg %p840
      %p847 = scmp.eq.s32.totalorder %s102, 1
      %p848 = por %p846, %p847
      %p849 = scmp.ne.s32.totalorder %s841, %s844
      %p850 = scmp.eq.s32.totalorder %s102, 0
      %p851 = por %p849, %p850
      %p852 = scmp.ne.s32.totalorder %s841, %s844
      %p853 = scmp.eq.s32.totalorder %s107, 1
      %p854 = por %p852, %p853
      %p855 = scmp.ne.s32.totalorder %s844, %s845
      %p856 = scmp.eq.s32.totalorder %s107, 0
      %p857 = por %p855, %p856
      %p858 = scmp.ne.s32.totalorder %s844, %s845
      %p859 = scmp.eq.s32.totalorder %s108, 1
      %p860 = por %p858, %p859
      %p862 = scmp.ne.s32.totalorder %s845, %s861
      %p863 = scmp.eq.s32.totalorder %s108, 0
      %p864 = por %p862, %p863
      %p865 = scmp.le.s32.totalorder 1, %s102
      %p866 = scmp.lt.s32.totalorder %s102, 3
      %p867 = pnand %p865, %p866
      %p868 = pneg %p867
      // Predicated region
      $region9: #{tpu_custom_call.1} parent=5 // pred_check
        _
      $region10: #{tpu_custom_call.1} parent=5 // pred_check_branch
        %870 = sbr.rel (%p867) target = $region12
      $region11: #{tpu_custom_call.1} parent=5 // pred_region
        %s871 = ssub.s32 %s102, 1
        // Predicated region
        $region13: #{tpu_custom_call.1} parent=11 // pred_check
          %p872 = pneg %p175
        $region14: #{tpu_custom_call.1} parent=11 // pred_check_branch
          %874 = sbr.rel (%p872) target = $region16
        $region15: #{tpu_custom_call.1} parent=11 // pred_region
          _
        $region16: #{tpu_custom_call.1} parent=11 // pred_fallthru
          _
        // Predicated region
        $region17: #{tpu_custom_call.1} parent=11 // pred_check
          %p875 = pneg %p196
        $region18: #{tpu_custom_call.1} parent=11 // pred_check_branch
          %877 = sbr.rel (%p875) target = $region20
        $region19: #{tpu_custom_call.1} parent=11 // pred_region
          %s879 = ssub.s32 16, 16
          %880 = vsyncadd [#allocation9], %s879
          %s882 = sshll.u32 [#allocation10], 4
          %s883 = int_to_ptr.vmem [resolvable:$true] %s882
          %885 = dma.hbm_to_vmem [thread:$0]  %s11, 16, %s883, [#allocation9]
        $region20: #{tpu_custom_call.1} parent=11 // pred_fallthru
          _
        // Predicated region
        $region21: #{tpu_custom_call.1} parent=11 // pred_check
          %p886 = pneg %p217
        $region22: #{tpu_custom_call.1} parent=11 // pred_check_branch
          %888 = sbr.rel (%p886) target = $region24
        $region23: #{tpu_custom_call.1} parent=11 // pred_region
          _
        $region24: #{tpu_custom_call.1} parent=11 // pred_fallthru
          _
        // Predicated region
        $region25: #{tpu_custom_call.1} parent=11 // pred_check
          %p889 = pneg %p238
        $region26: #{tpu_custom_call.1} parent=11 // pred_check_branch
          %891 = sbr.rel (%p889) target = $region28
        $region27: #{tpu_custom_call.1} parent=11 // pred_region
          %s893 = ssub.s32 16, 16
          %894 = vsyncadd [#allocation12], %s893
          %s896 = sshll.u32 [#allocation11], 4
          %s897 = int_to_ptr.vmem [resolvable:$true] %s896
          %899 = dma.hbm_to_vmem [thread:$0]  %s15, 16, %s897, [#allocation12]
        $region28: #{tpu_custom_call.1} parent=11 // pred_fallthru
          _
        // Predicated region
        $region29: #{tpu_custom_call.1} parent=11 // pred_check
          %p900 = pneg %p259
        $region30: #{tpu_custom_call.1} parent=11 // pred_check_branch
          %902 = sbr.rel (%p900) target = $region32
        $region31: #{tpu_custom_call.1} parent=11 // pred_region
          _
        $region32: #{tpu_custom_call.1} parent=11 // pred_fallthru
          _
        // Predicated region
        $region33: #{tpu_custom_call.1} parent=11 // pred_check
          %p903 = pneg %p280
        $region34: #{tpu_custom_call.1} parent=11 // pred_check_branch
          %905 = sbr.rel (%p903) target = $region36
        $region35: #{tpu_custom_call.1} parent=11 // pred_region
          %s907 = ssub.s32 16, 16
          %908 = vsyncadd [#allocation12], %s907
          %s910 = sshll.u32 [#allocation13], 4
          %s911 = int_to_ptr.vmem [resolvable:$true] %s910
          %913 = dma.hbm_to_vmem [thread:$0]  %s19, 16, %s911, [#allocation12]
        $region36: #{tpu_custom_call.1} parent=11 // pred_fallthru
          _
        // Predicated region
        $region37: #{tpu_custom_call.1} parent=11 // pred_check
          %p914 = pneg %p301
        $region38: #{tpu_custom_call.1} parent=11 // pred_check_branch
          %916 = sbr.rel (%p914) target = $region40
        $region39: #{tpu_custom_call.1} parent=11 // pred_region
          _
        $region40: #{tpu_custom_call.1} parent=11 // pred_fallthru
          _
        // Predicated region
        $region41: #{tpu_custom_call.1} parent=11 // pred_check
          %p917 = pneg %p322
        $region42: #{tpu_custom_call.1} parent=11 // pred_check_branch
          %919 = sbr.rel (%p917) target = $region44
        $region43: #{tpu_custom_call.1} parent=11 // pred_region
          %s921 = ssub.s32 16, 16
          %922 = vsyncadd [#allocation15], %s921
          %s924 = sshll.u32 [#allocation14], 4
          %s925 = int_to_ptr.vmem [resolvable:$true] %s924
          %927 = dma.hbm_to_vmem [thread:$0]  %s23, 16, %s925, [#allocation15]
        $region44: #{tpu_custom_call.1} parent=11 // pred_fallthru
          _
        // Predicated region
        $region45: #{tpu_custom_call.1} parent=11 // pred_check
          %p928 = pneg %p343
        $region46: #{tpu_custom_call.1} parent=11 // pred_check_branch
          %930 = sbr.rel (%p928) target = $region48
        $region47: #{tpu_custom_call.1} parent=11 // pred_region
          _
        $region48: #{tpu_custom_call.1} parent=11 // pred_fallthru
          _
        // Predicated region
        $region49: #{tpu_custom_call.1} parent=11 // pred_check
          %p931 = pneg %p364
        $region50: #{tpu_custom_call.1} parent=11 // pred_check_branch
          %933 = sbr.rel (%p931) target = $region52
        $region51: #{tpu_custom_call.1} parent=11 // pred_region
          %s935 = ssub.s32 16, 16
          %936 = vsyncadd [#allocation15], %s935
          %s938 = sshll.u32 [#allocation16], 4
          %s939 = int_to_ptr.vmem [resolvable:$true] %s938
          %941 = dma.hbm_to_vmem [thread:$0]  %s27, 16, %s939, [#allocation15]
        $region52: #{tpu_custom_call.1} parent=11 // pred_fallthru
          _
        // Predicated region
        $region53: #{tpu_custom_call.1} parent=11 // pred_check
          %p942 = pneg %p385
        $region54: #{tpu_custom_call.1} parent=11 // pred_check_branch
          %944 = sbr.rel (%p942) target = $region56
        $region55: #{tpu_custom_call.1} parent=11 // pred_region
          _
        $region56: #{tpu_custom_call.1} parent=11 // pred_fallthru
          _
        // Predicated region
        $region57: #{tpu_custom_call.1} parent=11 // pred_check
          %p945 = pneg %p406
        $region58: #{tpu_custom_call.1} parent=11 // pred_check_branch
          %947 = sbr.rel (%p945) target = $region60
        $region59: #{tpu_custom_call.1} parent=11 // pred_region
          _
        $region60: #{tpu_custom_call.1} parent=11 // pred_fallthru
          _
        // Predicated region
        $region61: #{tpu_custom_call.1} parent=11 // pred_check
          %p948 = pneg %p427
        $region62: #{tpu_custom_call.1} parent=11 // pred_check_branch
          %950 = sbr.rel (%p948) target = $region64
        $region63: #{tpu_custom_call.1} parent=11 // pred_region
          _
        $region64: #{tpu_custom_call.1} parent=11 // pred_fallthru
          _
        // Predicated region
        $region65: #{tpu_custom_call.1} parent=11 // pred_check
          %p951 = pneg %p448
        $region66: #{tpu_custom_call.1} parent=11 // pred_check_branch
          %953 = sbr.rel (%p951) target = $region68
        $region67: #{tpu_custom_call.1} parent=11 // pred_region
          _
        $region68: #{tpu_custom_call.1} parent=11 // pred_fallthru
          _
        // Predicated region
        $region69: #{tpu_custom_call.1} parent=11 // pred_check
          %p954 = pneg %p469
        $region70: #{tpu_custom_call.1} parent=11 // pred_check_branch
          %956 = sbr.rel (%p954) target = $region72
        $region71: #{tpu_custom_call.1} parent=11 // pred_region
          %s958 = ssub.s32 16, 16
          %959 = vsyncadd [#allocation18], %s958
          %s961 = sshll.u32 [#allocation17], 4
          %s962 = int_to_ptr.vmem [resolvable:$true] %s961
          %964 = dma.hbm_to_vmem [thread:$0]  %s37, 16, %s962, [#allocation18]
        $region72: #{tpu_custom_call.1} parent=11 // pred_fallthru
          _
        // Predicated region
        $region73: #{tpu_custom_call.1} parent=11 // pred_check
          %p965 = pneg %p490
        $region74: #{tpu_custom_call.1} parent=11 // pred_check_branch
          %967 = sbr.rel (%p965) target = $region76
        $region75: #{tpu_custom_call.1} parent=11 // pred_region
          _
        $region76: #{tpu_custom_call.1} parent=11 // pred_fallthru
          _
        // Predicated region
        $region77: #{tpu_custom_call.1} parent=11 // pred_check
          %p968 = pneg %p511
        $region78: #{tpu_custom_call.1} parent=11 // pred_check_branch
          %970 = sbr.rel (%p968) target = $region80
        $region79: #{tpu_custom_call.1} parent=11 // pred_region
          %s972 = ssub.s32 16, 16
          %973 = vsyncadd [#allocation18], %s972
          %s975 = sshll.u32 [#allocation19], 4
          %s976 = int_to_ptr.vmem [resolvable:$true] %s975
          %978 = dma.hbm_to_vmem [thread:$0]  %s41, 16, %s976, [#allocation18]
        $region80: #{tpu_custom_call.1} parent=11 // pred_fallthru
          _
        // Predicated region
        $region81: #{tpu_custom_call.1} parent=11 // pred_check
          %p979 = pneg %p532
        $region82: #{tpu_custom_call.1} parent=11 // pred_check_branch
          %981 = sbr.rel (%p979) target = $region84
        $region83: #{tpu_custom_call.1} parent=11 // pred_region
          _
        $region84: #{tpu_custom_call.1} parent=11 // pred_fallthru
          _
        // Predicated region
        $region85: #{tpu_custom_call.1} parent=11 // pred_check
          %p982 = pneg %p553
        $region86: #{tpu_custom_call.1} parent=11 // pred_check_branch
          %984 = sbr.rel (%p982) target = $region88
        $region87: #{tpu_custom_call.1} parent=11 // pred_region
          %s986 = ssub.s32 16, 16
          %987 = vsyncadd [#allocation21], %s986
          %s989 = sshll.u32 [#allocation20], 4
          %s990 = int_to_ptr.vmem [resolvable:$true] %s989
          %992 = dma.hbm_to_vmem [thread:$0]  %s45, 16, %s990, [#allocation21]
        $region88: #{tpu_custom_call.1} parent=11 // pred_fallthru
          _
        // Predicated region
        $region89: #{tpu_custom_call.1} parent=11 // pred_check
          %p993 = pneg %p574
        $region90: #{tpu_custom_call.1} parent=11 // pred_check_branch
          %995 = sbr.rel (%p993) target = $region92
        $region91: #{tpu_custom_call.1} parent=11 // pred_region
          _
        $region92: #{tpu_custom_call.1} parent=11 // pred_fallthru
          _
        // Predicated region
        $region93: #{tpu_custom_call.1} parent=11 // pred_check
          %p996 = pneg %p595
        $region94: #{tpu_custom_call.1} parent=11 // pred_check_branch
          %998 = sbr.rel (%p996) target = $region96
        $region95: #{tpu_custom_call.1} parent=11 // pred_region
          _
        $region96: #{tpu_custom_call.1} parent=11 // pred_fallthru
          _
        // Predicated region
        $region97: #{tpu_custom_call.1} parent=11 // pred_check
          %p999 = pneg %p616
        $region98: #{tpu_custom_call.1} parent=11 // pred_check_branch
          %1001 = sbr.rel (%p999) target = $region100
        $region99: #{tpu_custom_call.1} parent=11 // pred_region
          %s1003 = ssub.s32 16, 16
          %1004 = vsyncadd [#allocation21], %s1003
          %s1006 = sshll.u32 [#allocation22], 4
          %s1007 = int_to_ptr.vmem [resolvable:$true] %s1006
          %1009 = dma.hbm_to_vmem [thread:$0]  %s51, 16, %s1007, [#allocation21]
        $region100: #{tpu_custom_call.1} parent=11 // pred_fallthru
          _
        // Predicated region
        $region101: #{tpu_custom_call.1} parent=11 // pred_check
          %p1010 = pneg %p637
        $region102: #{tpu_custom_call.1} parent=11 // pred_check_branch
          %1012 = sbr.rel (%p1010) target = $region104
        $region103: #{tpu_custom_call.1} parent=11 // pred_region
          %s1014 = ssub.s32 512, 512
          %1015 = vsyncadd [#allocation24], %s1014
          %s1016 = sshll.u32 [#allocation23], 4
          %s1017 = int_to_ptr.vmem [resolvable:$true] %s1016
          %1022 = dma.hbm_to_vmem [thread:$0]  %s53, 512, %s1017, [#allocation24], 128, 128, 8
        $region104: #{tpu_custom_call.1} parent=11 // pred_fallthru
          _
        // Predicated region
        $region105: #{tpu_custom_call.1} parent=11 // pred_check
          %p1023 = pneg %p658
        $region106: #{tpu_custom_call.1} parent=11 // pred_check_branch
          %1025 = sbr.rel (%p1023) target = $region108
        $region107: #{tpu_custom_call.1} parent=11 // pred_region
          %s1027 = ssub.s32 16, 16
          %1028 = vsyncadd [#allocation24], %s1027
          %s1030 = sshll.u32 [#allocation25], 4
          %s1031 = int_to_ptr.vmem [resolvable:$true] %s1030
          %1033 = dma.hbm_to_vmem [thread:$0]  %s55, 16, %s1031, [#allocation24]
        $region108: #{tpu_custom_call.1} parent=11 // pred_fallthru
          _
        // Predicated region
        $region109: #{tpu_custom_call.1} parent=11 // pred_check
          %p1034 = pneg %p679
        $region110: #{tpu_custom_call.1} parent=11 // pred_check_branch
          %1036 = sbr.rel (%p1034) target = $region112
        $region111: #{tpu_custom_call.1} parent=11 // pred_region
          %s1038 = ssub.s32 512, 512
          %1039 = vsyncadd [#allocation27], %s1038
          %s1040 = sshll.u32 [#allocation26], 4
          %s1041 = int_to_ptr.vmem [resolvable:$true] %s1040
          %1046 = dma.hbm_to_vmem [thread:$0]  %s57, 512, %s1041, [#allocation27], 128, 128, 8
        $region112: #{tpu_custom_call.1} parent=11 // pred_fallthru
          _
        // Predicated region
        $region113: #{tpu_custom_call.1} parent=11 // pred_check
          %p1047 = pneg %p700
        $region114: #{tpu_custom_call.1} parent=11 // pred_check_branch
          %1049 = sbr.rel (%p1047) target = $region116
        $region115: #{tpu_custom_call.1} parent=11 // pred_region
          %s1051 = ssub.s32 16, 16
          %1052 = vsyncadd [#allocation27], %s1051
          %s1054 = sshll.u32 [#allocation28], 4
          %s1055 = int_to_ptr.vmem [resolvable:$true] %s1054
          %1057 = dma.hbm_to_vmem [thread:$0]  %s59, 16, %s1055, [#allocation27]
        $region116: #{tpu_custom_call.1} parent=11 // pred_fallthru
          _
        // Predicated region
        $region117: #{tpu_custom_call.1} parent=11 // pred_check
          %p1058 = pneg %p721
        $region118: #{tpu_custom_call.1} parent=11 // pred_check_branch
          %1060 = sbr.rel (%p1058) target = $region120
        $region119: #{tpu_custom_call.1} parent=11 // pred_region
          %s1062 = ssub.s32 512, 512
          %1063 = vsyncadd [#allocation30], %s1062
          %s1064 = sshll.u32 [#allocation29], 4
          %s1065 = int_to_ptr.vmem [resolvable:$true] %s1064
          %1070 = dma.hbm_to_vmem [thread:$0]  %s61, 512, %s1065, [#allocation30], 128, 128, 8
        $region120: #{tpu_custom_call.1} parent=11 // pred_fallthru
          _
        // Predicated region
        $region121: #{tpu_custom_call.1} parent=11 // pred_check
          %p1071 = pneg %p742
        $region122: #{tpu_custom_call.1} parent=11 // pred_check_branch
          %1073 = sbr.rel (%p1071) target = $region124
        $region123: #{tpu_custom_call.1} parent=11 // pred_region
          %s1075 = ssub.s32 16, 16
          %1076 = vsyncadd [#allocation30], %s1075
          %s1078 = sshll.u32 [#allocation31], 4
          %s1079 = int_to_ptr.vmem [resolvable:$true] %s1078
          %1081 = dma.hbm_to_vmem [thread:$0]  %s63, 16, %s1079, [#allocation30]
        $region124: #{tpu_custom_call.1} parent=11 // pred_fallthru
          _
        // Predicated region
        $region125: #{tpu_custom_call.1} parent=11 // pred_check
          %p1082 = pneg %p763
        $region126: #{tpu_custom_call.1} parent=11 // pred_check_branch
          %1084 = sbr.rel (%p1082) target = $region128
        $region127: #{tpu_custom_call.1} parent=11 // pred_region
          _
        $region128: #{tpu_custom_call.1} parent=11 // pred_fallthru
          _
        // Predicated region
        $region129: #{tpu_custom_call.1} parent=11 // pred_check
          %p1085 = pneg %p784
        $region130: #{tpu_custom_call.1} parent=11 // pred_check_branch
          %1087 = sbr.rel (%p1085) target = $region132
        $region131: #{tpu_custom_call.1} parent=11 // pred_region
          _
        $region132: #{tpu_custom_call.1} parent=11 // pred_fallthru
          _
        // Predicated region
        $region133: #{tpu_custom_call.1} parent=11 // pred_check
          %p1088 = pneg %p805
        $region134: #{tpu_custom_call.1} parent=11 // pred_check_branch
          %1090 = sbr.rel (%p1088) target = $region136
        $region135: #{tpu_custom_call.1} parent=11 // pred_region
          _
        $region136: #{tpu_custom_call.1} parent=11 // pred_fallthru
          _
      $region12: #{tpu_custom_call.1} parent=5 // pred_fallthru
        _
      %p1091 = scmp.lt.s32.totalorder %s102, 2
      // Predicated region
      $region137: #{tpu_custom_call.1} parent=5 // pred_check
        %p1092 = pneg %p1091
      $region138: #{tpu_custom_call.1} parent=5 // pred_check_branch
        %1094 = sbr.rel (%p1092) target = $region140
      $region139: #{tpu_custom_call.1} parent=5 // pred_region
        // Predicated region
        $region141: #{tpu_custom_call.1} parent=139 // pred_check
          %p1095 = pneg %p122
        $region142: #{tpu_custom_call.1} parent=139 // pred_check_branch
          %1097 = sbr.rel (%p1095) target = $region144
        $region143: #{tpu_custom_call.1} parent=139 // pred_region
          %s1098 = sand.u32 %s112, 1
          %s1099 = scalar_lea.sflag [#allocation6], %s1098
          %s1100 = sand.u32 %s112, 1
          %s1101 = smul.addr %s1100, 8
          %s1102 = scalar_lea.vmem [#allocation5], %s1101
          %s1104 = ssub.s32 128, 128
          %1105 = vsyncadd %s1099, %s1104
          %s1106 = smul.addr %s102, 128
          %s1107 = scalar_lea.hbm %s5, %s1106
          %s1109 = sshll.u32 %s1102, 4
          %s1110 = int_to_ptr.vmem [resolvable:$true] %s1109
          %1112 = dma.hbm_to_vmem [thread:$0]  %s1107, 128, %s1110, %s1099
        $region144: #{tpu_custom_call.1} parent=139 // pred_fallthru
          _
        // Predicated region
        $region145: #{tpu_custom_call.1} parent=139 // pred_check
          %p1113 = pneg %p148
        $region146: #{tpu_custom_call.1} parent=139 // pred_check_branch
          %1115 = sbr.rel (%p1113) target = $region148
        $region147: #{tpu_custom_call.1} parent=139 // pred_region
          %s1116 = sand.u32 %s102, 1
          %s1117 = scalar_lea.sflag [#allocation9], %s1116
          %s1118 = sand.u32 %s138, 1
          %s1119 = scalar_lea.vmem [#allocation8], %s1118
          %s1121 = ssub.s32 16, 16
          %1122 = vsyncadd %s1117, %s1121
          %s1123 = smul.addr %s102, 16
          %s1124 = scalar_lea.hbm %s7, %s1123
          %s1126 = sshll.u32 %s1119, 4
          %s1127 = int_to_ptr.vmem [resolvable:$true] %s1126
          %1129 = dma.hbm_to_vmem [thread:$0]  %s1124, 16, %s1127, %s1117
        $region148: #{tpu_custom_call.1} parent=139 // pred_fallthru
          _
      $region140: #{tpu_custom_call.1} parent=5 // pred_fallthru
        _
      %p1130 = scmp.le.s32.totalorder 1, %s102
      %p1131 = scmp.lt.s32.totalorder %s102, 3
      %p1132 = pnand %p1130, %p1131
      %p1133 = pneg %p1132
      // Predicated region
      $region149: #{tpu_custom_call.1} parent=5 // pred_check
        _
      $region150: #{tpu_custom_call.1} parent=5 // pred_check_branch
        %1135 = sbr.rel (%p1132) target = $region152
      $region151: #{tpu_custom_call.1} parent=5 // pred_region
        %s1136 = ssub.s32 %s102, 1
        %s1137 = sand.u32 %s115, 1
        %s1138 = scalar_lea.sflag [#allocation6], %s1137
        %s1139 = sand.u32 %s115, 1
        %s1140 = smul.addr %s1139, 8
        %s1141 = scalar_lea.vmem [#allocation5], %s1140
        // Predicated region
        $region153: #{tpu_custom_call.1} parent=151 // pred_check
          %p1142 = pneg %p128
        $region154: #{tpu_custom_call.1} parent=151 // pred_check_branch
          %1144 = sbr.rel (%p1142) target = $region156
        $region155: #{tpu_custom_call.1} parent=151 // pred_region
          %1145 = dma.done %s1138, 128
        $region156: #{tpu_custom_call.1} parent=151 // pred_fallthru
          _
        %s1146 = sand.u32 %s107, 1
        %s1147 = scalar_lea.sflag [#allocation9], %s1146
        %s1148 = sand.u32 %s141, 1
        %s1149 = scalar_lea.vmem [#allocation8], %s1148
        // Predicated region
        $region157: #{tpu_custom_call.1} parent=151 // pred_check
          %p1150 = pneg %p154
        $region158: #{tpu_custom_call.1} parent=151 // pred_check_branch
          %1152 = sbr.rel (%p1150) target = $region160
        $region159: #{tpu_custom_call.1} parent=151 // pred_region
          %1153 = dma.done %s1147, 16
        $region160: #{tpu_custom_call.1} parent=151 // pred_fallthru
          _
        // Predicated region
        $region161: #{tpu_custom_call.1} parent=151 // pred_check
          %p1154 = pneg %p196
        $region162: #{tpu_custom_call.1} parent=151 // pred_check_branch
          %1156 = sbr.rel (%p1154) target = $region164
        $region163: #{tpu_custom_call.1} parent=151 // pred_region
          %1157 = dma.done [#allocation9], 16
        $region164: #{tpu_custom_call.1} parent=151 // pred_fallthru
          _
        // Predicated region
        $region165: #{tpu_custom_call.1} parent=151 // pred_check
          %p1158 = pneg %p238
        $region166: #{tpu_custom_call.1} parent=151 // pred_check_branch
          %1160 = sbr.rel (%p1158) target = $region168
        $region167: #{tpu_custom_call.1} parent=151 // pred_region
          %1161 = dma.done [#allocation12], 16
        $region168: #{tpu_custom_call.1} parent=151 // pred_fallthru
          _
        // Predicated region
        $region169: #{tpu_custom_call.1} parent=151 // pred_check
          %p1162 = pneg %p280
        $region170: #{tpu_custom_call.1} parent=151 // pred_check_branch
          %1164 = sbr.rel (%p1162) target = $region172
        $region171: #{tpu_custom_call.1} parent=151 // pred_region
          %1165 = dma.done [#allocation12], 16
        $region172: #{tpu_custom_call.1} parent=151 // pred_fallthru
          _
        // Predicated region
        $region173: #{tpu_custom_call.1} parent=151 // pred_check
          %p1166 = pneg %p322
        $region174: #{tpu_custom_call.1} parent=151 // pred_check_branch
          %1168 = sbr.rel (%p1166) target = $region176
        $region175: #{tpu_custom_call.1} parent=151 // pred_region
          %1169 = dma.done [#allocation15], 16
        $region176: #{tpu_custom_call.1} parent=151 // pred_fallthru
          _
        // Predicated region
        $region177: #{tpu_custom_call.1} parent=151 // pred_check
          %p1170 = pneg %p364
        $region178: #{tpu_custom_call.1} parent=151 // pred_check_branch
          %1172 = sbr.rel (%p1170) target = $region180
        $region179: #{tpu_custom_call.1} parent=151 // pred_region
          %1173 = dma.done [#allocation15], 16
        $region180: #{tpu_custom_call.1} parent=151 // pred_fallthru
          _
        // Predicated region
        $region181: #{tpu_custom_call.1} parent=151 // pred_check
          %p1174 = pneg %p469
        $region182: #{tpu_custom_call.1} parent=151 // pred_check_branch
          %1176 = sbr.rel (%p1174) target = $region184
        $region183: #{tpu_custom_call.1} parent=151 // pred_region
          %1177 = dma.done [#allocation18], 16
        $region184: #{tpu_custom_call.1} parent=151 // pred_fallthru
          _
        // Predicated region
        $region185: #{tpu_custom_call.1} parent=151 // pred_check
          %p1178 = pneg %p511
        $region186: #{tpu_custom_call.1} parent=151 // pred_check_branch
          %1180 = sbr.rel (%p1178) target = $region188
        $region187: #{tpu_custom_call.1} parent=151 // pred_region
          %1181 = dma.done [#allocation18], 16
        $region188: #{tpu_custom_call.1} parent=151 // pred_fallthru
          _
        // Predicated region
        $region189: #{tpu_custom_call.1} parent=151 // pred_check
          %p1182 = pneg %p553
        $region190: #{tpu_custom_call.1} parent=151 // pred_check_branch
          %1184 = sbr.rel (%p1182) target = $region192
        $region191: #{tpu_custom_call.1} parent=151 // pred_region
          %1185 = dma.done [#allocation21], 16
        $region192: #{tpu_custom_call.1} parent=151 // pred_fallthru
          _
        // Predicated region
        $region193: #{tpu_custom_call.1} parent=151 // pred_check
          %p1186 = pneg %p616
        $region194: #{tpu_custom_call.1} parent=151 // pred_check_branch
          %1188 = sbr.rel (%p1186) target = $region196
        $region195: #{tpu_custom_call.1} parent=151 // pred_region
          %1189 = dma.done [#allocation21], 16
        $region196: #{tpu_custom_call.1} parent=151 // pred_fallthru
          _
        // Predicated region
        $region197: #{tpu_custom_call.1} parent=151 // pred_check
          %p1190 = pneg %p637
        $region198: #{tpu_custom_call.1} parent=151 // pred_check_branch
          %1192 = sbr.rel (%p1190) target = $region200
        $region199: #{tpu_custom_call.1} parent=151 // pred_region
          %1193 = dma.done [#allocation24], 512
        $region200: #{tpu_custom_call.1} parent=151 // pred_fallthru
          _
        // Predicated region
        $region201: #{tpu_custom_call.1} parent=151 // pred_check
          %p1194 = pneg %p658
        $region202: #{tpu_custom_call.1} parent=151 // pred_check_branch
          %1196 = sbr.rel (%p1194) target = $region204
        $region203: #{tpu_custom_call.1} parent=151 // pred_region
          %1197 = dma.done [#allocation24], 16
        $region204: #{tpu_custom_call.1} parent=151 // pred_fallthru
          _
        // Predicated region
        $region205: #{tpu_custom_call.1} parent=151 // pred_check
          %p1198 = pneg %p679
        $region206: #{tpu_custom_call.1} parent=151 // pred_check_branch
          %1200 = sbr.rel (%p1198) target = $region208
        $region207: #{tpu_custom_call.1} parent=151 // pred_region
          %1201 = dma.done [#allocation27], 512
        $region208: #{tpu_custom_call.1} parent=151 // pred_fallthru
          _
        // Predicated region
        $region209: #{tpu_custom_call.1} parent=151 // pred_check
          %p1202 = pneg %p700
        $region210: #{tpu_custom_call.1} parent=151 // pred_check_branch
          %1204 = sbr.rel (%p1202) target = $region212
        $region211: #{tpu_custom_call.1} parent=151 // pred_region
          %1205 = dma.done [#allocation27], 16
        $region212: #{tpu_custom_call.1} parent=151 // pred_fallthru
          _
        // Predicated region
        $region213: #{tpu_custom_call.1} parent=151 // pred_check
          %p1206 = pneg %p721
        $region214: #{tpu_custom_call.1} parent=151 // pred_check_branch
          %1208 = sbr.rel (%p1206) target = $region216
        $region215: #{tpu_custom_call.1} parent=151 // pred_region
          %1209 = dma.done [#allocation30], 512
        $region216: #{tpu_custom_call.1} parent=151 // pred_fallthru
          _
        // Predicated region
        $region217: #{tpu_custom_call.1} parent=151 // pred_check
          %p1210 = pneg %p742
        $region218: #{tpu_custom_call.1} parent=151 // pred_check_branch
          %1212 = sbr.rel (%p1210) target = $region220
        $region219: #{tpu_custom_call.1} parent=151 // pred_region
          %1213 = dma.done [#allocation30], 16
        $region220: #{tpu_custom_call.1} parent=151 // pred_fallthru
          _
        %s1214 = sand.u32 %s115, 1
        %s1215 = scalar_lea.sflag [#allocation6], %s1214
        %s1216 = sand.u32 %s115, 1
        %s1217 = smul.addr %s1216, 8
        %s1218 = scalar_lea.vmem [#allocation5], %s1217
        %p1219 = pneg %p128
        %p1220 = pneg %p125
        %s1221 = sand.u32 %s107, 1
        %s1222 = scalar_lea.sflag [#allocation9], %s1221
        %s1223 = sand.u32 %s141, 1
        %s1224 = scalar_lea.vmem [#allocation8], %s1223
        %p1225 = pneg %p154
        %p1226 = pneg %p151
        %p1227 = pneg %p175
        %p1228 = pneg %p172
        %p1229 = pneg %p196
        %p1230 = pneg %p193
        %p1231 = pneg %p217
        %p1232 = pneg %p214
        %p1233 = pneg %p238
        %p1234 = pneg %p235
        %p1235 = pneg %p259
        %p1236 = pneg %p256
        %p1237 = pneg %p280
        %p1238 = pneg %p277
        %p1239 = pneg %p301
        %p1240 = pneg %p298
        %p1241 = pneg %p322
        %p1242 = pneg %p319
        %p1243 = pneg %p343
        %p1244 = pneg %p340
        %p1245 = pneg %p364
        %p1246 = pneg %p361
        %p1247 = pneg %p385
        %p1248 = pneg %p382
        %p1249 = pneg %p406
        %p1250 = pneg %p403
        %p1251 = pneg %p427
        %p1252 = pneg %p424
        %p1253 = pneg %p448
        %p1254 = pneg %p445
        %p1255 = pneg %p469
        %p1256 = pneg %p466
        %p1257 = pneg %p490
        %p1258 = pneg %p487
        %p1259 = pneg %p511
        %p1260 = pneg %p508
        %p1261 = pneg %p532
        %p1262 = pneg %p529
        %p1263 = pneg %p553
        %p1264 = pneg %p550
        %p1265 = pneg %p574
        %p1266 = pneg %p571
        %p1267 = pneg %p595
        %p1268 = pneg %p592
        %p1269 = pneg %p616
        %p1270 = pneg %p613
        %p1271 = pneg %p637
        %p1272 = pneg %p634
        %p1273 = pneg %p658
        %p1274 = pneg %p655
        %p1275 = pneg %p679
        %p1276 = pneg %p676
        %p1277 = pneg %p700
        %p1278 = pneg %p697
        %p1279 = pneg %p721
        %p1280 = pneg %p718
        %p1281 = pneg %p742
        %p1282 = pneg %p739
        %p1283 = pneg %p763
        %p1284 = pneg %p760
        %p1285 = pneg %p784
        %p1286 = pneg %p781
        %p1287 = pneg %p805
        %p1288 = pneg %p802
        %p1289 = pneg %p831
        %p1290 = pneg %p828
        %p1291 = scmp.lt.s32.totalorder %s107, 1
        %s1292 = scalar_select %p1291, %s107, 1
        %s1293 = smul.addr %s1292, 8
        %s1294 = scalar_lea.vmem %s71, %s1293
        %p1295 = pneg %p857
        %p1296 = pneg %p854
        %s1297 = sand.u32 %s844, 1
        %s1298 = scalar_lea.sflag [#allocation7], %s1297
        %s1299 = sand.u32 %s844, 1
        %s1300 = smul.addr %s1299, 8
        %s1301 = scalar_lea.vmem [#allocation32], %s1300
        %p1302 = scmp.lt.s32.totalorder %s107, 1
        %s1303 = scalar_select %p1302, %s107, 1
        %s1304 = smul.addr %s1303, 8
        %s1305 = scalar_lea.vmem %s71, %s1304
        %v1307 = vld [vmem:[%s1141] sm:$0xff]
        %v1308 = vld [vmem:[%s1149] sm:$0x1]
        %v1309 = vld [vmem:[%s9] sm:$0xff]
        %v1310 = vld [vmem:[%s9 + $0x8] sm:$0xff]
        %v1311 = vld [vmem:[%s9 + $0x10] sm:$0xff]
        %v1312 = vld [vmem:[%s9 + $0x18] sm:$0xff]
        %v1313 = vld [vmem:[#allocation10] sm:$0x1]
        %v1314 = vld [vmem:[%s13] sm:$0xff]
        %v1315 = vld [vmem:[%s13 + $0x8] sm:$0xff]
        %v1316 = vld [vmem:[%s13 + $0x10] sm:$0xff]
        %v1317 = vld [vmem:[%s13 + $0x18] sm:$0xff]
        %v1318 = vld [vmem:[#allocation11] sm:$0x1]
        %v1319 = vpack.c.bf16 %v1308, %v1308
        %v1320 = vpack.c.bf16 %v1310, %v1309
        %v1321 = vpack.c.bf16 %v1312, %v1311
        %vm1322 = vcmask 261120
        %v1324 = vsel %vm1322, %v1319, 0
        %1326 = vmatprep.subr.bf16.mxu0 0
        %1327 = vmatpush1.bf16.msra.mxu0 %v1320
        %1328 = vmatprep.subr.bf16.mxu0 0
        %1329 = vmatpush1.bf16.msra.mxu0 %v1321
        %1330 = vmatprep.subr.bf16.mxu0 0
        %1331 = vmatpush1.bf16.msra.mxu0 0
        %1332 = vmatprep.subr.bf16.mxu0 0
        %1333 = vmatpush1.bf16.msra.mxu0 0
        %1334 = vmatprep.subr.bf16.mxu0 0
        %1335 = vmatpush1.bf16.msra.mxu0 0
        %1336 = vmatprep.subr.bf16.mxu0 0
        %1337 = vmatpush1.bf16.msra.mxu0 0
        %1338 = vmatprep.subr.bf16.mxu0 0
        %1339 = vmatpush1.bf16.msra.mxu0 0
        %1340 = vmatprep.subr.bf16.mxu0 0
        %1341 = vmatpush1.bf16.msra.mxu0 0
        %1342 = vmatprep.subr.bf16.mxu0 0
        %1343 = vmatpush1.bf16.msra.mxu0 0
        %1344 = vmatprep.subr.bf16.mxu0 0
        %1345 = vmatpush1.bf16.msra.mxu0 0
        %1346 = vmatprep.subr.bf16.mxu0 0
        %1347 = vmatpush1.bf16.msra.mxu0 0
        %1348 = vmatprep.subr.bf16.mxu0 0
        %1349 = vmatpush1.bf16.msra.mxu0 0
        %1350 = vmatprep.subr.bf16.mxu0 0
        %1351 = vmatpush1.bf16.msra.mxu0 0
        %1352 = vmatprep.subr.bf16.mxu0 0
        %1353 = vmatpush1.bf16.msra.mxu0 0
        %1354 = vmatprep.subr.bf16.mxu0 0
        %1355 = vmatpush1.bf16.msra.mxu0 0
        %1356 = vmatprep.subr.bf16.mxu0 0
        %1357 = vmatpush1.bf16.msra.mxu0 0
        %1358 = vmatprep.mubr.bf16.mxu0 0
        %1359 = vmatmul.mubr.bf16.gmra.mrb[0].mxu0 %v1324
        %v1360 = vpop.f32.mrb[0].mxu0
        %v1361 = vadd.f32 %v1313, %v1360
        %v1362 = vpop.f32.mrb[0].mxu0
        %v1363 = vpop.f32.mrb[0].mxu0
        %v1364 = vpop.f32.mrb[0].mxu0
        %1365 = vdwg.mxu0
        %v1366 = vpack.c.bf16 %v1315, %v1314
        %v1367 = vpack.c.bf16 %v1317, %v1316
        %1368 = vmatprep.subr.bf16.mxu0 0
        %1369 = vmatpush1.bf16.msra.mxu0 %v1366
        %1370 = vmatprep.subr.bf16.mxu0 0
        %1371 = vmatpush1.bf16.msra.mxu0 %v1367
        %1372 = vmatprep.subr.bf16.mxu0 0
        %1373 = vmatpush1.bf16.msra.mxu0 0
        %1374 = vmatprep.subr.bf16.mxu0 0
        %1375 = vmatpush1.bf16.msra.mxu0 0
        %1376 = vmatprep.subr.bf16.mxu0 0
        %1377 = vmatpush1.bf16.msra.mxu0 0
        %1378 = vmatprep.subr.bf16.mxu0 0
        %1379 = vmatpush1.bf16.msra.mxu0 0
        %1380 = vmatprep.subr.bf16.mxu0 0
        %1381 = vmatpush1.bf16.msra.mxu0 0
        %1382 = vmatprep.subr.bf16.mxu0 0
        %1383 = vmatpush1.bf16.msra.mxu0 0
        %1384 = vmatprep.subr.bf16.mxu0 0
        %1385 = vmatpush1.bf16.msra.mxu0 0
        %1386 = vmatprep.subr.bf16.mxu0 0
        %1387 = vmatpush1.bf16.msra.mxu0 0
        %1388 = vmatprep.subr.bf16.mxu0 0
        %1389 = vmatpush1.bf16.msra.mxu0 0
        %1390 = vmatprep.subr.bf16.mxu0 0
        %1391 = vmatpush1.bf16.msra.mxu0 0
        %1392 = vmatprep.subr.bf16.mxu0 0
        %1393 = vmatpush1.bf16.msra.mxu0 0
        %1394 = vmatprep.subr.bf16.mxu0 0
        %1395 = vmatpush1.bf16.msra.mxu0 0
        %1396 = vmatprep.subr.bf16.mxu0 0
        %1397 = vmatpush1.bf16.msra.mxu0 0
        %1398 = vmatprep.subr.bf16.mxu0 0
        %1399 = vmatpush1.bf16.msra.mxu0 0
        %1400 = vmatprep.mubr.bf16.mxu0 0
        %1401 = vmatmul.mubr.bf16.gmra.mrb[0].mxu0 %v1324
        %v1402 = vpop.f32.mrb[0].mxu0
        %v1403 = vadd.f32 %v1318, %v1402
        %v1404 = vpop.f32.mrb[0].mxu0
        %v1405 = vpop.f32.mrb[0].mxu0
        %v1406 = vpop.f32.mrb[0].mxu0
        %1407 = vdwg.mxu0
        %v1408 = vsel %vm1322, %v1307, 0.0
        %1409 = vadd.xlane.f32.xlu0 %v1408
        %v1410 = vpop.xlane.xlu0 %1409
        %v1411 = vrcp.pop 32.0
        %v1412 = vmul.f32 %v1410, %v1411
        %v1413 = vsub.f32 %v1307, %v1412
        %v1414 = vmul.f32 %v1413, %v1413
        %v1415 = vsel %vm1322, %v1414, 0.0
        %1416 = vadd.xlane.f32.xlu0 %v1415
        %v1417 = vpop.xlane.xlu0 %1416
        %v1418 = vmul.f32 %v1417, %v1411
        %v1419 = vadd.f32 %v1418, 1e-12
        %v1420 = vrsqrt.pop %v1419
        %v1421 = vmul.f32 %v1413, %v1420
        %v1422 = vlaneseq
        %v1423 = vshrl.u32 %v1422, 7
        %v1424 = vsub.s32 0, %v1423
        %v1425 = vrot.slane %v1361, %v1424
        %v1426 = vmul.f32 %v1421, %v1425
        %v1427 = vlaneseq
        %v1428 = vshrl.u32 %v1427, 7
        %v1429 = vsub.s32 0, %v1428
        %v1430 = vrot.slane %v1403, %v1429
        %v1431 = vadd.f32 %v1426, %v1430
        %v1432 = vld [vmem:[%s17] sm:$0xff]
        %v1433 = vld [vmem:[%s17 + $0x8] sm:$0xff]
        %v1434 = vld [vmem:[%s17 + $0x10] sm:$0xff]
        %v1435 = vld [vmem:[%s17 + $0x18] sm:$0xff]
        %v1436 = vld [vmem:[#allocation13] sm:$0x1]
        %v1437 = vld [vmem:[%s21] sm:$0xff]
        %v1438 = vld [vmem:[%s21 + $0x8] sm:$0xff]
        %v1439 = vld [vmem:[%s21 + $0x10] sm:$0xff]
        %v1440 = vld [vmem:[%s21 + $0x18] sm:$0xff]
        %v1441 = vld [vmem:[#allocation14] sm:$0x1]
        %v1442 = vld [vmem:[%s25] sm:$0xff]
        %v1443 = vld [vmem:[%s25 + $0x8] sm:$0xff]
        %v1444 = vld [vmem:[%s25 + $0x10] sm:$0xff]
        %v1445 = vld [vmem:[%s25 + $0x18] sm:$0xff]
        %v1446 = vld [vmem:[#allocation16] sm:$0x1]
        %v1447 = vld [vmem:[%s29] sm:$0xff]
        %v1448 = vld [vmem:[%s29 + $0x8] sm:$0xff]
        %v1449 = vld [vmem:[%s29 + $0x10] sm:$0xff]
        %v1450 = vld [vmem:[%s29 + $0x18] sm:$0xff]
        %v1451 = vld [vmem:[%s31] sm:$0x1]
        %v1452 = vpack.c.bf16 %v1431, %v1431
        %v1453 = vpack.c.bf16 %v1433, %v1432
        %v1454 = vpack.c.bf16 %v1435, %v1434
        %v1456 = vlaneseq
        %v1457 = vshrl.u32 %v1456, 7
        %v1458 = vsub.s32 0, %v1457
        %v1459 = vrot.slane %v1436, %v1458
        %v1462 = vsel %vm1322, %v1452, 0
        %1464 = vmatprep.subr.bf16.mxu0 0
        %1465 = vmatpush1.bf16.msra.mxu0 %v1453
        %1466 = vmatprep.subr.bf16.mxu0 0
        %1467 = vmatpush1.bf16.msra.mxu0 %v1454
        %1468 = vmatprep.subr.bf16.mxu0 0
        %1469 = vmatpush1.bf16.msra.mxu0 0
        %1470 = vmatprep.subr.bf16.mxu0 0
        %1471 = vmatpush1.bf16.msra.mxu0 0
        %1472 = vmatprep.subr.bf16.mxu0 0
        %1473 = vmatpush1.bf16.msra.mxu0 0
        %1474 = vmatprep.subr.bf16.mxu0 0
        %1475 = vmatpush1.bf16.msra.mxu0 0
        %1476 = vmatprep.subr.bf16.mxu0 0
        %1477 = vmatpush1.bf16.msra.mxu0 0
        %1478 = vmatprep.subr.bf16.mxu0 0
        %1479 = vmatpush1.bf16.msra.mxu0 0
        %1480 = vmatprep.subr.bf16.mxu0 0
        %1481 = vmatpush1.bf16.msra.mxu0 0
        %1482 = vmatprep.subr.bf16.mxu0 0
        %1483 = vmatpush1.bf16.msra.mxu0 0
        %1484 = vmatprep.subr.bf16.mxu0 0
        %1485 = vmatpush1.bf16.msra.mxu0 0
        %1486 = vmatprep.subr.bf16.mxu0 0
        %1487 = vmatpush1.bf16.msra.mxu0 0
        %1488 = vmatprep.subr.bf16.mxu0 0
        %1489 = vmatpush1.bf16.msra.mxu0 0
        %1490 = vmatprep.subr.bf16.mxu0 0
        %1491 = vmatpush1.bf16.msra.mxu0 0
        %1492 = vmatprep.subr.bf16.mxu0 0
        %1493 = vmatpush1.bf16.msra.mxu0 0
        %1494 = vmatprep.subr.bf16.mxu0 0
        %1495 = vmatpush1.bf16.msra.mxu0 0
        %1496 = vmatprep.mubr.bf16.mxu0 0
        %1497 = vmatmul.mubr.bf16.gmra.mrb[0].mxu0 %v1462
        %v1498 = vpop.f32.mrb[0].mxu0
        %v1499 = vadd.f32 %v1459, %v1498
        %v1500 = vpop.f32.mrb[0].mxu0
        %v1501 = vpop.f32.mrb[0].mxu0
        %v1502 = vpop.f32.mrb[0].mxu0
        %1503 = vdwg.mxu0
        %v1504 = vpack.c.bf16 %v1438, %v1437
        %v1505 = vpack.c.bf16 %v1440, %v1439
        %v1507 = vlaneseq
        %v1508 = vshrl.u32 %v1507, 7
        %v1509 = vsub.s32 0, %v1508
        %v1510 = vrot.slane %v1441, %v1509
        %1512 = vmatprep.subr.bf16.mxu0 0
        %1513 = vmatpush1.bf16.msra.mxu0 %v1504
        %1514 = vmatprep.subr.bf16.mxu0 0
        %1515 = vmatpush1.bf16.msra.mxu0 %v1505
        %1516 = vmatprep.subr.bf16.mxu0 0
        %1517 = vmatpush1.bf16.msra.mxu0 0
        %1518 = vmatprep.subr.bf16.mxu0 0
        %1519 = vmatpush1.bf16.msra.mxu0 0
        %1520 = vmatprep.subr.bf16.mxu0 0
        %1521 = vmatpush1.bf16.msra.mxu0 0
        %1522 = vmatprep.subr.bf16.mxu0 0
        %1523 = vmatpush1.bf16.msra.mxu0 0
        %1524 = vmatprep.subr.bf16.mxu0 0
        %1525 = vmatpush1.bf16.msra.mxu0 0
        %1526 = vmatprep.subr.bf16.mxu0 0
        %1527 = vmatpush1.bf16.msra.mxu0 0
        %1528 = vmatprep.subr.bf16.mxu0 0
        %1529 = vmatpush1.bf16.msra.mxu0 0
        %1530 = vmatprep.subr.bf16.mxu0 0
        %1531 = vmatpush1.bf16.msra.mxu0 0
        %1532 = vmatprep.subr.bf16.mxu0 0
        %1533 = vmatpush1.bf16.msra.mxu0 0
        %1534 = vmatprep.subr.bf16.mxu0 0
        %1535 = vmatpush1.bf16.msra.mxu0 0
        %1536 = vmatprep.subr.bf16.mxu0 0
        %1537 = vmatpush1.bf16.msra.mxu0 0
        %1538 = vmatprep.subr.bf16.mxu0 0
        %1539 = vmatpush1.bf16.msra.mxu0 0
        %1540 = vmatprep.subr.bf16.mxu0 0
        %1541 = vmatpush1.bf16.msra.mxu0 0
        %1542 = vmatprep.subr.bf16.mxu0 0
        %1543 = vmatpush1.bf16.msra.mxu0 0
        %1544 = vmatprep.mubr.bf16.mxu0 0
        %1545 = vmatmul.mubr.bf16.gmra.mrb[0].mxu0 %v1462
        %v1546 = vpop.f32.mrb[0].mxu0
        %v1547 = vadd.f32 %v1510, %v1546
        %v1548 = vpop.f32.mrb[0].mxu0
        %v1549 = vpop.f32.mrb[0].mxu0
        %v1550 = vpop.f32.mrb[0].mxu0
        %1551 = vdwg.mxu0
        %v1552 = vpack.c.bf16 %v1443, %v1442
        %v1553 = vpack.c.bf16 %v1445, %v1444
        %v1555 = vlaneseq
        %v1556 = vshrl.u32 %v1555, 7
        %v1557 = vsub.s32 0, %v1556
        %v1558 = vrot.slane %v1446, %v1557
        %1560 = vmatprep.subr.bf16.mxu0 0
        %1561 = vmatpush1.bf16.msra.mxu0 %v1552
        %1562 = vmatprep.subr.bf16.mxu0 0
        %1563 = vmatpush1.bf16.msra.mxu0 %v1553
        %1564 = vmatprep.subr.bf16.mxu0 0
        %1565 = vmatpush1.bf16.msra.mxu0 0
        %1566 = vmatprep.subr.bf16.mxu0 0
        %1567 = vmatpush1.bf16.msra.mxu0 0
        %1568 = vmatprep.subr.bf16.mxu0 0
        %1569 = vmatpush1.bf16.msra.mxu0 0
        %1570 = vmatprep.subr.bf16.mxu0 0
        %1571 = vmatpush1.bf16.msra.mxu0 0
        %1572 = vmatprep.subr.bf16.mxu0 0
        %1573 = vmatpush1.bf16.msra.mxu0 0
        %1574 = vmatprep.subr.bf16.mxu0 0
        %1575 = vmatpush1.bf16.msra.mxu0 0
        %1576 = vmatprep.subr.bf16.mxu0 0
        %1577 = vmatpush1.bf16.msra.mxu0 0
        %1578 = vmatprep.subr.bf16.mxu0 0
        %1579 = vmatpush1.bf16.msra.mxu0 0
        %1580 = vmatprep.subr.bf16.mxu0 0
        %1581 = vmatpush1.bf16.msra.mxu0 0
        %1582 = vmatprep.subr.bf16.mxu0 0
        %1583 = vmatpush1.bf16.msra.mxu0 0
        %1584 = vmatprep.subr.bf16.mxu0 0
        %1585 = vmatpush1.bf16.msra.mxu0 0
        %1586 = vmatprep.subr.bf16.mxu0 0
        %1587 = vmatpush1.bf16.msra.mxu0 0
        %1588 = vmatprep.subr.bf16.mxu0 0
        %1589 = vmatpush1.bf16.msra.mxu0 0
        %1590 = vmatprep.subr.bf16.mxu0 0
        %1591 = vmatpush1.bf16.msra.mxu0 0
        %1592 = vmatprep.mubr.bf16.mxu0 0
        %1593 = vmatmul.mubr.bf16.gmra.mrb[0].mxu0 %v1462
        %v1594 = vpop.f32.mrb[0].mxu0
        %v1595 = vadd.f32 %v1558, %v1594
        %v1596 = vpop.f32.mrb[0].mxu0
        %v1597 = vpop.f32.mrb[0].mxu0
        %v1598 = vpop.f32.mrb[0].mxu0
        %1599 = vdwg.mxu0
        %1601 = vrot.lane.b32.xlu0 %v1499, 120
        %v1602 = vpop.permute.xlu0 %1601
        %1604 = vrot.lane.b32.xlu0 %v1499, 112
        %v1605 = vpop.permute.xlu0 %1604
        %1607 = vrot.lane.b32.xlu0 %v1499, 104
        %v1608 = vpop.permute.xlu0 %1607
        %v1610 = vcombine.low %v1499, %v1605
        %v1611 = vcombine.high %v1499, %v1605
        %v1613 = vunpack.c.l.s4 1983009808
        %v1614 = vunpack.c.0.s8 %v1613
        %v1615 = vlaneseq
        %v1616 = vshrl.u32 %v1615, 7
        %v1617 = vsub.s32 %v1614, %v1616
        %v1618 = vrot.slane %v1610, %v1617
        %v1620 = vunpack.c.l.s4 1983009808
        %v1621 = vunpack.c.0.s8 %v1620
        %v1622 = vlaneseq
        %v1623 = vshrl.u32 %v1622, 7
        %v1624 = vsub.s32 %v1621, %v1623
        %v1625 = vrot.slane %v1611, %v1624
        %v1626 = vcombine.low %v1602, %v1608
        %v1627 = vcombine.high %v1602, %v1608
        %v1629 = vunpack.c.l.s4 1983009808
        %v1630 = vunpack.c.0.s8 %v1629
        %v1631 = vlaneseq
        %v1632 = vshrl.u32 %v1631, 7
        %v1633 = vsub.s32 %v1630, %v1632
        %v1634 = vrot.slane %v1626, %v1633
        %v1636 = vunpack.c.l.s4 1983009808
        %v1637 = vunpack.c.0.s8 %v1636
        %v1638 = vlaneseq
        %v1639 = vshrl.u32 %v1638, 7
        %v1640 = vsub.s32 %v1637, %v1639
        %v1641 = vrot.slane %v1627, %v1640
        %v1642 = vcombine.low %v1618, %v1634
        %v1643 = vcombine.high %v1618, %v1634
        %v1645 = vunpack.c.l.s4 1934713408
        %v1646 = vunpack.c.0.s8 %v1645
        %v1647 = vlaneseq
        %v1648 = vshrl.u32 %v1647, 7
        %v1649 = vsub.s32 %v1646, %v1648
        %v1650 = vrot.slane %v1642, %v1649
        %v1652 = vunpack.c.l.s4 1934713408
        %v1653 = vunpack.c.0.s8 %v1652
        %v1654 = vlaneseq
        %v1655 = vshrl.u32 %v1654, 7
        %v1656 = vsub.s32 %v1653, %v1655
        %v1657 = vrot.slane %v1643, %v1656
        %v1658 = vcombine.low %v1625, %v1641
        %v1659 = vcombine.high %v1625, %v1641
        %v1661 = vunpack.c.l.s4 1934713408
        %v1662 = vunpack.c.0.s8 %v1661
        %v1663 = vlaneseq
        %v1664 = vshrl.u32 %v1663, 7
        %v1665 = vsub.s32 %v1662, %v1664
        %v1666 = vrot.slane %v1658, %v1665
        %v1668 = vunpack.c.l.s4 1934713408
        %v1669 = vunpack.c.0.s8 %v1668
        %v1670 = vlaneseq
        %v1671 = vshrl.u32 %v1670, 7
        %v1672 = vsub.s32 %v1669, %v1671
        %v1673 = vrot.slane %v1659, %v1672
        %v1674 = vcombine.high %v1650, 0.0
        %v1675 = vcombine.high %v1657, 0.0
        %v1676 = vcombine.high %v1666, 0.0
        %v1677 = vcombine.high %v1673, 0.0
        %v1678 = vcombine.low %v1650, %v1657
        %v1680 = vunpack.c.l.s4 1983009808
        %v1681 = vunpack.c.0.s8 %v1680
        %v1682 = vlaneseq
        %v1683 = vshrl.u32 %v1682, 7
        %v1684 = vsub.s32 %v1681, %v1683
        %v1685 = vrot.slane %v1678, %v1684
        %v1686 = vcombine.low %v1674, %v1675
        %v1688 = vunpack.c.l.s4 1983009808
        %v1689 = vunpack.c.0.s8 %v1688
        %v1690 = vlaneseq
        %v1691 = vshrl.u32 %v1690, 7
        %v1692 = vsub.s32 %v1689, %v1691
        %v1693 = vrot.slane %v1686, %v1692
        %v1694 = vcombine.low %v1666, %v1673
        %v1696 = vunpack.c.l.s4 1983009808
        %v1697 = vunpack.c.0.s8 %v1696
        %v1698 = vlaneseq
        %v1699 = vshrl.u32 %v1698, 7
        %v1700 = vsub.s32 %v1697, %v1699
        %v1701 = vrot.slane %v1694, %v1700
        %v1702 = vcombine.low %v1676, %v1677
        %v1704 = vunpack.c.l.s4 1983009808
        %v1705 = vunpack.c.0.s8 %v1704
        %v1706 = vlaneseq
        %v1707 = vshrl.u32 %v1706, 7
        %v1708 = vsub.s32 %v1705, %v1707
        %v1709 = vrot.slane %v1702, %v1708
        %v1710 = vcombine.low %v1685, %v1693
        %v1711 = vcombine.high %v1685, %v1693
        %v1713 = vunpack.c.l.s4 1934713408
        %v1714 = vunpack.c.0.s8 %v1713
        %v1715 = vlaneseq
        %v1716 = vshrl.u32 %v1715, 7
        %v1717 = vsub.s32 %v1714, %v1716
        %v1718 = vrot.slane %v1710, %v1717
        %v1720 = vunpack.c.l.s4 1934713408
        %v1721 = vunpack.c.0.s8 %v1720
        %v1722 = vlaneseq
        %v1723 = vshrl.u32 %v1722, 7
        %v1724 = vsub.s32 %v1721, %v1723
        %v1725 = vrot.slane %v1711, %v1724
        %v1726 = vcombine.low %v1701, %v1709
        %v1727 = vcombine.high %v1701, %v1709
        %v1729 = vunpack.c.l.s4 1934713408
        %v1730 = vunpack.c.0.s8 %v1729
        %v1731 = vlaneseq
        %v1732 = vshrl.u32 %v1731, 7
        %v1733 = vsub.s32 %v1730, %v1732
        %v1734 = vrot.slane %v1726, %v1733
        %v1736 = vunpack.c.l.s4 1934713408
        %v1737 = vunpack.c.0.s8 %v1736
        %v1738 = vlaneseq
        %v1739 = vshrl.u32 %v1738, 7
        %v1740 = vsub.s32 %v1737, %v1739
        %v1741 = vrot.slane %v1727, %v1740
        %v1742 = vcombine.low %v1718, %v1734
        %v1743 = vcombine.high %v1718, %v1734
        %v1744 = vcombine.low %v1725, %v1741
        %v1745 = vcombine.high %v1725, %v1741
        %1747 = vrot.lane.b32.xlu0 %v1547, 120
        %v1748 = vpop.permute.xlu0 %1747
        %1750 = vrot.lane.b32.xlu0 %v1547, 112
        %v1751 = vpop.permute.xlu0 %1750
        %1753 = vrot.lane.b32.xlu0 %v1547, 104
        %v1754 = vpop.permute.xlu0 %1753
        %v1756 = vcombine.low %v1547, %v1751
        %v1757 = vcombine.high %v1547, %v1751
        %v1759 = vunpack.c.l.s4 1983009808
        %v1760 = vunpack.c.0.s8 %v1759
        %v1761 = vlaneseq
        %v1762 = vshrl.u32 %v1761, 7
        %v1763 = vsub.s32 %v1760, %v1762
        %v1764 = vrot.slane %v1756, %v1763
        %v1766 = vunpack.c.l.s4 1983009808
        %v1767 = vunpack.c.0.s8 %v1766
        %v1768 = vlaneseq
        %v1769 = vshrl.u32 %v1768, 7
        %v1770 = vsub.s32 %v1767, %v1769
        %v1771 = vrot.slane %v1757, %v1770
        %v1772 = vcombine.low %v1748, %v1754
        %v1773 = vcombine.high %v1748, %v1754
        %v1775 = vunpack.c.l.s4 1983009808
        %v1776 = vunpack.c.0.s8 %v1775
        %v1777 = vlaneseq
        %v1778 = vshrl.u32 %v1777, 7
        %v1779 = vsub.s32 %v1776, %v1778
        %v1780 = vrot.slane %v1772, %v1779
        %v1782 = vunpack.c.l.s4 1983009808
        %v1783 = vunpack.c.0.s8 %v1782
        %v1784 = vlaneseq
        %v1785 = vshrl.u32 %v1784, 7
        %v1786 = vsub.s32 %v1783, %v1785
        %v1787 = vrot.slane %v1773, %v1786
        %v1788 = vcombine.low %v1764, %v1780
        %v1789 = vcombine.high %v1764, %v1780
        %v1791 = vunpack.c.l.s4 1934713408
        %v1792 = vunpack.c.0.s8 %v1791
        %v1793 = vlaneseq
        %v1794 = vshrl.u32 %v1793, 7
        %v1795 = vsub.s32 %v1792, %v1794
        %v1796 = vrot.slane %v1788, %v1795
        %v1798 = vunpack.c.l.s4 1934713408
        %v1799 = vunpack.c.0.s8 %v1798
        %v1800 = vlaneseq
        %v1801 = vshrl.u32 %v1800, 7
        %v1802 = vsub.s32 %v1799, %v1801
        %v1803 = vrot.slane %v1789, %v1802
        %v1804 = vcombine.low %v1771, %v1787
        %v1805 = vcombine.high %v1771, %v1787
        %v1807 = vunpack.c.l.s4 1934713408
        %v1808 = vunpack.c.0.s8 %v1807
        %v1809 = vlaneseq
        %v1810 = vshrl.u32 %v1809, 7
        %v1811 = vsub.s32 %v1808, %v1810
        %v1812 = vrot.slane %v1804, %v1811
        %v1814 = vunpack.c.l.s4 1934713408
        %v1815 = vunpack.c.0.s8 %v1814
        %v1816 = vlaneseq
        %v1817 = vshrl.u32 %v1816, 7
        %v1818 = vsub.s32 %v1815, %v1817
        %v1819 = vrot.slane %v1805, %v1818
        %v1820 = vcombine.high %v1796, 0.0
        %v1821 = vcombine.high %v1803, 0.0
        %v1822 = vcombine.high %v1812, 0.0
        %v1823 = vcombine.high %v1819, 0.0
        %v1824 = vcombine.low %v1796, %v1803
        %v1826 = vunpack.c.l.s4 1983009808
        %v1827 = vunpack.c.0.s8 %v1826
        %v1828 = vlaneseq
        %v1829 = vshrl.u32 %v1828, 7
        %v1830 = vsub.s32 %v1827, %v1829
        %v1831 = vrot.slane %v1824, %v1830
        %v1832 = vcombine.low %v1820, %v1821
        %v1834 = vunpack.c.l.s4 1983009808
        %v1835 = vunpack.c.0.s8 %v1834
        %v1836 = vlaneseq
        %v1837 = vshrl.u32 %v1836, 7
        %v1838 = vsub.s32 %v1835, %v1837
        %v1839 = vrot.slane %v1832, %v1838
        %v1840 = vcombine.low %v1812, %v1819
        %v1842 = vunpack.c.l.s4 1983009808
        %v1843 = vunpack.c.0.s8 %v1842
        %v1844 = vlaneseq
        %v1845 = vshrl.u32 %v1844, 7
        %v1846 = vsub.s32 %v1843, %v1845
        %v1847 = vrot.slane %v1840, %v1846
        %v1848 = vcombine.low %v1822, %v1823
        %v1850 = vunpack.c.l.s4 1983009808
        %v1851 = vunpack.c.0.s8 %v1850
        %v1852 = vlaneseq
        %v1853 = vshrl.u32 %v1852, 7
        %v1854 = vsub.s32 %v1851, %v1853
        %v1855 = vrot.slane %v1848, %v1854
        %v1856 = vcombine.low %v1831, %v1839
        %v1857 = vcombine.high %v1831, %v1839
        %v1859 = vunpack.c.l.s4 1934713408
        %v1860 = vunpack.c.0.s8 %v1859
        %v1861 = vlaneseq
        %v1862 = vshrl.u32 %v1861, 7
        %v1863 = vsub.s32 %v1860, %v1862
        %v1864 = vrot.slane %v1856, %v1863
        %v1866 = vunpack.c.l.s4 1934713408
        %v1867 = vunpack.c.0.s8 %v1866
        %v1868 = vlaneseq
        %v1869 = vshrl.u32 %v1868, 7
        %v1870 = vsub.s32 %v1867, %v1869
        %v1871 = vrot.slane %v1857, %v1870
        %v1872 = vcombine.low %v1847, %v1855
        %v1873 = vcombine.high %v1847, %v1855
        %v1875 = vunpack.c.l.s4 1934713408
        %v1876 = vunpack.c.0.s8 %v1875
        %v1877 = vlaneseq
        %v1878 = vshrl.u32 %v1877, 7
        %v1879 = vsub.s32 %v1876, %v1878
        %v1880 = vrot.slane %v1872, %v1879
        %v1882 = vunpack.c.l.s4 1934713408
        %v1883 = vunpack.c.0.s8 %v1882
        %v1884 = vlaneseq
        %v1885 = vshrl.u32 %v1884, 7
        %v1886 = vsub.s32 %v1883, %v1885
        %v1887 = vrot.slane %v1873, %v1886
        %v1888 = vcombine.low %v1864, %v1880
        %v1889 = vcombine.high %v1864, %v1880
        %v1890 = vcombine.low %v1871, %v1887
        %v1891 = vcombine.high %v1871, %v1887
        %1893 = vrot.lane.b32.xlu0 %v1595, 120
        %v1894 = vpop.permute.xlu0 %1893
        %1896 = vrot.lane.b32.xlu0 %v1595, 112
        %v1897 = vpop.permute.xlu0 %1896
        %1899 = vrot.lane.b32.xlu0 %v1595, 104
        %v1900 = vpop.permute.xlu0 %1899
        %v1902 = vcombine.low %v1595, %v1897
        %v1903 = vcombine.high %v1595, %v1897
        %v1905 = vunpack.c.l.s4 1983009808
        %v1906 = vunpack.c.0.s8 %v1905
        %v1907 = vlaneseq
        %v1908 = vshrl.u32 %v1907, 7
        %v1909 = vsub.s32 %v1906, %v1908
        %v1910 = vrot.slane %v1902, %v1909
        %v1912 = vunpack.c.l.s4 1983009808
        %v1913 = vunpack.c.0.s8 %v1912
        %v1914 = vlaneseq
        %v1915 = vshrl.u32 %v1914, 7
        %v1916 = vsub.s32 %v1913, %v1915
        %v1917 = vrot.slane %v1903, %v1916
        %v1918 = vcombine.low %v1894, %v1900
        %v1919 = vcombine.high %v1894, %v1900
        %v1921 = vunpack.c.l.s4 1983009808
        %v1922 = vunpack.c.0.s8 %v1921
        %v1923 = vlaneseq
        %v1924 = vshrl.u32 %v1923, 7
        %v1925 = vsub.s32 %v1922, %v1924
        %v1926 = vrot.slane %v1918, %v1925
        %v1928 = vunpack.c.l.s4 1983009808
        %v1929 = vunpack.c.0.s8 %v1928
        %v1930 = vlaneseq
        %v1931 = vshrl.u32 %v1930, 7
        %v1932 = vsub.s32 %v1929, %v1931
        %v1933 = vrot.slane %v1919, %v1932
        %v1934 = vcombine.low %v1910, %v1926
        %v1935 = vcombine.high %v1910, %v1926
        %v1937 = vunpack.c.l.s4 1934713408
        %v1938 = vunpack.c.0.s8 %v1937
        %v1939 = vlaneseq
        %v1940 = vshrl.u32 %v1939, 7
        %v1941 = vsub.s32 %v1938, %v1940
        %v1942 = vrot.slane %v1934, %v1941
        %v1944 = vunpack.c.l.s4 1934713408
        %v1945 = vunpack.c.0.s8 %v1944
        %v1946 = vlaneseq
        %v1947 = vshrl.u32 %v1946, 7
        %v1948 = vsub.s32 %v1945, %v1947
        %v1949 = vrot.slane %v1935, %v1948
        %v1950 = vcombine.low %v1917, %v1933
        %v1951 = vcombine.high %v1917, %v1933
        %v1953 = vunpack.c.l.s4 1934713408
        %v1954 = vunpack.c.0.s8 %v1953
        %v1955 = vlaneseq
        %v1956 = vshrl.u32 %v1955, 7
        %v1957 = vsub.s32 %v1954, %v1956
        %v1958 = vrot.slane %v1950, %v1957
        %v1960 = vunpack.c.l.s4 1934713408
        %v1961 = vunpack.c.0.s8 %v1960
        %v1962 = vlaneseq
        %v1963 = vshrl.u32 %v1962, 7
        %v1964 = vsub.s32 %v1961, %v1963
        %v1965 = vrot.slane %v1951, %v1964
        %v1966 = vcombine.high %v1942, 0.0
        %v1967 = vcombine.high %v1949, 0.0
        %v1968 = vcombine.high %v1958, 0.0
        %v1969 = vcombine.high %v1965, 0.0
        %v1970 = vcombine.low %v1942, %v1949
        %v1972 = vunpack.c.l.s4 1983009808
        %v1973 = vunpack.c.0.s8 %v1972
        %v1974 = vlaneseq
        %v1975 = vshrl.u32 %v1974, 7
        %v1976 = vsub.s32 %v1973, %v1975
        %v1977 = vrot.slane %v1970, %v1976
        %v1978 = vcombine.low %v1966, %v1967
        %v1980 = vunpack.c.l.s4 1983009808
        %v1981 = vunpack.c.0.s8 %v1980
        %v1982 = vlaneseq
        %v1983 = vshrl.u32 %v1982, 7
        %v1984 = vsub.s32 %v1981, %v1983
        %v1985 = vrot.slane %v1978, %v1984
        %v1986 = vcombine.low %v1958, %v1965
        %v1988 = vunpack.c.l.s4 1983009808
        %v1989 = vunpack.c.0.s8 %v1988
        %v1990 = vlaneseq
        %v1991 = vshrl.u32 %v1990, 7
        %v1992 = vsub.s32 %v1989, %v1991
        %v1993 = vrot.slane %v1986, %v1992
        %v1994 = vcombine.low %v1968, %v1969
        %v1996 = vunpack.c.l.s4 1983009808
        %v1997 = vunpack.c.0.s8 %v1996
        %v1998 = vlaneseq
        %v1999 = vshrl.u32 %v1998, 7
        %v2000 = vsub.s32 %v1997, %v1999
        %v2001 = vrot.slane %v1994, %v2000
        %v2002 = vcombine.low %v1977, %v1985
        %v2003 = vcombine.high %v1977, %v1985
        %v2005 = vunpack.c.l.s4 1934713408
        %v2006 = vunpack.c.0.s8 %v2005
        %v2007 = vlaneseq
        %v2008 = vshrl.u32 %v2007, 7
        %v2009 = vsub.s32 %v2006, %v2008
        %v2010 = vrot.slane %v2002, %v2009
        %v2012 = vunpack.c.l.s4 1934713408
        %v2013 = vunpack.c.0.s8 %v2012
        %v2014 = vlaneseq
        %v2015 = vshrl.u32 %v2014, 7
        %v2016 = vsub.s32 %v2013, %v2015
        %v2017 = vrot.slane %v2003, %v2016
        %v2018 = vcombine.low %v1993, %v2001
        %v2019 = vcombine.high %v1993, %v2001
        %v2021 = vunpack.c.l.s4 1934713408
        %v2022 = vunpack.c.0.s8 %v2021
        %v2023 = vlaneseq
        %v2024 = vshrl.u32 %v2023, 7
        %v2025 = vsub.s32 %v2022, %v2024
        %v2026 = vrot.slane %v2018, %v2025
        %v2028 = vunpack.c.l.s4 1934713408
        %v2029 = vunpack.c.0.s8 %v2028
        %v2030 = vlaneseq
        %v2031 = vshrl.u32 %v2030, 7
        %v2032 = vsub.s32 %v2029, %v2031
        %v2033 = vrot.slane %v2019, %v2032
        %v2034 = vcombine.low %v2010, %v2026
        %v2035 = vcombine.high %v2010, %v2026
        %v2036 = vcombine.low %v2017, %v2033
        %v2037 = vcombine.high %v2017, %v2033
        %v2038 = vpack.c.bf16 %v1742, %v1742
        %v2039 = vpack.c.bf16 %v1743, %v1743
        %v2040 = vpack.c.bf16 %v1744, %v1744
        %v2041 = vpack.c.bf16 %v1745, %v1745
        %v2042 = vpack.c.bf16 %v1888, %v1888
        %v2043 = vpack.c.bf16 %v1889, %v1889
        %v2044 = vpack.c.bf16 %v1890, %v1890
        %v2045 = vpack.c.bf16 %v1891, %v1891
        %vm2046 = vcmask 64512
        %v2048 = vsel %vm2046, %v2038, 0
        %v2051 = vsel %vm2046, %v2042, 0
        %2053 = vmatprep.subr.bf16.mxu0 0
        %2054 = vmatpush1.bf16.xpose.msra.mxu0 %v2051
        %2055 = vmatprep.subr.bf16.mxu0 0
        %2056 = vmatpush1.bf16.xpose.msra.mxu0 0
        %2057 = vmatprep.subr.bf16.mxu0 0
        %2058 = vmatpush1.bf16.xpose.msra.mxu0 0
        %2059 = vmatprep.subr.bf16.mxu0 0
        %2060 = vmatpush1.bf16.xpose.msra.mxu0 0
        %2061 = vmatprep.subr.bf16.mxu0 0
        %2062 = vmatpush1.bf16.xpose.msra.mxu0 0
        %2063 = vmatprep.subr.bf16.mxu0 0
        %2064 = vmatpush1.bf16.xpose.msra.mxu0 0
        %2065 = vmatprep.subr.bf16.mxu0 0
        %2066 = vmatpush1.bf16.xpose.msra.mxu0 0
        %2067 = vmatprep.subr.bf16.mxu0 0
        %2068 = vmatpush1.bf16.xpose.msra.mxu0 0
        %2069 = vmatprep.subr.bf16.mxu0 0
        %2070 = vmatpush1.bf16.xpose.msra.mxu0 0
        %2071 = vmatprep.subr.bf16.mxu0 0
        %2072 = vmatpush1.bf16.xpose.msra.mxu0 0
        %2073 = vmatprep.subr.bf16.mxu0 0
        %2074 = vmatpush1.bf16.xpose.msra.mxu0 0
        %2075 = vmatprep.subr.bf16.mxu0 0
        %2076 = vmatpush1.bf16.xpose.msra.mxu0 0
        %2077 = vmatprep.subr.bf16.mxu0 0
        %2078 = vmatpush1.bf16.xpose.msra.mxu0 0
        %2079 = vmatprep.subr.bf16.mxu0 0
        %2080 = vmatpush1.bf16.xpose.msra.mxu0 0
        %2081 = vmatprep.subr.bf16.mxu0 0
        %2082 = vmatpush1.bf16.xpose.msra.mxu0 0
        %2083 = vmatprep.subr.bf16.mxu0 0
        %2084 = vmatpush1.bf16.xpose.msra.mxu0 0
        %2085 = vmatprep.mubr.bf16.mxu0 0
        %2086 = vmatmul.mubr.bf16.gmra.mrb[0].mxu0 %v2048
        %v2087 = vpop.f32.mrb[0].mxu0
        %v2088 = vadd.f32 0.0, %v2087
        %v2089 = vpop.f32.mrb[0].mxu0
        %v2090 = vpop.f32.mrb[0].mxu0
        %v2091 = vpop.f32.mrb[0].mxu0
        %2092 = vdwg.mxu0
        %v2094 = vsel %vm2046, %v2039, 0
        %v2097 = vsel %vm2046, %v2043, 0
        %2099 = vmatprep.subr.bf16.mxu0 0
        %2100 = vmatpush1.bf16.xpose.msra.mxu0 %v2097
        %2101 = vmatprep.subr.bf16.mxu0 0
        %2102 = vmatpush1.bf16.xpose.msra.mxu0 0
        %2103 = vmatprep.subr.bf16.mxu0 0
        %2104 = vmatpush1.bf16.xpose.msra.mxu0 0
        %2105 = vmatprep.subr.bf16.mxu0 0
        %2106 = vmatpush1.bf16.xpose.msra.mxu0 0
        %2107 = vmatprep.subr.bf16.mxu0 0
        %2108 = vmatpush1.bf16.xpose.msra.mxu0 0
        %2109 = vmatprep.subr.bf16.mxu0 0
        %2110 = vmatpush1.bf16.xpose.msra.mxu0 0
        %2111 = vmatprep.subr.bf16.mxu0 0
        %2112 = vmatpush1.bf16.xpose.msra.mxu0 0
        %2113 = vmatprep.subr.bf16.mxu0 0
        %2114 = vmatpush1.bf16.xpose.msra.mxu0 0
        %2115 = vmatprep.subr.bf16.mxu0 0
        %2116 = vmatpush1.bf16.xpose.msra.mxu0 0
        %2117 = vmatprep.subr.bf16.mxu0 0
        %2118 = vmatpush1.bf16.xpose.msra.mxu0 0
        %2119 = vmatprep.subr.bf16.mxu0 0
        %2120 = vmatpush1.bf16.xpose.msra.mxu0 0
        %2121 = vmatprep.subr.bf16.mxu0 0
        %2122 = vmatpush1.bf16.xpose.msra.mxu0 0
        %2123 = vmatprep.subr.bf16.mxu0 0
        %2124 = vmatpush1.bf16.xpose.msra.mxu0 0
        %2125 = vmatprep.subr.bf16.mxu0 0
        %2126 = vmatpush1.bf16.xpose.msra.mxu0 0
        %2127 = vmatprep.subr.bf16.mxu0 0
        %2128 = vmatpush1.bf16.xpose.msra.mxu0 0
        %2129 = vmatprep.subr.bf16.mxu0 0
        %2130 = vmatpush1.bf16.xpose.msra.mxu0 0
        %2131 = vmatprep.mubr.bf16.mxu0 0
        %2132 = vmatmul.mubr.bf16.gmra.mrb[0].mxu0 %v2094
        %v2133 = vpop.f32.mrb[0].mxu0
        %v2134 = vadd.f32 0.0, %v2133
        %v2135 = vpop.f32.mrb[0].mxu0
        %v2136 = vpop.f32.mrb[0].mxu0
        %v2137 = vpop.f32.mrb[0].mxu0
        %2138 = vdwg.mxu0
        %v2140 = vsel %vm2046, %v2040, 0
        %v2143 = vsel %vm2046, %v2044, 0
        %2145 = vmatprep.subr.bf16.mxu0 0
        %2146 = vmatpush1.bf16.xpose.msra.mxu0 %v2143
        %2147 = vmatprep.subr.bf16.mxu0 0
        %2148 = vmatpush1.bf16.xpose.msra.mxu0 0
        %2149 = vmatprep.subr.bf16.mxu0 0
        %2150 = vmatpush1.bf16.xpose.msra.mxu0 0
        %2151 = vmatprep.subr.bf16.mxu0 0
        %2152 = vmatpush1.bf16.xpose.msra.mxu0 0
        %2153 = vmatprep.subr.bf16.mxu0 0
        %2154 = vmatpush1.bf16.xpose.msra.mxu0 0
        %2155 = vmatprep.subr.bf16.mxu0 0
        %2156 = vmatpush1.bf16.xpose.msra.mxu0 0
        %2157 = vmatprep.subr.bf16.mxu0 0
        %2158 = vmatpush1.bf16.xpose.msra.mxu0 0
        %2159 = vmatprep.subr.bf16.mxu0 0
        %2160 = vmatpush1.bf16.xpose.msra.mxu0 0
        %2161 = vmatprep.subr.bf16.mxu0 0
        %2162 = vmatpush1.bf16.xpose.msra.mxu0 0
        %2163 = vmatprep.subr.bf16.mxu0 0
        %2164 = vmatpush1.bf16.xpose.msra.mxu0 0
        %2165 = vmatprep.subr.bf16.mxu0 0
        %2166 = vmatpush1.bf16.xpose.msra.mxu0 0
        %2167 = vmatprep.subr.bf16.mxu0 0
        %2168 = vmatpush1.bf16.xpose.msra.mxu0 0
        %2169 = vmatprep.subr.bf16.mxu0 0
        %2170 = vmatpush1.bf16.xpose.msra.mxu0 0
        %2171 = vmatprep.subr.bf16.mxu0 0
        %2172 = vmatpush1.bf16.xpose.msra.mxu0 0
        %2173 = vmatprep.subr.bf16.mxu0 0
        %2174 = vmatpush1.bf16.xpose.msra.mxu0 0
        %2175 = vmatprep.subr.bf16.mxu0 0
        %2176 = vmatpush1.bf16.xpose.msra.mxu0 0
        %2177 = vmatprep.mubr.bf16.mxu0 0
        %2178 = vmatmul.mubr.bf16.gmra.mrb[0].mxu0 %v2140
        %v2179 = vpop.f32.mrb[0].mxu0
        %v2180 = vadd.f32 0.0, %v2179
        %v2181 = vpop.f32.mrb[0].mxu0
        %v2182 = vpop.f32.mrb[0].mxu0
        %v2183 = vpop.f32.mrb[0].mxu0
        %2184 = vdwg.mxu0
        %v2186 = vsel %vm2046, %v2041, 0
        %v2189 = vsel %vm2046, %v2045, 0
        %2191 = vmatprep.subr.bf16.mxu0 0
        %2192 = vmatpush1.bf16.xpose.msra.mxu0 %v2189
        %2193 = vmatprep.subr.bf16.mxu0 0
        %2194 = vmatpush1.bf16.xpose.msra.mxu0 0
        %2195 = vmatprep.subr.bf16.mxu0 0
        %2196 = vmatpush1.bf16.xpose.msra.mxu0 0
        %2197 = vmatprep.subr.bf16.mxu0 0
        %2198 = vmatpush1.bf16.xpose.msra.mxu0 0
        %2199 = vmatprep.subr.bf16.mxu0 0
        %2200 = vmatpush1.bf16.xpose.msra.mxu0 0
        %2201 = vmatprep.subr.bf16.mxu0 0
        %2202 = vmatpush1.bf16.xpose.msra.mxu0 0
        %2203 = vmatprep.subr.bf16.mxu0 0
        %2204 = vmatpush1.bf16.xpose.msra.mxu0 0
        %2205 = vmatprep.subr.bf16.mxu0 0
        %2206 = vmatpush1.bf16.xpose.msra.mxu0 0
        %2207 = vmatprep.subr.bf16.mxu0 0
        %2208 = vmatpush1.bf16.xpose.msra.mxu0 0
        %2209 = vmatprep.subr.bf16.mxu0 0
        %2210 = vmatpush1.bf16.xpose.msra.mxu0 0
        %2211 = vmatprep.subr.bf16.mxu0 0
        %2212 = vmatpush1.bf16.xpose.msra.mxu0 0
        %2213 = vmatprep.subr.bf16.mxu0 0
        %2214 = vmatpush1.bf16.xpose.msra.mxu0 0
        %2215 = vmatprep.subr.bf16.mxu0 0
        %2216 = vmatpush1.bf16.xpose.msra.mxu0 0
        %2217 = vmatprep.subr.bf16.mxu0 0
        %2218 = vmatpush1.bf16.xpose.msra.mxu0 0
        %2219 = vmatprep.subr.bf16.mxu0 0
        %2220 = vmatpush1.bf16.xpose.msra.mxu0 0
        %2221 = vmatprep.subr.bf16.mxu0 0
        %2222 = vmatpush1.bf16.xpose.msra.mxu0 0
        %2223 = vmatprep.mubr.bf16.mxu0 0
        %2224 = vmatmul.mubr.bf16.gmra.mrb[0].mxu0 %v2186
        %v2225 = vpop.f32.mrb[0].mxu0
        %v2226 = vadd.f32 0.0, %v2225
        %v2227 = vpop.f32.mrb[0].mxu0
        %v2228 = vpop.f32.mrb[0].mxu0
        %v2229 = vpop.f32.mrb[0].mxu0
        %2230 = vdwg.mxu0
        %v2231 = vmul.f32 %v2088, 0.35355338
        %v2232 = vmul.f32 %v2134, 0.35355338
        %v2233 = vmul.f32 %v2180, 0.35355338
        %v2234 = vmul.f32 %v2226, 0.35355338
        %v2235 = vsel %vm2046, %v2231, -inf
        %2236 = vmax.xlane.f32.xlu0 %v2235
        %v2237 = vpop.xlane.xlu0 %2236
        %v2238 = vsel %vm2046, %v2232, -inf
        %2239 = vmax.xlane.f32.xlu0 %v2238
        %v2240 = vpop.xlane.xlu0 %2239
        %v2241 = vsel %vm2046, %v2233, -inf
        %2242 = vmax.xlane.f32.xlu0 %v2241
        %v2243 = vpop.xlane.xlu0 %2242
        %v2244 = vsel %vm2046, %v2234, -inf
        %2245 = vmax.xlane.f32.xlu0 %v2244
        %v2246 = vpop.xlane.xlu0 %2245
        %v2247 = vsub.f32 %v2231, %v2237
        %v2248 = vsub.f32 %v2232, %v2240
        %v2249 = vsub.f32 %v2233, %v2243
        %v2250 = vsub.f32 %v2234, %v2246
        %v2251 = vmul.f32 %v2247, 1.442695
        %v2252 = vpow.pop %v2251
        %v2253 = vmul.f32 %v2248, 1.442695
        %v2254 = vpow.pop %v2253
        %v2255 = vmul.f32 %v2249, 1.442695
        %v2256 = vpow.pop %v2255
        %v2257 = vmul.f32 %v2250, 1.442695
        %v2258 = vpow.pop %v2257
        %v2259 = vsel %vm2046, %v2252, 0.0
        %2260 = vadd.xlane.f32.xlu0 %v2259
        %v2261 = vpop.xlane.xlu0 %2260
        %v2262 = vsel %vm2046, %v2254, 0.0
        %2263 = vadd.xlane.f32.xlu0 %v2262
        %v2264 = vpop.xlane.xlu0 %2263
        %v2265 = vsel %vm2046, %v2256, 0.0
        %2266 = vadd.xlane.f32.xlu0 %v2265
        %v2267 = vpop.xlane.xlu0 %2266
        %v2268 = vsel %vm2046, %v2258, 0.0
        %2269 = vadd.xlane.f32.xlu0 %v2268
        %v2270 = vpop.xlane.xlu0 %2269
        %v2271 = vrcp.pop %v2261
        %v2272 = vrcp.pop %v2264
        %v2273 = vrcp.pop %v2267
        %v2274 = vrcp.pop %v2270
        %v2275 = vmul.f32 %v2252, %v2271
        %v2276 = vmul.f32 %v2254, %v2272
        %v2277 = vmul.f32 %v2256, %v2273
        %v2278 = vmul.f32 %v2258, %v2274
        %v2279 = vpack.c.bf16 %v2275, %v2275
        %v2280 = vpack.c.bf16 %v2276, %v2276
        %v2281 = vpack.c.bf16 %v2277, %v2277
        %v2282 = vpack.c.bf16 %v2278, %v2278
        %v2283 = vpack.c.bf16 %v2034, %v2034
        %v2284 = vpack.c.bf16 %v2035, %v2035
        %v2285 = vpack.c.bf16 %v2036, %v2036
        %v2286 = vpack.c.bf16 %v2037, %v2037
        %v2288 = vsel %vm2046, %v2279, 0
        %vm2290 = vcmask 1043456
        %v2292 = vsel %vm2290, %v2283, 0
        %2294 = vmatprep.subr.bf16.mxu0 0
        %2295 = vmatpush1.bf16.msra.mxu0 %v2292
        %2296 = vmatprep.subr.bf16.mxu0 0
        %2297 = vmatpush1.bf16.msra.mxu0 0
        %2298 = vmatprep.subr.bf16.mxu0 0
        %2299 = vmatpush1.bf16.msra.mxu0 0
        %2300 = vmatprep.subr.bf16.mxu0 0
        %2301 = vmatpush1.bf16.msra.mxu0 0
        %2302 = vmatprep.subr.bf16.mxu0 0
        %2303 = vmatpush1.bf16.msra.mxu0 0
        %2304 = vmatprep.subr.bf16.mxu0 0
        %2305 = vmatpush1.bf16.msra.mxu0 0
        %2306 = vmatprep.subr.bf16.mxu0 0
        %2307 = vmatpush1.bf16.msra.mxu0 0
        %2308 = vmatprep.subr.bf16.mxu0 0
        %2309 = vmatpush1.bf16.msra.mxu0 0
        %2310 = vmatprep.subr.bf16.mxu0 0
        %2311 = vmatpush1.bf16.msra.mxu0 0
        %2312 = vmatprep.subr.bf16.mxu0 0
        %2313 = vmatpush1.bf16.msra.mxu0 0
        %2314 = vmatprep.subr.bf16.mxu0 0
        %2315 = vmatpush1.bf16.msra.mxu0 0
        %2316 = vmatprep.subr.bf16.mxu0 0
        %2317 = vmatpush1.bf16.msra.mxu0 0
        %2318 = vmatprep.subr.bf16.mxu0 0
        %2319 = vmatpush1.bf16.msra.mxu0 0
        %2320 = vmatprep.subr.bf16.mxu0 0
        %2321 = vmatpush1.bf16.msra.mxu0 0
        %2322 = vmatprep.subr.bf16.mxu0 0
        %2323 = vmatpush1.bf16.msra.mxu0 0
        %2324 = vmatprep.subr.bf16.mxu0 0
        %2325 = vmatpush1.bf16.msra.mxu0 0
        %2326 = vmatprep.mubr.bf16.mxu0 0
        %2327 = vmatmul.mubr.bf16.gmra.mrb[0].mxu0 %v2288
        %v2328 = vpop.f32.mrb[0].mxu0
        %v2329 = vadd.f32 0.0, %v2328
        %v2330 = vpop.f32.mrb[0].mxu0
        %v2331 = vpop.f32.mrb[0].mxu0
        %v2332 = vpop.f32.mrb[0].mxu0
        %2333 = vdwg.mxu0
        %v2335 = vsel %vm2046, %v2280, 0
        %v2338 = vsel %vm2290, %v2284, 0
        %2340 = vmatprep.subr.bf16.mxu0 0
        %2341 = vmatpush1.bf16.msra.mxu0 %v2338
        %2342 = vmatprep.subr.bf16.mxu0 0
        %2343 = vmatpush1.bf16.msra.mxu0 0
        %2344 = vmatprep.subr.bf16.mxu0 0
        %2345 = vmatpush1.bf16.msra.mxu0 0
        %2346 = vmatprep.subr.bf16.mxu0 0
        %2347 = vmatpush1.bf16.msra.mxu0 0
        %2348 = vmatprep.subr.bf16.mxu0 0
        %2349 = vmatpush1.bf16.msra.mxu0 0
        %2350 = vmatprep.subr.bf16.mxu0 0
        %2351 = vmatpush1.bf16.msra.mxu0 0
        %2352 = vmatprep.subr.bf16.mxu0 0
        %2353 = vmatpush1.bf16.msra.mxu0 0
        %2354 = vmatprep.subr.bf16.mxu0 0
        %2355 = vmatpush1.bf16.msra.mxu0 0
        %2356 = vmatprep.subr.bf16.mxu0 0
        %2357 = vmatpush1.bf16.msra.mxu0 0
        %2358 = vmatprep.subr.bf16.mxu0 0
        %2359 = vmatpush1.bf16.msra.mxu0 0
        %2360 = vmatprep.subr.bf16.mxu0 0
        %2361 = vmatpush1.bf16.msra.mxu0 0
        %2362 = vmatprep.subr.bf16.mxu0 0
        %2363 = vmatpush1.bf16.msra.mxu0 0
        %2364 = vmatprep.subr.bf16.mxu0 0
        %2365 = vmatpush1.bf16.msra.mxu0 0
        %2366 = vmatprep.subr.bf16.mxu0 0
        %2367 = vmatpush1.bf16.msra.mxu0 0
        %2368 = vmatprep.subr.bf16.mxu0 0
        %2369 = vmatpush1.bf16.msra.mxu0 0
        %2370 = vmatprep.subr.bf16.mxu0 0
        %2371 = vmatpush1.bf16.msra.mxu0 0
        %2372 = vmatprep.mubr.bf16.mxu0 0
        %2373 = vmatmul.mubr.bf16.gmra.mrb[0].mxu0 %v2335
        %v2374 = vpop.f32.mrb[0].mxu0
        %v2375 = vadd.f32 0.0, %v2374
        %v2376 = vpop.f32.mrb[0].mxu0
        %v2377 = vpop.f32.mrb[0].mxu0
        %v2378 = vpop.f32.mrb[0].mxu0
        %2379 = vdwg.mxu0
        %v2381 = vsel %vm2046, %v2281, 0
        %v2384 = vsel %vm2290, %v2285, 0
        %2386 = vmatprep.subr.bf16.mxu0 0
        %2387 = vmatpush1.bf16.msra.mxu0 %v2384
        %2388 = vmatprep.subr.bf16.mxu0 0
        %2389 = vmatpush1.bf16.msra.mxu0 0
        %2390 = vmatprep.subr.bf16.mxu0 0
        %2391 = vmatpush1.bf16.msra.mxu0 0
        %2392 = vmatprep.subr.bf16.mxu0 0
        %2393 = vmatpush1.bf16.msra.mxu0 0
        %2394 = vmatprep.subr.bf16.mxu0 0
        %2395 = vmatpush1.bf16.msra.mxu0 0
        %2396 = vmatprep.subr.bf16.mxu0 0
        %2397 = vmatpush1.bf16.msra.mxu0 0
        %2398 = vmatprep.subr.bf16.mxu0 0
        %2399 = vmatpush1.bf16.msra.mxu0 0
        %2400 = vmatprep.subr.bf16.mxu0 0
        %2401 = vmatpush1.bf16.msra.mxu0 0
        %2402 = vmatprep.subr.bf16.mxu0 0
        %2403 = vmatpush1.bf16.msra.mxu0 0
        %2404 = vmatprep.subr.bf16.mxu0 0
        %2405 = vmatpush1.bf16.msra.mxu0 0
        %2406 = vmatprep.subr.bf16.mxu0 0
        %2407 = vmatpush1.bf16.msra.mxu0 0
        %2408 = vmatprep.subr.bf16.mxu0 0
        %2409 = vmatpush1.bf16.msra.mxu0 0
        %2410 = vmatprep.subr.bf16.mxu0 0
        %2411 = vmatpush1.bf16.msra.mxu0 0
        %2412 = vmatprep.subr.bf16.mxu0 0
        %2413 = vmatpush1.bf16.msra.mxu0 0
        %2414 = vmatprep.subr.bf16.mxu0 0
        %2415 = vmatpush1.bf16.msra.mxu0 0
        %2416 = vmatprep.subr.bf16.mxu0 0
        %2417 = vmatpush1.bf16.msra.mxu0 0
        %2418 = vmatprep.mubr.bf16.mxu0 0
        %2419 = vmatmul.mubr.bf16.gmra.mrb[0].mxu0 %v2381
        %v2420 = vpop.f32.mrb[0].mxu0
        %v2421 = vadd.f32 0.0, %v2420
        %v2422 = vpop.f32.mrb[0].mxu0
        %v2423 = vpop.f32.mrb[0].mxu0
        %v2424 = vpop.f32.mrb[0].mxu0
        %2425 = vdwg.mxu0
        %v2427 = vsel %vm2046, %v2282, 0
        %v2430 = vsel %vm2290, %v2286, 0
        %2432 = vmatprep.subr.bf16.mxu0 0
        %2433 = vmatpush1.bf16.msra.mxu0 %v2430
        %2434 = vmatprep.subr.bf16.mxu0 0
        %2435 = vmatpush1.bf16.msra.mxu0 0
        %2436 = vmatprep.subr.bf16.mxu0 0
        %2437 = vmatpush1.bf16.msra.mxu0 0
        %2438 = vmatprep.subr.bf16.mxu0 0
        %2439 = vmatpush1.bf16.msra.mxu0 0
        %2440 = vmatprep.subr.bf16.mxu0 0
        %2441 = vmatpush1.bf16.msra.mxu0 0
        %2442 = vmatprep.subr.bf16.mxu0 0
        %2443 = vmatpush1.bf16.msra.mxu0 0
        %2444 = vmatprep.subr.bf16.mxu0 0
        %2445 = vmatpush1.bf16.msra.mxu0 0
        %2446 = vmatprep.subr.bf16.mxu0 0
        %2447 = vmatpush1.bf16.msra.mxu0 0
        %2448 = vmatprep.subr.bf16.mxu0 0
        %2449 = vmatpush1.bf16.msra.mxu0 0
        %2450 = vmatprep.subr.bf16.mxu0 0
        %2451 = vmatpush1.bf16.msra.mxu0 0
        %2452 = vmatprep.subr.bf16.mxu0 0
        %2453 = vmatpush1.bf16.msra.mxu0 0
        %2454 = vmatprep.subr.bf16.mxu0 0
        %2455 = vmatpush1.bf16.msra.mxu0 0
        %2456 = vmatprep.subr.bf16.mxu0 0
        %2457 = vmatpush1.bf16.msra.mxu0 0
        %2458 = vmatprep.subr.bf16.mxu0 0
        %2459 = vmatpush1.bf16.msra.mxu0 0
        %2460 = vmatprep.subr.bf16.mxu0 0
        %2461 = vmatpush1.bf16.msra.mxu0 0
        %2462 = vmatprep.subr.bf16.mxu0 0
        %2463 = vmatpush1.bf16.msra.mxu0 0
        %2464 = vmatprep.mubr.bf16.mxu0 0
        %2465 = vmatmul.mubr.bf16.gmra.mrb[0].mxu0 %v2427
        %v2466 = vpop.f32.mrb[0].mxu0
        %v2467 = vadd.f32 0.0, %v2466
        %v2468 = vpop.f32.mrb[0].mxu0
        %v2469 = vpop.f32.mrb[0].mxu0
        %v2470 = vpop.f32.mrb[0].mxu0
        %2471 = vdwg.mxu0
        %v2472 = vcombine.low %v2329, %v2421
        %v2473 = vcombine.high %v2329, %v2421
        %v2475 = vunpack.c.l.s4 1983009808
        %v2476 = vunpack.c.0.s8 %v2475
        %v2477 = vlaneseq
        %v2478 = vshrl.u32 %v2477, 7
        %v2479 = vsub.s32 %v2476, %v2478
        %v2480 = vrot.slane %v2472, %v2479
        %v2482 = vunpack.c.l.s4 1983009808
        %v2483 = vunpack.c.0.s8 %v2482
        %v2484 = vlaneseq
        %v2485 = vshrl.u32 %v2484, 7
        %v2486 = vsub.s32 %v2483, %v2485
        %v2487 = vrot.slane %v2473, %v2486
        %v2488 = vcombine.low %v2375, %v2467
        %v2489 = vcombine.high %v2375, %v2467
        %v2491 = vunpack.c.l.s4 1983009808
        %v2492 = vunpack.c.0.s8 %v2491
        %v2493 = vlaneseq
        %v2494 = vshrl.u32 %v2493, 7
        %v2495 = vsub.s32 %v2492, %v2494
        %v2496 = vrot.slane %v2488, %v2495
        %v2498 = vunpack.c.l.s4 1983009808
        %v2499 = vunpack.c.0.s8 %v2498
        %v2500 = vlaneseq
        %v2501 = vshrl.u32 %v2500, 7
        %v2502 = vsub.s32 %v2499, %v2501
        %v2503 = vrot.slane %v2489, %v2502
        %v2504 = vcombine.low %v2480, %v2496
        %v2505 = vcombine.high %v2480, %v2496
        %v2507 = vunpack.c.l.s4 1934713408
        %v2508 = vunpack.c.0.s8 %v2507
        %v2509 = vlaneseq
        %v2510 = vshrl.u32 %v2509, 7
        %v2511 = vsub.s32 %v2508, %v2510
        %v2512 = vrot.slane %v2504, %v2511
        %v2514 = vunpack.c.l.s4 1934713408
        %v2515 = vunpack.c.0.s8 %v2514
        %v2516 = vlaneseq
        %v2517 = vshrl.u32 %v2516, 7
        %v2518 = vsub.s32 %v2515, %v2517
        %v2519 = vrot.slane %v2505, %v2518
        %v2520 = vcombine.low %v2487, %v2503
        %v2521 = vcombine.high %v2487, %v2503
        %v2523 = vunpack.c.l.s4 1934713408
        %v2524 = vunpack.c.0.s8 %v2523
        %v2525 = vlaneseq
        %v2526 = vshrl.u32 %v2525, 7
        %v2527 = vsub.s32 %v2524, %v2526
        %v2528 = vrot.slane %v2520, %v2527
        %v2530 = vunpack.c.l.s4 1934713408
        %v2531 = vunpack.c.0.s8 %v2530
        %v2532 = vlaneseq
        %v2533 = vshrl.u32 %v2532, 7
        %v2534 = vsub.s32 %v2531, %v2533
        %v2535 = vrot.slane %v2521, %v2534
        %v2536 = vcombine.high %v2512, 0.0
        %v2537 = vcombine.high %v2519, 0.0
        %v2538 = vcombine.high %v2528, 0.0
        %v2539 = vcombine.high %v2535, 0.0
        %v2540 = vcombine.low %v2512, %v2519
        %v2542 = vunpack.c.l.s4 1983009808
        %v2543 = vunpack.c.0.s8 %v2542
        %v2544 = vlaneseq
        %v2545 = vshrl.u32 %v2544, 7
        %v2546 = vsub.s32 %v2543, %v2545
        %v2547 = vrot.slane %v2540, %v2546
        %v2548 = vcombine.low %v2536, %v2537
        %v2550 = vunpack.c.l.s4 1983009808
        %v2551 = vunpack.c.0.s8 %v2550
        %v2552 = vlaneseq
        %v2553 = vshrl.u32 %v2552, 7
        %v2554 = vsub.s32 %v2551, %v2553
        %v2555 = vrot.slane %v2548, %v2554
        %v2556 = vcombine.low %v2528, %v2535
        %v2558 = vunpack.c.l.s4 1983009808
        %v2559 = vunpack.c.0.s8 %v2558
        %v2560 = vlaneseq
        %v2561 = vshrl.u32 %v2560, 7
        %v2562 = vsub.s32 %v2559, %v2561
        %v2563 = vrot.slane %v2556, %v2562
        %v2564 = vcombine.low %v2538, %v2539
        %v2566 = vunpack.c.l.s4 1983009808
        %v2567 = vunpack.c.0.s8 %v2566
        %v2568 = vlaneseq
        %v2569 = vshrl.u32 %v2568, 7
        %v2570 = vsub.s32 %v2567, %v2569
        %v2571 = vrot.slane %v2564, %v2570
        %v2572 = vcombine.low %v2547, %v2555
        %v2573 = vcombine.high %v2547, %v2555
        %v2575 = vunpack.c.l.s4 1934713408
        %v2576 = vunpack.c.0.s8 %v2575
        %v2577 = vlaneseq
        %v2578 = vshrl.u32 %v2577, 7
        %v2579 = vsub.s32 %v2576, %v2578
        %v2580 = vrot.slane %v2572, %v2579
        %v2582 = vunpack.c.l.s4 1934713408
        %v2583 = vunpack.c.0.s8 %v2582
        %v2584 = vlaneseq
        %v2585 = vshrl.u32 %v2584, 7
        %v2586 = vsub.s32 %v2583, %v2585
        %v2587 = vrot.slane %v2573, %v2586
        %v2588 = vcombine.low %v2563, %v2571
        %v2589 = vcombine.high %v2563, %v2571
        %v2591 = vunpack.c.l.s4 1934713408
        %v2592 = vunpack.c.0.s8 %v2591
        %v2593 = vlaneseq
        %v2594 = vshrl.u32 %v2593, 7
        %v2595 = vsub.s32 %v2592, %v2594
        %v2596 = vrot.slane %v2588, %v2595
        %v2598 = vunpack.c.l.s4 1934713408
        %v2599 = vunpack.c.0.s8 %v2598
        %v2600 = vlaneseq
        %v2601 = vshrl.u32 %v2600, 7
        %v2602 = vsub.s32 %v2599, %v2601
        %v2603 = vrot.slane %v2589, %v2602
        %v2604 = vcombine.low %v2580, %v2596
        %v2605 = vcombine.high %v2580, %v2596
        %v2606 = vcombine.low %v2587, %v2603
        %v2607 = vcombine.high %v2587, %v2603
        %2609 = vrot.lane.b32.xlu0 %v2605, 8
        %v2610 = vpop.permute.xlu0 %2609
        %2613 = vrot.lane.b32.xlu0 %v2606, 16
        %v2614 = vpop.permute.xlu0 %2613
        %2617 = vrot.lane.b32.xlu0 %v2607, 24
        %v2618 = vpop.permute.xlu0 %2617
        %v2620 = vsel %vm2046, %v2604, %v2610
        %vm2621 = vcmask 130048
        %v2622 = vsel %vm2621, %v2620, %v2614
        %vm2623 = vcmask 195584
        %v2624 = vsel %vm2623, %v2622, %v2618
        %v2625 = vpack.c.bf16 %v2624, %v2624
        %v2626 = vpack.c.bf16 %v1448, %v1447
        %v2627 = vpack.c.bf16 %v1450, %v1449
        %v2629 = vlaneseq
        %v2630 = vshrl.u32 %v2629, 7
        %v2631 = vsub.s32 0, %v2630
        %v2632 = vrot.slane %v1451, %v2631
        %v2635 = vsel %vm1322, %v2625, 0
        %2637 = vmatprep.subr.bf16.mxu0 0
        %2638 = vmatpush1.bf16.msra.mxu0 %v2626
        %2639 = vmatprep.subr.bf16.mxu0 0
        %2640 = vmatpush1.bf16.msra.mxu0 %v2627
        %2641 = vmatprep.subr.bf16.mxu0 0
        %2642 = vmatpush1.bf16.msra.mxu0 0
        %2643 = vmatprep.subr.bf16.mxu0 0
        %2644 = vmatpush1.bf16.msra.mxu0 0
        %2645 = vmatprep.subr.bf16.mxu0 0
        %2646 = vmatpush1.bf16.msra.mxu0 0
        %2647 = vmatprep.subr.bf16.mxu0 0
        %2648 = vmatpush1.bf16.msra.mxu0 0
        %2649 = vmatprep.subr.bf16.mxu0 0
        %2650 = vmatpush1.bf16.msra.mxu0 0
        %2651 = vmatprep.subr.bf16.mxu0 0
        %2652 = vmatpush1.bf16.msra.mxu0 0
        %2653 = vmatprep.subr.bf16.mxu0 0
        %2654 = vmatpush1.bf16.msra.mxu0 0
        %2655 = vmatprep.subr.bf16.mxu0 0
        %2656 = vmatpush1.bf16.msra.mxu0 0
        %2657 = vmatprep.subr.bf16.mxu0 0
        %2658 = vmatpush1.bf16.msra.mxu0 0
        %2659 = vmatprep.subr.bf16.mxu0 0
        %2660 = vmatpush1.bf16.msra.mxu0 0
        %2661 = vmatprep.subr.bf16.mxu0 0
        %2662 = vmatpush1.bf16.msra.mxu0 0
        %2663 = vmatprep.subr.bf16.mxu0 0
        %2664 = vmatpush1.bf16.msra.mxu0 0
        %2665 = vmatprep.subr.bf16.mxu0 0
        %2666 = vmatpush1.bf16.msra.mxu0 0
        %2667 = vmatprep.subr.bf16.mxu0 0
        %2668 = vmatpush1.bf16.msra.mxu0 0
        %2669 = vmatprep.mubr.bf16.mxu0 0
        %2670 = vmatmul.mubr.bf16.gmra.mrb[0].mxu0 %v2635
        %v2671 = vpop.f32.mrb[0].mxu0
        %v2672 = vadd.f32 %v2632, %v2671
        %v2673 = vpop.f32.mrb[0].mxu0
        %v2674 = vpop.f32.mrb[0].mxu0
        %v2675 = vpop.f32.mrb[0].mxu0
        %2676 = vdwg.mxu0
        %v2677 = vld [vmem:[%s33] sm:$0xff]
        %v2678 = vld [vmem:[%s33 + $0x8] sm:$0xff]
        %v2679 = vld [vmem:[%s33 + $0x10] sm:$0xff]
        %v2680 = vld [vmem:[%s33 + $0x18] sm:$0xff]
        %v2681 = vpack.c.bf16 %v2678, %v2677
        %v2682 = vpack.c.bf16 %v2680, %v2679
        %v2683 = vld [vmem:[%s35] sm:$0xff]
        %v2684 = vld [vmem:[%s35 + $0x8] sm:$0xff]
        %v2685 = vld [vmem:[%s35 + $0x10] sm:$0xff]
        %v2686 = vld [vmem:[%s35 + $0x18] sm:$0xff]
        %v2687 = vpack.c.bf16 %v2672, %v2672
        %v2688 = vpack.c.bf16 %v2684, %v2683
        %v2689 = vpack.c.bf16 %v2686, %v2685
        %v2691 = vsel %vm1322, %v2687, 0
        %2693 = vmatprep.subr.bf16.mxu0 0
        %2694 = vmatpush1.bf16.msra.mxu0 %v2688
        %2695 = vmatprep.subr.bf16.mxu0 0
        %2696 = vmatpush1.bf16.msra.mxu0 %v2689
        %2697 = vmatprep.subr.bf16.mxu0 0
        %2698 = vmatpush1.bf16.msra.mxu0 0
        %2699 = vmatprep.subr.bf16.mxu0 0
        %2700 = vmatpush1.bf16.msra.mxu0 0
        %2701 = vmatprep.subr.bf16.mxu0 0
        %2702 = vmatpush1.bf16.msra.mxu0 0
        %2703 = vmatprep.subr.bf16.mxu0 0
        %2704 = vmatpush1.bf16.msra.mxu0 0
        %2705 = vmatprep.subr.bf16.mxu0 0
        %2706 = vmatpush1.bf16.msra.mxu0 0
        %2707 = vmatprep.subr.bf16.mxu0 0
        %2708 = vmatpush1.bf16.msra.mxu0 0
        %2709 = vmatprep.subr.bf16.mxu0 0
        %2710 = vmatpush1.bf16.msra.mxu0 0
        %2711 = vmatprep.subr.bf16.mxu0 0
        %2712 = vmatpush1.bf16.msra.mxu0 0
        %2713 = vmatprep.subr.bf16.mxu0 0
        %2714 = vmatpush1.bf16.msra.mxu0 0
        %2715 = vmatprep.subr.bf16.mxu0 0
        %2716 = vmatpush1.bf16.msra.mxu0 0
        %2717 = vmatprep.subr.bf16.mxu0 0
        %2718 = vmatpush1.bf16.msra.mxu0 0
        %2719 = vmatprep.subr.bf16.mxu0 0
        %2720 = vmatpush1.bf16.msra.mxu0 0
        %2721 = vmatprep.subr.bf16.mxu0 0
        %2722 = vmatpush1.bf16.msra.mxu0 0
        %2723 = vmatprep.subr.bf16.mxu0 0
        %2724 = vmatpush1.bf16.msra.mxu0 0
        %2725 = vmatprep.mubr.bf16.mxu0 0
        %2726 = vmatmul.mubr.bf16.gmra.mrb[0].mxu0 %v2691
        %v2727 = vpop.f32.mrb[0].mxu0
        %v2728 = vadd.f32 0.0, %v2727
        %v2729 = vpop.f32.mrb[0].mxu0
        %v2730 = vpop.f32.mrb[0].mxu0
        %v2731 = vpop.f32.mrb[0].mxu0
        %2732 = vdwg.mxu0
        %2733 = vmatprep.subr.bf16.mxu0 0
        %2734 = vmatpush1.bf16.msra.mxu0 %v2681
        %2735 = vmatprep.subr.bf16.mxu0 0
        %2736 = vmatpush1.bf16.msra.mxu0 %v2682
        %2737 = vmatprep.subr.bf16.mxu0 0
        %2738 = vmatpush1.bf16.msra.mxu0 0
        %2739 = vmatprep.subr.bf16.mxu0 0
        %2740 = vmatpush1.bf16.msra.mxu0 0
        %2741 = vmatprep.subr.bf16.mxu0 0
        %2742 = vmatpush1.bf16.msra.mxu0 0
        %2743 = vmatprep.subr.bf16.mxu0 0
        %2744 = vmatpush1.bf16.msra.mxu0 0
        %2745 = vmatprep.subr.bf16.mxu0 0
        %2746 = vmatpush1.bf16.msra.mxu0 0
        %2747 = vmatprep.subr.bf16.mxu0 0
        %2748 = vmatpush1.bf16.msra.mxu0 0
        %2749 = vmatprep.subr.bf16.mxu0 0
        %2750 = vmatpush1.bf16.msra.mxu0 0
        %2751 = vmatprep.subr.bf16.mxu0 0
        %2752 = vmatpush1.bf16.msra.mxu0 0
        %2753 = vmatprep.subr.bf16.mxu0 0
        %2754 = vmatpush1.bf16.msra.mxu0 0
        %2755 = vmatprep.subr.bf16.mxu0 0
        %2756 = vmatpush1.bf16.msra.mxu0 0
        %2757 = vmatprep.subr.bf16.mxu0 0
        %2758 = vmatpush1.bf16.msra.mxu0 0
        %2759 = vmatprep.subr.bf16.mxu0 0
        %2760 = vmatpush1.bf16.msra.mxu0 0
        %2761 = vmatprep.subr.bf16.mxu0 0
        %2762 = vmatpush1.bf16.msra.mxu0 0
        %2763 = vmatprep.subr.bf16.mxu0 0
        %2764 = vmatpush1.bf16.msra.mxu0 0
        %2765 = vmatprep.mubr.bf16.mxu0 0
        %2766 = vmatmul.mubr.bf16.gmra.mrb[0].mxu0 %v1462
        %v2767 = vpop.f32.mrb[0].mxu0
        %v2768 = vadd.f32 %v2728, %v2767
        %v2769 = vpop.f32.mrb[0].mxu0
        %v2770 = vpop.f32.mrb[0].mxu0
        %v2771 = vpop.f32.mrb[0].mxu0
        %2772 = vdwg.mxu0
        %v2773 = vld [vmem:[#allocation17] sm:$0x1]
        %v2775 = vlaneseq
        %v2776 = vshrl.u32 %v2775, 7
        %v2777 = vsub.s32 0, %v2776
        %v2778 = vrot.slane %v2773, %v2777
        %v2780 = vadd.f32 %v2768, %v2778
        %v2781 = vxor.u32 %v2780, 2147483648
        %v2782 = vmul.f32 %v2781, 1.442695
        %v2783 = vpow.pop %v2782
        %v2784 = vadd.f32 %v2783, 1.0
        %v2785 = vrcp.pop %v2784
        %v2786 = vmul.f32 1.0, %v2785
        %vm2787 = vcmask 15360
        %2788 = vst.msk [vmem:[%s1305] sm:$0xff] %vm2787, %v2786
        %s2789 = sld [smem:[#allocation3 + %s107]]
        %s2790 = sld [smem:[#allocation4 + %s107]]
        %v2791 = vlaneseq
        %v2792 = vshrl.u32 %v2791, 7
        %v2793 = vstv %s2789
        %vm2794 = vcmp.ge.s32.totalorder %v2792, %v2793
        %v2795 = vstv %s2790
        %vm2796 = vcmp.le.s32.totalorder %v2792, %v2795
        %vm2797 = vmand %vm2794, %vm2796
        %v2798 = vsel %vm2797, 1, 0
        %v2799 = vcvt.s32.f32 %v2798
        %v2800 = vrot.slane %v2799, 4
        %v2801 = vadd.f32 %v2799, %v2800
        %v2802 = vrot.slane %v2801, 2
        %v2803 = vadd.f32 %v2801, %v2802
        %v2804 = vrot.slane %v2803, 1
        %v2805 = vadd.f32 %v2803, %v2804
        %v2806 = vmax.f32 %v2805, 1.0
        %v2807 = vmul.f32 %v1431, %v2799
        %v2808 = vsel %vm1322, %v2807, 0.0
        %v2809 = vrot.slane %v2808, 4
        %v2810 = vadd.f32 %v2808, %v2809
        %v2811 = vrot.slane %v2810, 2
        %v2812 = vadd.f32 %v2810, %v2811
        %v2813 = vrot.slane %v2812, 1
        %v2814 = vadd.f32 %v2812, %v2813
        %v2815 = vrcp.pop %v2806
        %v2816 = vmul.f32 %v2814, %v2815
        %v2817 = vld [vmem:[%s39] sm:$0xff]
        %v2818 = vld [vmem:[%s39 + $0x8] sm:$0xff]
        %v2819 = vld [vmem:[%s39 + $0x10] sm:$0xff]
        %v2820 = vld [vmem:[%s39 + $0x18] sm:$0xff]
        %v2821 = vld [vmem:[#allocation19] sm:$0x1]
        %v2822 = vld [vmem:[%s43] sm:$0xff]
        %v2823 = vld [vmem:[%s43 + $0x8] sm:$0xff]
        %v2824 = vld [vmem:[%s43 + $0x10] sm:$0xff]
        %v2825 = vld [vmem:[%s43 + $0x18] sm:$0xff]
        %v2826 = vld [vmem:[#allocation20] sm:$0x1]
        %v2827 = vpack.c.bf16 %v2816, %v2816
        %v2828 = vpack.c.bf16 %v2818, %v2817
        %v2829 = vpack.c.bf16 %v2820, %v2819
        %v2831 = vsel %vm1322, %v2827, 0
        %2833 = vmatprep.subr.bf16.mxu0 0
        %2834 = vmatpush1.bf16.msra.mxu0 %v2828
        %2835 = vmatprep.subr.bf16.mxu0 0
        %2836 = vmatpush1.bf16.msra.mxu0 %v2829
        %2837 = vmatprep.subr.bf16.mxu0 0
        %2838 = vmatpush1.bf16.msra.mxu0 0
        %2839 = vmatprep.subr.bf16.mxu0 0
        %2840 = vmatpush1.bf16.msra.mxu0 0
        %2841 = vmatprep.subr.bf16.mxu0 0
        %2842 = vmatpush1.bf16.msra.mxu0 0
        %2843 = vmatprep.subr.bf16.mxu0 0
        %2844 = vmatpush1.bf16.msra.mxu0 0
        %2845 = vmatprep.subr.bf16.mxu0 0
        %2846 = vmatpush1.bf16.msra.mxu0 0
        %2847 = vmatprep.subr.bf16.mxu0 0
        %2848 = vmatpush1.bf16.msra.mxu0 0
        %2849 = vmatprep.subr.bf16.mxu0 0
        %2850 = vmatpush1.bf16.msra.mxu0 0
        %2851 = vmatprep.subr.bf16.mxu0 0
        %2852 = vmatpush1.bf16.msra.mxu0 0
        %2853 = vmatprep.subr.bf16.mxu0 0
        %2854 = vmatpush1.bf16.msra.mxu0 0
        %2855 = vmatprep.subr.bf16.mxu0 0
        %2856 = vmatpush1.bf16.msra.mxu0 0
        %2857 = vmatprep.subr.bf16.mxu0 0
        %2858 = vmatpush1.bf16.msra.mxu0 0
        %2859 = vmatprep.subr.bf16.mxu0 0
        %2860 = vmatpush1.bf16.msra.mxu0 0
        %2861 = vmatprep.subr.bf16.mxu0 0
        %2862 = vmatpush1.bf16.msra.mxu0 0
        %2863 = vmatprep.subr.bf16.mxu0 0
        %2864 = vmatpush1.bf16.msra.mxu0 0
        %2865 = vmatprep.mubr.bf16.mxu0 0
        %2866 = vmatmul.mubr.bf16.gmra.mrb[0].mxu0 %v2831
        %v2867 = vpop.f32.mrb[0].mxu0
        %v2868 = vadd.f32 %v2821, %v2867
        %v2869 = vpop.f32.mrb[0].mxu0
        %v2870 = vpop.f32.mrb[0].mxu0
        %v2871 = vpop.f32.mrb[0].mxu0
        %2872 = vdwg.mxu0
        %v2873 = vpack.c.bf16 %v2823, %v2822
        %v2874 = vpack.c.bf16 %v2825, %v2824
        %2875 = vmatprep.subr.bf16.mxu0 0
        %2876 = vmatpush1.bf16.msra.mxu0 %v2873
        %2877 = vmatprep.subr.bf16.mxu0 0
        %2878 = vmatpush1.bf16.msra.mxu0 %v2874
        %2879 = vmatprep.subr.bf16.mxu0 0
        %2880 = vmatpush1.bf16.msra.mxu0 0
        %2881 = vmatprep.subr.bf16.mxu0 0
        %2882 = vmatpush1.bf16.msra.mxu0 0
        %2883 = vmatprep.subr.bf16.mxu0 0
        %2884 = vmatpush1.bf16.msra.mxu0 0
        %2885 = vmatprep.subr.bf16.mxu0 0
        %2886 = vmatpush1.bf16.msra.mxu0 0
        %2887 = vmatprep.subr.bf16.mxu0 0
        %2888 = vmatpush1.bf16.msra.mxu0 0
        %2889 = vmatprep.subr.bf16.mxu0 0
        %2890 = vmatpush1.bf16.msra.mxu0 0
        %2891 = vmatprep.subr.bf16.mxu0 0
        %2892 = vmatpush1.bf16.msra.mxu0 0
        %2893 = vmatprep.subr.bf16.mxu0 0
        %2894 = vmatpush1.bf16.msra.mxu0 0
        %2895 = vmatprep.subr.bf16.mxu0 0
        %2896 = vmatpush1.bf16.msra.mxu0 0
        %2897 = vmatprep.subr.bf16.mxu0 0
        %2898 = vmatpush1.bf16.msra.mxu0 0
        %2899 = vmatprep.subr.bf16.mxu0 0
        %2900 = vmatpush1.bf16.msra.mxu0 0
        %2901 = vmatprep.subr.bf16.mxu0 0
        %2902 = vmatpush1.bf16.msra.mxu0 0
        %2903 = vmatprep.subr.bf16.mxu0 0
        %2904 = vmatpush1.bf16.msra.mxu0 0
        %2905 = vmatprep.subr.bf16.mxu0 0
        %2906 = vmatpush1.bf16.msra.mxu0 0
        %2907 = vmatprep.mubr.bf16.mxu0 0
        %2908 = vmatmul.mubr.bf16.gmra.mrb[0].mxu0 %v2831
        %v2909 = vpop.f32.mrb[0].mxu0
        %v2910 = vadd.f32 %v2826, %v2909
        %v2911 = vpop.f32.mrb[0].mxu0
        %v2912 = vpop.f32.mrb[0].mxu0
        %v2913 = vpop.f32.mrb[0].mxu0
        %2914 = vdwg.mxu0
        %v2915 = vsel %vm1322, %v1431, 0.0
        %2916 = vadd.xlane.f32.xlu0 %v2915
        %v2917 = vpop.xlane.xlu0 %2916
        %v2918 = vmul.f32 %v2917, %v1411
        %v2919 = vsub.f32 %v1431, %v2918
        %v2920 = vmul.f32 %v2919, %v2919
        %v2921 = vsel %vm1322, %v2920, 0.0
        %2922 = vadd.xlane.f32.xlu0 %v2921
        %v2923 = vpop.xlane.xlu0 %2922
        %v2924 = vmul.f32 %v2923, %v1411
        %v2925 = vadd.f32 %v2924, 1e-12
        %v2926 = vrsqrt.pop %v2925
        %v2927 = vmul.f32 %v2919, %v2926
        %v2928 = vlaneseq
        %v2929 = vshrl.u32 %v2928, 7
        %v2930 = vsub.s32 0, %v2929
        %v2931 = vrot.slane %v2868, %v2930
        %v2932 = vmul.f32 %v2927, %v2931
        %v2933 = vlaneseq
        %v2934 = vshrl.u32 %v2933, 7
        %v2935 = vsub.s32 0, %v2934
        %v2936 = vrot.slane %v2910, %v2935
        %v2937 = vadd.f32 %v2932, %v2936
        %vm2938 = vcmp.lt.s32.totalorder %v2792, %v2793
        %v2939 = vsub.s32 %v2792, %v2793
        %vm2940 = vcmp.gt.s32.totalorder %v2792, %v2795
        %v2941 = vsub.s32 %v2792, %v2795
        %v2942 = vsel %vm2940, %v2941, 0
        %v2943 = vsel %vm2938, %v2939, %v2942
        %vm2944 = vcmp.gt.s32.totalorder %v2943, 4294967288
        %v2945 = vsel %vm2944, %v2943, 4294967288
        %vm2946 = vcmp.lt.s32.totalorder %v2945, 8
        %v2947 = vsel %vm2946, %v2945, 8
        %v2948 = vadd.s32 %v2947, 8
        %v2949 = vlaneseq
        %v2950 = vand.u32 %v2949, 127
        %vm2951 = vcmp.eq.s32.totalorder %v2950, %v2948
        %v2952 = vld [vmem:[%s47] sm:$0xff]
        %v2953 = vld [vmem:[%s47 + $0x8] sm:$0xff]
        %v2954 = vld [vmem:[%s47 + $0x10] sm:$0x1]
        %v2955 = vsel %vm2951, 1, 0
        %v2956 = vcvt.s32.f32 %v2955
        %v2957 = vpack.c.bf16 %v2956, %v2956
        %v2958 = vpack.c.bf16 %v2953, %v2952
        %v2959 = vpack.c.bf16 %v2954, %v2954
        %vm2960 = vcmask 138240
        %v2962 = vsel %vm2960, %v2957, 0
        %vm2964 = vcmask 1040384
        %v2965 = vsel 0, 4294967295, 65535
        %v2966 = vsel %vm2964, %v2965, 0
        %v2968 = vand.u32 %v2959, %v2966
        %2970 = vmatprep.subr.bf16.mxu0 0
        %2971 = vmatpush1.bf16.msra.mxu0 %v2958
        %2972 = vmatprep.subr.bf16.mxu0 0
        %2973 = vmatpush1.bf16.msra.mxu0 %v2968
        %2974 = vmatprep.subr.bf16.mxu0 0
        %2975 = vmatpush1.bf16.msra.mxu0 0
        %2976 = vmatprep.subr.bf16.mxu0 0
        %2977 = vmatpush1.bf16.msra.mxu0 0
        %2978 = vmatprep.subr.bf16.mxu0 0
        %2979 = vmatpush1.bf16.msra.mxu0 0
        %2980 = vmatprep.subr.bf16.mxu0 0
        %2981 = vmatpush1.bf16.msra.mxu0 0
        %2982 = vmatprep.subr.bf16.mxu0 0
        %2983 = vmatpush1.bf16.msra.mxu0 0
        %2984 = vmatprep.subr.bf16.mxu0 0
        %2985 = vmatpush1.bf16.msra.mxu0 0
        %2986 = vmatprep.subr.bf16.mxu0 0
        %2987 = vmatpush1.bf16.msra.mxu0 0
        %2988 = vmatprep.subr.bf16.mxu0 0
        %2989 = vmatpush1.bf16.msra.mxu0 0
        %2990 = vmatprep.subr.bf16.mxu0 0
        %2991 = vmatpush1.bf16.msra.mxu0 0
        %2992 = vmatprep.subr.bf16.mxu0 0
        %2993 = vmatpush1.bf16.msra.mxu0 0
        %2994 = vmatprep.subr.bf16.mxu0 0
        %2995 = vmatpush1.bf16.msra.mxu0 0
        %2996 = vmatprep.subr.bf16.mxu0 0
        %2997 = vmatpush1.bf16.msra.mxu0 0
        %2998 = vmatprep.subr.bf16.mxu0 0
        %2999 = vmatpush1.bf16.msra.mxu0 0
        %3000 = vmatprep.subr.bf16.mxu0 0
        %3001 = vmatpush1.bf16.msra.mxu0 0
        %3002 = vmatprep.mubr.bf16.mxu0 0
        %3003 = vmatmul.mubr.bf16.gmra.mrb[0].mxu0 %v2962
        %v3004 = vpop.f32.mrb[0].mxu0
        %v3005 = vadd.f32 0.0, %v3004
        %v3006 = vpop.f32.mrb[0].mxu0
        %v3007 = vpop.f32.mrb[0].mxu0
        %v3008 = vpop.f32.mrb[0].mxu0
        %3009 = vdwg.mxu0
        %v3010 = vld [vmem:[%s49] sm:$0xff]
        %v3011 = vld [vmem:[%s49 + $0x8] sm:$0xff]
        %v3012 = vld [vmem:[%s49 + $0x10] sm:$0xff]
        %v3013 = vld [vmem:[%s49 + $0x18] sm:$0xff]
        %v3014 = vld [vmem:[#allocation22] sm:$0x1]
        %v3015 = vld [vmem:[#allocation23] sm:$0xff]
        %v3016 = vld [vmem:[#allocation23 + $0x8] sm:$0xff]
        %v3017 = vld [vmem:[#allocation23 + $0x10] sm:$0xff]
        %v3018 = vld [vmem:[#allocation23 + $0x18] sm:$0xff]
        %v3019 = vld [vmem:[#allocation25] sm:$0x1]
        %v3020 = vld [vmem:[#allocation26] sm:$0xff]
        %v3021 = vld [vmem:[#allocation26 + $0x8] sm:$0xff]
        %v3022 = vld [vmem:[#allocation26 + $0x10] sm:$0xff]
        %v3023 = vld [vmem:[#allocation26 + $0x18] sm:$0xff]
        %v3024 = vld [vmem:[#allocation28] sm:$0x1]
        %v3025 = vld [vmem:[#allocation29] sm:$0xff]
        %v3026 = vld [vmem:[#allocation29 + $0x8] sm:$0xff]
        %v3027 = vld [vmem:[#allocation29 + $0x10] sm:$0xff]
        %v3028 = vld [vmem:[#allocation29 + $0x18] sm:$0xff]
        %v3029 = vld [vmem:[#allocation31] sm:$0x1]
        %v3030 = vpack.c.bf16 %v2937, %v2937
        %v3031 = vpack.c.bf16 %v3011, %v3010
        %v3032 = vpack.c.bf16 %v3013, %v3012
        %v3034 = vlaneseq
        %v3035 = vshrl.u32 %v3034, 7
        %v3036 = vsub.s32 0, %v3035
        %v3037 = vrot.slane %v3014, %v3036
        %v3040 = vsel %vm1322, %v3030, 0
        %3042 = vmatprep.subr.bf16.mxu0 0
        %3043 = vmatpush1.bf16.msra.mxu0 %v3031
        %3044 = vmatprep.subr.bf16.mxu0 0
        %3045 = vmatpush1.bf16.msra.mxu0 %v3032
        %3046 = vmatprep.subr.bf16.mxu0 0
        %3047 = vmatpush1.bf16.msra.mxu0 0
        %3048 = vmatprep.subr.bf16.mxu0 0
        %3049 = vmatpush1.bf16.msra.mxu0 0
        %3050 = vmatprep.subr.bf16.mxu0 0
        %3051 = vmatpush1.bf16.msra.mxu0 0
        %3052 = vmatprep.subr.bf16.mxu0 0
        %3053 = vmatpush1.bf16.msra.mxu0 0
        %3054 = vmatprep.subr.bf16.mxu0 0
        %3055 = vmatpush1.bf16.msra.mxu0 0
        %3056 = vmatprep.subr.bf16.mxu0 0
        %3057 = vmatpush1.bf16.msra.mxu0 0
        %3058 = vmatprep.subr.bf16.mxu0 0
        %3059 = vmatpush1.bf16.msra.mxu0 0
        %3060 = vmatprep.subr.bf16.mxu0 0
        %3061 = vmatpush1.bf16.msra.mxu0 0
        %3062 = vmatprep.subr.bf16.mxu0 0
        %3063 = vmatpush1.bf16.msra.mxu0 0
        %3064 = vmatprep.subr.bf16.mxu0 0
        %3065 = vmatpush1.bf16.msra.mxu0 0
        %3066 = vmatprep.subr.bf16.mxu0 0
        %3067 = vmatpush1.bf16.msra.mxu0 0
        %3068 = vmatprep.subr.bf16.mxu0 0
        %3069 = vmatpush1.bf16.msra.mxu0 0
        %3070 = vmatprep.subr.bf16.mxu0 0
        %3071 = vmatpush1.bf16.msra.mxu0 0
        %3072 = vmatprep.subr.bf16.mxu0 0
        %3073 = vmatpush1.bf16.msra.mxu0 0
        %3074 = vmatprep.mubr.bf16.mxu0 0
        %3075 = vmatmul.mubr.bf16.gmra.mrb[0].mxu0 %v3040
        %v3076 = vpop.f32.mrb[0].mxu0
        %v3077 = vadd.f32 %v3037, %v3076
        %v3078 = vpop.f32.mrb[0].mxu0
        %v3079 = vpop.f32.mrb[0].mxu0
        %v3080 = vpop.f32.mrb[0].mxu0
        %3081 = vdwg.mxu0
        %v3082 = vpack.c.bf16 %v3016, %v3015
        %v3083 = vpack.c.bf16 %v3018, %v3017
        %v3085 = vlaneseq
        %v3086 = vshrl.u32 %v3085, 7
        %v3087 = vsub.s32 0, %v3086
        %v3088 = vrot.slane %v3019, %v3087
        %3090 = vmatprep.subr.bf16.mxu0 0
        %3091 = vmatpush1.bf16.msra.mxu0 %v3082
        %3092 = vmatprep.subr.bf16.mxu0 0
        %3093 = vmatpush1.bf16.msra.mxu0 %v3083
        %3094 = vmatprep.subr.bf16.mxu0 0
        %3095 = vmatpush1.bf16.msra.mxu0 0
        %3096 = vmatprep.subr.bf16.mxu0 0
        %3097 = vmatpush1.bf16.msra.mxu0 0
        %3098 = vmatprep.subr.bf16.mxu0 0
        %3099 = vmatpush1.bf16.msra.mxu0 0
        %3100 = vmatprep.subr.bf16.mxu0 0
        %3101 = vmatpush1.bf16.msra.mxu0 0
        %3102 = vmatprep.subr.bf16.mxu0 0
        %3103 = vmatpush1.bf16.msra.mxu0 0
        %3104 = vmatprep.subr.bf16.mxu0 0
        %3105 = vmatpush1.bf16.msra.mxu0 0
        %3106 = vmatprep.subr.bf16.mxu0 0
        %3107 = vmatpush1.bf16.msra.mxu0 0
        %3108 = vmatprep.subr.bf16.mxu0 0
        %3109 = vmatpush1.bf16.msra.mxu0 0
        %3110 = vmatprep.subr.bf16.mxu0 0
        %3111 = vmatpush1.bf16.msra.mxu0 0
        %3112 = vmatprep.subr.bf16.mxu0 0
        %3113 = vmatpush1.bf16.msra.mxu0 0
        %3114 = vmatprep.subr.bf16.mxu0 0
        %3115 = vmatpush1.bf16.msra.mxu0 0
        %3116 = vmatprep.subr.bf16.mxu0 0
        %3117 = vmatpush1.bf16.msra.mxu0 0
        %3118 = vmatprep.subr.bf16.mxu0 0
        %3119 = vmatpush1.bf16.msra.mxu0 0
        %3120 = vmatprep.subr.bf16.mxu0 0
        %3121 = vmatpush1.bf16.msra.mxu0 0
        %3122 = vmatprep.mubr.bf16.mxu0 0
        %3123 = vmatmul.mubr.bf16.gmra.mrb[0].mxu0 %v3040
        %v3124 = vpop.f32.mrb[0].mxu0
        %v3125 = vadd.f32 %v3088, %v3124
        %v3126 = vpop.f32.mrb[0].mxu0
        %v3127 = vpop.f32.mrb[0].mxu0
        %v3128 = vpop.f32.mrb[0].mxu0
        %3129 = vdwg.mxu0
        %v3130 = vpack.c.bf16 %v3021, %v3020
        %v3131 = vpack.c.bf16 %v3023, %v3022
        %v3133 = vlaneseq
        %v3134 = vshrl.u32 %v3133, 7
        %v3135 = vsub.s32 0, %v3134
        %v3136 = vrot.slane %v3024, %v3135
        %3138 = vmatprep.subr.bf16.mxu0 0
        %3139 = vmatpush1.bf16.msra.mxu0 %v3130
        %3140 = vmatprep.subr.bf16.mxu0 0
        %3141 = vmatpush1.bf16.msra.mxu0 %v3131
        %3142 = vmatprep.subr.bf16.mxu0 0
        %3143 = vmatpush1.bf16.msra.mxu0 0
        %3144 = vmatprep.subr.bf16.mxu0 0
        %3145 = vmatpush1.bf16.msra.mxu0 0
        %3146 = vmatprep.subr.bf16.mxu0 0
        %3147 = vmatpush1.bf16.msra.mxu0 0
        %3148 = vmatprep.subr.bf16.mxu0 0
        %3149 = vmatpush1.bf16.msra.mxu0 0
        %3150 = vmatprep.subr.bf16.mxu0 0
        %3151 = vmatpush1.bf16.msra.mxu0 0
        %3152 = vmatprep.subr.bf16.mxu0 0
        %3153 = vmatpush1.bf16.msra.mxu0 0
        %3154 = vmatprep.subr.bf16.mxu0 0
        %3155 = vmatpush1.bf16.msra.mxu0 0
        %3156 = vmatprep.subr.bf16.mxu0 0
        %3157 = vmatpush1.bf16.msra.mxu0 0
        %3158 = vmatprep.subr.bf16.mxu0 0
        %3159 = vmatpush1.bf16.msra.mxu0 0
        %3160 = vmatprep.subr.bf16.mxu0 0
        %3161 = vmatpush1.bf16.msra.mxu0 0
        %3162 = vmatprep.subr.bf16.mxu0 0
        %3163 = vmatpush1.bf16.msra.mxu0 0
        %3164 = vmatprep.subr.bf16.mxu0 0
        %3165 = vmatpush1.bf16.msra.mxu0 0
        %3166 = vmatprep.subr.bf16.mxu0 0
        %3167 = vmatpush1.bf16.msra.mxu0 0
        %3168 = vmatprep.subr.bf16.mxu0 0
        %3169 = vmatpush1.bf16.msra.mxu0 0
        %3170 = vmatprep.mubr.bf16.mxu0 0
        %3171 = vmatmul.mubr.bf16.gmra.mrb[0].mxu0 %v3040
        %v3172 = vpop.f32.mrb[0].mxu0
        %v3173 = vadd.f32 %v3136, %v3172
        %v3174 = vpop.f32.mrb[0].mxu0
        %v3175 = vpop.f32.mrb[0].mxu0
        %v3176 = vpop.f32.mrb[0].mxu0
        %3177 = vdwg.mxu0
        %3179 = vrot.lane.b32.xlu0 %v3077, 120
        %v3180 = vpop.permute.xlu0 %3179
        %3182 = vrot.lane.b32.xlu0 %v3077, 112
        %v3183 = vpop.permute.xlu0 %3182
        %3185 = vrot.lane.b32.xlu0 %v3077, 104
        %v3186 = vpop.permute.xlu0 %3185
        %v3188 = vcombine.low %v3077, %v3183
        %v3189 = vcombine.high %v3077, %v3183
        %v3191 = vunpack.c.l.s4 1983009808
        %v3192 = vunpack.c.0.s8 %v3191
        %v3193 = vlaneseq
        %v3194 = vshrl.u32 %v3193, 7
        %v3195 = vsub.s32 %v3192, %v3194
        %v3196 = vrot.slane %v3188, %v3195
        %v3198 = vunpack.c.l.s4 1983009808
        %v3199 = vunpack.c.0.s8 %v3198
        %v3200 = vlaneseq
        %v3201 = vshrl.u32 %v3200, 7
        %v3202 = vsub.s32 %v3199, %v3201
        %v3203 = vrot.slane %v3189, %v3202
        %v3204 = vcombine.low %v3180, %v3186
        %v3205 = vcombine.high %v3180, %v3186
        %v3207 = vunpack.c.l.s4 1983009808
        %v3208 = vunpack.c.0.s8 %v3207
        %v3209 = vlaneseq
        %v3210 = vshrl.u32 %v3209, 7
        %v3211 = vsub.s32 %v3208, %v3210
        %v3212 = vrot.slane %v3204, %v3211
        %v3214 = vunpack.c.l.s4 1983009808
        %v3215 = vunpack.c.0.s8 %v3214
        %v3216 = vlaneseq
        %v3217 = vshrl.u32 %v3216, 7
        %v3218 = vsub.s32 %v3215, %v3217
        %v3219 = vrot.slane %v3205, %v3218
        %v3220 = vcombine.low %v3196, %v3212
        %v3221 = vcombine.high %v3196, %v3212
        %v3223 = vunpack.c.l.s4 1934713408
        %v3224 = vunpack.c.0.s8 %v3223
        %v3225 = vlaneseq
        %v3226 = vshrl.u32 %v3225, 7
        %v3227 = vsub.s32 %v3224, %v3226
        %v3228 = vrot.slane %v3220, %v3227
        %v3230 = vunpack.c.l.s4 1934713408
        %v3231 = vunpack.c.0.s8 %v3230
        %v3232 = vlaneseq
        %v3233 = vshrl.u32 %v3232, 7
        %v3234 = vsub.s32 %v3231, %v3233
        %v3235 = vrot.slane %v3221, %v3234
        %v3236 = vcombine.low %v3203, %v3219
        %v3237 = vcombine.high %v3203, %v3219
        %v3239 = vunpack.c.l.s4 1934713408
        %v3240 = vunpack.c.0.s8 %v3239
        %v3241 = vlaneseq
        %v3242 = vshrl.u32 %v3241, 7
        %v3243 = vsub.s32 %v3240, %v3242
        %v3244 = vrot.slane %v3236, %v3243
        %v3246 = vunpack.c.l.s4 1934713408
        %v3247 = vunpack.c.0.s8 %v3246
        %v3248 = vlaneseq
        %v3249 = vshrl.u32 %v3248, 7
        %v3250 = vsub.s32 %v3247, %v3249
        %v3251 = vrot.slane %v3237, %v3250
        %v3252 = vcombine.high %v3228, 0.0
        %v3253 = vcombine.high %v3235, 0.0
        %v3254 = vcombine.high %v3244, 0.0
        %v3255 = vcombine.high %v3251, 0.0
        %v3256 = vcombine.low %v3228, %v3235
        %v3258 = vunpack.c.l.s4 1983009808
        %v3259 = vunpack.c.0.s8 %v3258
        %v3260 = vlaneseq
        %v3261 = vshrl.u32 %v3260, 7
        %v3262 = vsub.s32 %v3259, %v3261
        %v3263 = vrot.slane %v3256, %v3262
        %v3264 = vcombine.low %v3252, %v3253
        %v3266 = vunpack.c.l.s4 1983009808
        %v3267 = vunpack.c.0.s8 %v3266
        %v3268 = vlaneseq
        %v3269 = vshrl.u32 %v3268, 7
        %v3270 = vsub.s32 %v3267, %v3269
        %v3271 = vrot.slane %v3264, %v3270
        %v3272 = vcombine.low %v3244, %v3251
        %v3274 = vunpack.c.l.s4 1983009808
        %v3275 = vunpack.c.0.s8 %v3274
        %v3276 = vlaneseq
        %v3277 = vshrl.u32 %v3276, 7
        %v3278 = vsub.s32 %v3275, %v3277
        %v3279 = vrot.slane %v3272, %v3278
        %v3280 = vcombine.low %v3254, %v3255
        %v3282 = vunpack.c.l.s4 1983009808
        %v3283 = vunpack.c.0.s8 %v3282
        %v3284 = vlaneseq
        %v3285 = vshrl.u32 %v3284, 7
        %v3286 = vsub.s32 %v3283, %v3285
        %v3287 = vrot.slane %v3280, %v3286
        %v3288 = vcombine.low %v3263, %v3271
        %v3289 = vcombine.high %v3263, %v3271
        %v3291 = vunpack.c.l.s4 1934713408
        %v3292 = vunpack.c.0.s8 %v3291
        %v3293 = vlaneseq
        %v3294 = vshrl.u32 %v3293, 7
        %v3295 = vsub.s32 %v3292, %v3294
        %v3296 = vrot.slane %v3288, %v3295
        %v3298 = vunpack.c.l.s4 1934713408
        %v3299 = vunpack.c.0.s8 %v3298
        %v3300 = vlaneseq
        %v3301 = vshrl.u32 %v3300, 7
        %v3302 = vsub.s32 %v3299, %v3301
        %v3303 = vrot.slane %v3289, %v3302
        %v3304 = vcombine.low %v3279, %v3287
        %v3305 = vcombine.high %v3279, %v3287
        %v3307 = vunpack.c.l.s4 1934713408
        %v3308 = vunpack.c.0.s8 %v3307
        %v3309 = vlaneseq
        %v3310 = vshrl.u32 %v3309, 7
        %v3311 = vsub.s32 %v3308, %v3310
        %v3312 = vrot.slane %v3304, %v3311
        %v3314 = vunpack.c.l.s4 1934713408
        %v3315 = vunpack.c.0.s8 %v3314
        %v3316 = vlaneseq
        %v3317 = vshrl.u32 %v3316, 7
        %v3318 = vsub.s32 %v3315, %v3317
        %v3319 = vrot.slane %v3305, %v3318
        %v3320 = vcombine.low %v3296, %v3312
        %v3321 = vcombine.high %v3296, %v3312
        %v3322 = vcombine.low %v3303, %v3319
        %v3323 = vcombine.high %v3303, %v3319
        %3325 = vrot.lane.b32.xlu0 %v3125, 120
        %v3326 = vpop.permute.xlu0 %3325
        %3328 = vrot.lane.b32.xlu0 %v3125, 112
        %v3329 = vpop.permute.xlu0 %3328
        %3331 = vrot.lane.b32.xlu0 %v3125, 104
        %v3332 = vpop.permute.xlu0 %3331
        %v3334 = vcombine.low %v3125, %v3329
        %v3335 = vcombine.high %v3125, %v3329
        %v3337 = vunpack.c.l.s4 1983009808
        %v3338 = vunpack.c.0.s8 %v3337
        %v3339 = vlaneseq
        %v3340 = vshrl.u32 %v3339, 7
        %v3341 = vsub.s32 %v3338, %v3340
        %v3342 = vrot.slane %v3334, %v3341
        %v3344 = vunpack.c.l.s4 1983009808
        %v3345 = vunpack.c.0.s8 %v3344
        %v3346 = vlaneseq
        %v3347 = vshrl.u32 %v3346, 7
        %v3348 = vsub.s32 %v3345, %v3347
        %v3349 = vrot.slane %v3335, %v3348
        %v3350 = vcombine.low %v3326, %v3332
        %v3351 = vcombine.high %v3326, %v3332
        %v3353 = vunpack.c.l.s4 1983009808
        %v3354 = vunpack.c.0.s8 %v3353
        %v3355 = vlaneseq
        %v3356 = vshrl.u32 %v3355, 7
        %v3357 = vsub.s32 %v3354, %v3356
        %v3358 = vrot.slane %v3350, %v3357
        %v3360 = vunpack.c.l.s4 1983009808
        %v3361 = vunpack.c.0.s8 %v3360
        %v3362 = vlaneseq
        %v3363 = vshrl.u32 %v3362, 7
        %v3364 = vsub.s32 %v3361, %v3363
        %v3365 = vrot.slane %v3351, %v3364
        %v3366 = vcombine.low %v3342, %v3358
        %v3367 = vcombine.high %v3342, %v3358
        %v3369 = vunpack.c.l.s4 1934713408
        %v3370 = vunpack.c.0.s8 %v3369
        %v3371 = vlaneseq
        %v3372 = vshrl.u32 %v3371, 7
        %v3373 = vsub.s32 %v3370, %v3372
        %v3374 = vrot.slane %v3366, %v3373
        %v3376 = vunpack.c.l.s4 1934713408
        %v3377 = vunpack.c.0.s8 %v3376
        %v3378 = vlaneseq
        %v3379 = vshrl.u32 %v3378, 7
        %v3380 = vsub.s32 %v3377, %v3379
        %v3381 = vrot.slane %v3367, %v3380
        %v3382 = vcombine.low %v3349, %v3365
        %v3383 = vcombine.high %v3349, %v3365
        %v3385 = vunpack.c.l.s4 1934713408
        %v3386 = vunpack.c.0.s8 %v3385
        %v3387 = vlaneseq
        %v3388 = vshrl.u32 %v3387, 7
        %v3389 = vsub.s32 %v3386, %v3388
        %v3390 = vrot.slane %v3382, %v3389
        %v3392 = vunpack.c.l.s4 1934713408
        %v3393 = vunpack.c.0.s8 %v3392
        %v3394 = vlaneseq
        %v3395 = vshrl.u32 %v3394, 7
        %v3396 = vsub.s32 %v3393, %v3395
        %v3397 = vrot.slane %v3383, %v3396
        %v3398 = vcombine.high %v3374, 0.0
        %v3399 = vcombine.high %v3381, 0.0
        %v3400 = vcombine.high %v3390, 0.0
        %v3401 = vcombine.high %v3397, 0.0
        %v3402 = vcombine.low %v3374, %v3381
        %v3404 = vunpack.c.l.s4 1983009808
        %v3405 = vunpack.c.0.s8 %v3404
        %v3406 = vlaneseq
        %v3407 = vshrl.u32 %v3406, 7
        %v3408 = vsub.s32 %v3405, %v3407
        %v3409 = vrot.slane %v3402, %v3408
        %v3410 = vcombine.low %v3398, %v3399
        %v3412 = vunpack.c.l.s4 1983009808
        %v3413 = vunpack.c.0.s8 %v3412
        %v3414 = vlaneseq
        %v3415 = vshrl.u32 %v3414, 7
        %v3416 = vsub.s32 %v3413, %v3415
        %v3417 = vrot.slane %v3410, %v3416
        %v3418 = vcombine.low %v3390, %v3397
        %v3420 = vunpack.c.l.s4 1983009808
        %v3421 = vunpack.c.0.s8 %v3420
        %v3422 = vlaneseq
        %v3423 = vshrl.u32 %v3422, 7
        %v3424 = vsub.s32 %v3421, %v3423
        %v3425 = vrot.slane %v3418, %v3424
        %v3426 = vcombine.low %v3400, %v3401
        %v3428 = vunpack.c.l.s4 1983009808
        %v3429 = vunpack.c.0.s8 %v3428
        %v3430 = vlaneseq
        %v3431 = vshrl.u32 %v3430, 7
        %v3432 = vsub.s32 %v3429, %v3431
        %v3433 = vrot.slane %v3426, %v3432
        %v3434 = vcombine.low %v3409, %v3417
        %v3435 = vcombine.high %v3409, %v3417
        %v3437 = vunpack.c.l.s4 1934713408
        %v3438 = vunpack.c.0.s8 %v3437
        %v3439 = vlaneseq
        %v3440 = vshrl.u32 %v3439, 7
        %v3441 = vsub.s32 %v3438, %v3440
        %v3442 = vrot.slane %v3434, %v3441
        %v3444 = vunpack.c.l.s4 1934713408
        %v3445 = vunpack.c.0.s8 %v3444
        %v3446 = vlaneseq
        %v3447 = vshrl.u32 %v3446, 7
        %v3448 = vsub.s32 %v3445, %v3447
        %v3449 = vrot.slane %v3435, %v3448
        %v3450 = vcombine.low %v3425, %v3433
        %v3451 = vcombine.high %v3425, %v3433
        %v3453 = vunpack.c.l.s4 1934713408
        %v3454 = vunpack.c.0.s8 %v3453
        %v3455 = vlaneseq
        %v3456 = vshrl.u32 %v3455, 7
        %v3457 = vsub.s32 %v3454, %v3456
        %v3458 = vrot.slane %v3450, %v3457
        %v3460 = vunpack.c.l.s4 1934713408
        %v3461 = vunpack.c.0.s8 %v3460
        %v3462 = vlaneseq
        %v3463 = vshrl.u32 %v3462, 7
        %v3464 = vsub.s32 %v3461, %v3463
        %v3465 = vrot.slane %v3451, %v3464
        %v3466 = vcombine.low %v3442, %v3458
        %v3467 = vcombine.high %v3442, %v3458
        %v3468 = vcombine.low %v3449, %v3465
        %v3469 = vcombine.high %v3449, %v3465
        %3471 = vrot.lane.b32.xlu0 %v3173, 120
        %v3472 = vpop.permute.xlu0 %3471
        %3474 = vrot.lane.b32.xlu0 %v3173, 112
        %v3475 = vpop.permute.xlu0 %3474
        %3477 = vrot.lane.b32.xlu0 %v3173, 104
        %v3478 = vpop.permute.xlu0 %3477
        %v3480 = vcombine.low %v3173, %v3475
        %v3481 = vcombine.high %v3173, %v3475
        %v3483 = vunpack.c.l.s4 1983009808
        %v3484 = vunpack.c.0.s8 %v3483
        %v3485 = vlaneseq
        %v3486 = vshrl.u32 %v3485, 7
        %v3487 = vsub.s32 %v3484, %v3486
        %v3488 = vrot.slane %v3480, %v3487
        %v3490 = vunpack.c.l.s4 1983009808
        %v3491 = vunpack.c.0.s8 %v3490
        %v3492 = vlaneseq
        %v3493 = vshrl.u32 %v3492, 7
        %v3494 = vsub.s32 %v3491, %v3493
        %v3495 = vrot.slane %v3481, %v3494
        %v3496 = vcombine.low %v3472, %v3478
        %v3497 = vcombine.high %v3472, %v3478
        %v3499 = vunpack.c.l.s4 1983009808
        %v3500 = vunpack.c.0.s8 %v3499
        %v3501 = vlaneseq
        %v3502 = vshrl.u32 %v3501, 7
        %v3503 = vsub.s32 %v3500, %v3502
        %v3504 = vrot.slane %v3496, %v3503
        %v3506 = vunpack.c.l.s4 1983009808
        %v3507 = vunpack.c.0.s8 %v3506
        %v3508 = vlaneseq
        %v3509 = vshrl.u32 %v3508, 7
        %v3510 = vsub.s32 %v3507, %v3509
        %v3511 = vrot.slane %v3497, %v3510
        %v3512 = vcombine.low %v3488, %v3504
        %v3513 = vcombine.high %v3488, %v3504
        %v3515 = vunpack.c.l.s4 1934713408
        %v3516 = vunpack.c.0.s8 %v3515
        %v3517 = vlaneseq
        %v3518 = vshrl.u32 %v3517, 7
        %v3519 = vsub.s32 %v3516, %v3518
        %v3520 = vrot.slane %v3512, %v3519
        %v3522 = vunpack.c.l.s4 1934713408
        %v3523 = vunpack.c.0.s8 %v3522
        %v3524 = vlaneseq
        %v3525 = vshrl.u32 %v3524, 7
        %v3526 = vsub.s32 %v3523, %v3525
        %v3527 = vrot.slane %v3513, %v3526
        %v3528 = vcombine.low %v3495, %v3511
        %v3529 = vcombine.high %v3495, %v3511
        %v3531 = vunpack.c.l.s4 1934713408
        %v3532 = vunpack.c.0.s8 %v3531
        %v3533 = vlaneseq
        %v3534 = vshrl.u32 %v3533, 7
        %v3535 = vsub.s32 %v3532, %v3534
        %v3536 = vrot.slane %v3528, %v3535
        %v3538 = vunpack.c.l.s4 1934713408
        %v3539 = vunpack.c.0.s8 %v3538
        %v3540 = vlaneseq
        %v3541 = vshrl.u32 %v3540, 7
        %v3542 = vsub.s32 %v3539, %v3541
        %v3543 = vrot.slane %v3529, %v3542
        %v3544 = vcombine.high %v3520, 0.0
        %v3545 = vcombine.high %v3527, 0.0
        %v3546 = vcombine.high %v3536, 0.0
        %v3547 = vcombine.high %v3543, 0.0
        %v3548 = vcombine.low %v3520, %v3527
        %v3550 = vunpack.c.l.s4 1983009808
        %v3551 = vunpack.c.0.s8 %v3550
        %v3552 = vlaneseq
        %v3553 = vshrl.u32 %v3552, 7
        %v3554 = vsub.s32 %v3551, %v3553
        %v3555 = vrot.slane %v3548, %v3554
        %v3556 = vcombine.low %v3544, %v3545
        %v3558 = vunpack.c.l.s4 1983009808
        %v3559 = vunpack.c.0.s8 %v3558
        %v3560 = vlaneseq
        %v3561 = vshrl.u32 %v3560, 7
        %v3562 = vsub.s32 %v3559, %v3561
        %v3563 = vrot.slane %v3556, %v3562
        %v3564 = vcombine.low %v3536, %v3543
        %v3566 = vunpack.c.l.s4 1983009808
        %v3567 = vunpack.c.0.s8 %v3566
        %v3568 = vlaneseq
        %v3569 = vshrl.u32 %v3568, 7
        %v3570 = vsub.s32 %v3567, %v3569
        %v3571 = vrot.slane %v3564, %v3570
        %v3572 = vcombine.low %v3546, %v3547
        %v3574 = vunpack.c.l.s4 1983009808
        %v3575 = vunpack.c.0.s8 %v3574
        %v3576 = vlaneseq
        %v3577 = vshrl.u32 %v3576, 7
        %v3578 = vsub.s32 %v3575, %v3577
        %v3579 = vrot.slane %v3572, %v3578
        %v3580 = vcombine.low %v3555, %v3563
        %v3581 = vcombine.high %v3555, %v3563
        %v3583 = vunpack.c.l.s4 1934713408
        %v3584 = vunpack.c.0.s8 %v3583
        %v3585 = vlaneseq
        %v3586 = vshrl.u32 %v3585, 7
        %v3587 = vsub.s32 %v3584, %v3586
        %v3588 = vrot.slane %v3580, %v3587
        %v3590 = vunpack.c.l.s4 1934713408
        %v3591 = vunpack.c.0.s8 %v3590
        %v3592 = vlaneseq
        %v3593 = vshrl.u32 %v3592, 7
        %v3594 = vsub.s32 %v3591, %v3593
        %v3595 = vrot.slane %v3581, %v3594
        %v3596 = vcombine.low %v3571, %v3579
        %v3597 = vcombine.high %v3571, %v3579
        %v3599 = vunpack.c.l.s4 1934713408
        %v3600 = vunpack.c.0.s8 %v3599
        %v3601 = vlaneseq
        %v3602 = vshrl.u32 %v3601, 7
        %v3603 = vsub.s32 %v3600, %v3602
        %v3604 = vrot.slane %v3596, %v3603
        %v3606 = vunpack.c.l.s4 1934713408
        %v3607 = vunpack.c.0.s8 %v3606
        %v3608 = vlaneseq
        %v3609 = vshrl.u32 %v3608, 7
        %v3610 = vsub.s32 %v3607, %v3609
        %v3611 = vrot.slane %v3597, %v3610
        %v3612 = vcombine.low %v3588, %v3604
        %v3613 = vcombine.high %v3588, %v3604
        %v3614 = vcombine.low %v3595, %v3611
        %v3615 = vcombine.high %v3595, %v3611
        %v3616 = vpack.c.bf16 %v3320, %v3320
        %v3617 = vpack.c.bf16 %v3321, %v3321
        %v3618 = vpack.c.bf16 %v3322, %v3322
        %v3619 = vpack.c.bf16 %v3323, %v3323
        %v3620 = vpack.c.bf16 %v3466, %v3466
        %v3621 = vpack.c.bf16 %v3467, %v3467
        %v3622 = vpack.c.bf16 %v3468, %v3468
        %v3623 = vpack.c.bf16 %v3469, %v3469
        %v3625 = vsel %vm2046, %v3616, 0
        %v3628 = vsel %vm2046, %v3620, 0
        %3630 = vmatprep.subr.bf16.mxu0 0
        %3631 = vmatpush1.bf16.xpose.msra.mxu0 %v3628
        %3632 = vmatprep.subr.bf16.mxu0 0
        %3633 = vmatpush1.bf16.xpose.msra.mxu0 0
        %3634 = vmatprep.subr.bf16.mxu0 0
        %3635 = vmatpush1.bf16.xpose.msra.mxu0 0
        %3636 = vmatprep.subr.bf16.mxu0 0
        %3637 = vmatpush1.bf16.xpose.msra.mxu0 0
        %3638 = vmatprep.subr.bf16.mxu0 0
        %3639 = vmatpush1.bf16.xpose.msra.mxu0 0
        %3640 = vmatprep.subr.bf16.mxu0 0
        %3641 = vmatpush1.bf16.xpose.msra.mxu0 0
        %3642 = vmatprep.subr.bf16.mxu0 0
        %3643 = vmatpush1.bf16.xpose.msra.mxu0 0
        %3644 = vmatprep.subr.bf16.mxu0 0
        %3645 = vmatpush1.bf16.xpose.msra.mxu0 0
        %3646 = vmatprep.subr.bf16.mxu0 0
        %3647 = vmatpush1.bf16.xpose.msra.mxu0 0
        %3648 = vmatprep.subr.bf16.mxu0 0
        %3649 = vmatpush1.bf16.xpose.msra.mxu0 0
        %3650 = vmatprep.subr.bf16.mxu0 0
        %3651 = vmatpush1.bf16.xpose.msra.mxu0 0
        %3652 = vmatprep.subr.bf16.mxu0 0
        %3653 = vmatpush1.bf16.xpose.msra.mxu0 0
        %3654 = vmatprep.subr.bf16.mxu0 0
        %3655 = vmatpush1.bf16.xpose.msra.mxu0 0
        %3656 = vmatprep.subr.bf16.mxu0 0
        %3657 = vmatpush1.bf16.xpose.msra.mxu0 0
        %3658 = vmatprep.subr.bf16.mxu0 0
        %3659 = vmatpush1.bf16.xpose.msra.mxu0 0
        %3660 = vmatprep.subr.bf16.mxu0 0
        %3661 = vmatpush1.bf16.xpose.msra.mxu0 0
        %3662 = vmatprep.mubr.bf16.mxu0 0
        %3663 = vmatmul.mubr.bf16.gmra.mrb[0].mxu0 %v3625
        %v3664 = vpop.f32.mrb[0].mxu0
        %v3665 = vadd.f32 0.0, %v3664
        %v3666 = vpop.f32.mrb[0].mxu0
        %v3667 = vpop.f32.mrb[0].mxu0
        %v3668 = vpop.f32.mrb[0].mxu0
        %3669 = vdwg.mxu0
        %v3671 = vsel %vm2046, %v3617, 0
        %v3674 = vsel %vm2046, %v3621, 0
        %3676 = vmatprep.subr.bf16.mxu0 0
        %3677 = vmatpush1.bf16.xpose.msra.mxu0 %v3674
        %3678 = vmatprep.subr.bf16.mxu0 0
        %3679 = vmatpush1.bf16.xpose.msra.mxu0 0
        %3680 = vmatprep.subr.bf16.mxu0 0
        %3681 = vmatpush1.bf16.xpose.msra.mxu0 0
        %3682 = vmatprep.subr.bf16.mxu0 0
        %3683 = vmatpush1.bf16.xpose.msra.mxu0 0
        %3684 = vmatprep.subr.bf16.mxu0 0
        %3685 = vmatpush1.bf16.xpose.msra.mxu0 0
        %3686 = vmatprep.subr.bf16.mxu0 0
        %3687 = vmatpush1.bf16.xpose.msra.mxu0 0
        %3688 = vmatprep.subr.bf16.mxu0 0
        %3689 = vmatpush1.bf16.xpose.msra.mxu0 0
        %3690 = vmatprep.subr.bf16.mxu0 0
        %3691 = vmatpush1.bf16.xpose.msra.mxu0 0
        %3692 = vmatprep.subr.bf16.mxu0 0
        %3693 = vmatpush1.bf16.xpose.msra.mxu0 0
        %3694 = vmatprep.subr.bf16.mxu0 0
        %3695 = vmatpush1.bf16.xpose.msra.mxu0 0
        %3696 = vmatprep.subr.bf16.mxu0 0
        %3697 = vmatpush1.bf16.xpose.msra.mxu0 0
        %3698 = vmatprep.subr.bf16.mxu0 0
        %3699 = vmatpush1.bf16.xpose.msra.mxu0 0
        %3700 = vmatprep.subr.bf16.mxu0 0
        %3701 = vmatpush1.bf16.xpose.msra.mxu0 0
        %3702 = vmatprep.subr.bf16.mxu0 0
        %3703 = vmatpush1.bf16.xpose.msra.mxu0 0
        %3704 = vmatprep.subr.bf16.mxu0 0
        %3705 = vmatpush1.bf16.xpose.msra.mxu0 0
        %3706 = vmatprep.subr.bf16.mxu0 0
        %3707 = vmatpush1.bf16.xpose.msra.mxu0 0
        %3708 = vmatprep.mubr.bf16.mxu0 0
        %3709 = vmatmul.mubr.bf16.gmra.mrb[0].mxu0 %v3671
        %v3710 = vpop.f32.mrb[0].mxu0
        %v3711 = vadd.f32 0.0, %v3710
        %v3712 = vpop.f32.mrb[0].mxu0
        %v3713 = vpop.f32.mrb[0].mxu0
        %v3714 = vpop.f32.mrb[0].mxu0
        %3715 = vdwg.mxu0
        %v3717 = vsel %vm2046, %v3618, 0
        %v3720 = vsel %vm2046, %v3622, 0
        %3722 = vmatprep.subr.bf16.mxu0 0
        %3723 = vmatpush1.bf16.xpose.msra.mxu0 %v3720
        %3724 = vmatprep.subr.bf16.mxu0 0
        %3725 = vmatpush1.bf16.xpose.msra.mxu0 0
        %3726 = vmatprep.subr.bf16.mxu0 0
        %3727 = vmatpush1.bf16.xpose.msra.mxu0 0
        %3728 = vmatprep.subr.bf16.mxu0 0
        %3729 = vmatpush1.bf16.xpose.msra.mxu0 0
        %3730 = vmatprep.subr.bf16.mxu0 0
        %3731 = vmatpush1.bf16.xpose.msra.mxu0 0
        %3732 = vmatprep.subr.bf16.mxu0 0
        %3733 = vmatpush1.bf16.xpose.msra.mxu0 0
        %3734 = vmatprep.subr.bf16.mxu0 0
        %3735 = vmatpush1.bf16.xpose.msra.mxu0 0
        %3736 = vmatprep.subr.bf16.mxu0 0
        %3737 = vmatpush1.bf16.xpose.msra.mxu0 0
        %3738 = vmatprep.subr.bf16.mxu0 0
        %3739 = vmatpush1.bf16.xpose.msra.mxu0 0
        %3740 = vmatprep.subr.bf16.mxu0 0
        %3741 = vmatpush1.bf16.xpose.msra.mxu0 0
        %3742 = vmatprep.subr.bf16.mxu0 0
        %3743 = vmatpush1.bf16.xpose.msra.mxu0 0
        %3744 = vmatprep.subr.bf16.mxu0 0
        %3745 = vmatpush1.bf16.xpose.msra.mxu0 0
        %3746 = vmatprep.subr.bf16.mxu0 0
        %3747 = vmatpush1.bf16.xpose.msra.mxu0 0
        %3748 = vmatprep.subr.bf16.mxu0 0
        %3749 = vmatpush1.bf16.xpose.msra.mxu0 0
        %3750 = vmatprep.subr.bf16.mxu0 0
        %3751 = vmatpush1.bf16.xpose.msra.mxu0 0
        %3752 = vmatprep.subr.bf16.mxu0 0
        %3753 = vmatpush1.bf16.xpose.msra.mxu0 0
        %3754 = vmatprep.mubr.bf16.mxu0 0
        %3755 = vmatmul.mubr.bf16.gmra.mrb[0].mxu0 %v3717
        %v3756 = vpop.f32.mrb[0].mxu0
        %v3757 = vadd.f32 0.0, %v3756
        %v3758 = vpop.f32.mrb[0].mxu0
        %v3759 = vpop.f32.mrb[0].mxu0
        %v3760 = vpop.f32.mrb[0].mxu0
        %3761 = vdwg.mxu0
        %v3763 = vsel %vm2046, %v3619, 0
        %v3766 = vsel %vm2046, %v3623, 0
        %3768 = vmatprep.subr.bf16.mxu0 0
        %3769 = vmatpush1.bf16.xpose.msra.mxu0 %v3766
        %3770 = vmatprep.subr.bf16.mxu0 0
        %3771 = vmatpush1.bf16.xpose.msra.mxu0 0
        %3772 = vmatprep.subr.bf16.mxu0 0
        %3773 = vmatpush1.bf16.xpose.msra.mxu0 0
        %3774 = vmatprep.subr.bf16.mxu0 0
        %3775 = vmatpush1.bf16.xpose.msra.mxu0 0
        %3776 = vmatprep.subr.bf16.mxu0 0
        %3777 = vmatpush1.bf16.xpose.msra.mxu0 0
        %3778 = vmatprep.subr.bf16.mxu0 0
        %3779 = vmatpush1.bf16.xpose.msra.mxu0 0
        %3780 = vmatprep.subr.bf16.mxu0 0
        %3781 = vmatpush1.bf16.xpose.msra.mxu0 0
        %3782 = vmatprep.subr.bf16.mxu0 0
        %3783 = vmatpush1.bf16.xpose.msra.mxu0 0
        %3784 = vmatprep.subr.bf16.mxu0 0
        %3785 = vmatpush1.bf16.xpose.msra.mxu0 0
        %3786 = vmatprep.subr.bf16.mxu0 0
        %3787 = vmatpush1.bf16.xpose.msra.mxu0 0
        %3788 = vmatprep.subr.bf16.mxu0 0
        %3789 = vmatpush1.bf16.xpose.msra.mxu0 0
        %3790 = vmatprep.subr.bf16.mxu0 0
        %3791 = vmatpush1.bf16.xpose.msra.mxu0 0
        %3792 = vmatprep.subr.bf16.mxu0 0
        %3793 = vmatpush1.bf16.xpose.msra.mxu0 0
        %3794 = vmatprep.subr.bf16.mxu0 0
        %3795 = vmatpush1.bf16.xpose.msra.mxu0 0
        %3796 = vmatprep.subr.bf16.mxu0 0
        %3797 = vmatpush1.bf16.xpose.msra.mxu0 0
        %3798 = vmatprep.subr.bf16.mxu0 0
        %3799 = vmatpush1.bf16.xpose.msra.mxu0 0
        %3800 = vmatprep.mubr.bf16.mxu0 0
        %3801 = vmatmul.mubr.bf16.gmra.mrb[0].mxu0 %v3763
        %v3802 = vpop.f32.mrb[0].mxu0
        %v3803 = vadd.f32 0.0, %v3802
        %v3804 = vpop.f32.mrb[0].mxu0
        %v3805 = vpop.f32.mrb[0].mxu0
        %v3806 = vpop.f32.mrb[0].mxu0
        %3807 = vdwg.mxu0
        %v3808 = vmul.f32 %v3665, 0.35355338
        %v3809 = vmul.f32 %v3711, 0.35355338
        %v3810 = vmul.f32 %v3757, 0.35355338
        %v3811 = vmul.f32 %v3803, 0.35355338
        %v3812 = vsel %vm2046, %v3808, -inf
        %3813 = vmax.xlane.f32.xlu0 %v3812
        %v3814 = vpop.xlane.xlu0 %3813
        %v3815 = vsel %vm2046, %v3809, -inf
        %3816 = vmax.xlane.f32.xlu0 %v3815
        %v3817 = vpop.xlane.xlu0 %3816
        %v3818 = vsel %vm2046, %v3810, -inf
        %3819 = vmax.xlane.f32.xlu0 %v3818
        %v3820 = vpop.xlane.xlu0 %3819
        %v3821 = vsel %vm2046, %v3811, -inf
        %3822 = vmax.xlane.f32.xlu0 %v3821
        %v3823 = vpop.xlane.xlu0 %3822
        %v3824 = vsub.f32 %v3808, %v3814
        %v3825 = vsub.f32 %v3809, %v3817
        %v3826 = vsub.f32 %v3810, %v3820
        %v3827 = vsub.f32 %v3811, %v3823
        %v3828 = vmul.f32 %v3824, 1.442695
        %v3829 = vpow.pop %v3828
        %v3830 = vmul.f32 %v3825, 1.442695
        %v3831 = vpow.pop %v3830
        %v3832 = vmul.f32 %v3826, 1.442695
        %v3833 = vpow.pop %v3832
        %v3834 = vmul.f32 %v3827, 1.442695
        %v3835 = vpow.pop %v3834
        %v3836 = vsel %vm2046, %v3829, 0.0
        %3837 = vadd.xlane.f32.xlu0 %v3836
        %v3838 = vpop.xlane.xlu0 %3837
        %v3839 = vsel %vm2046, %v3831, 0.0
        %3840 = vadd.xlane.f32.xlu0 %v3839
        %v3841 = vpop.xlane.xlu0 %3840
        %v3842 = vsel %vm2046, %v3833, 0.0
        %3843 = vadd.xlane.f32.xlu0 %v3842
        %v3844 = vpop.xlane.xlu0 %3843
        %v3845 = vsel %vm2046, %v3835, 0.0
        %3846 = vadd.xlane.f32.xlu0 %v3845
        %v3847 = vpop.xlane.xlu0 %3846
        %v3848 = vrcp.pop %v3838
        %v3849 = vrcp.pop %v3841
        %v3850 = vrcp.pop %v3844
        %v3851 = vrcp.pop %v3847
        %v3852 = vmul.f32 %v3829, %v3848
        %v3853 = vmul.f32 %v3831, %v3849
        %v3854 = vmul.f32 %v3833, %v3850
        %v3855 = vmul.f32 %v3835, %v3851
        %v3856 = vpack.c.bf16 %v3852, %v3852
        %v3857 = vpack.c.bf16 %v3853, %v3853
        %v3858 = vpack.c.bf16 %v3854, %v3854
        %v3859 = vpack.c.bf16 %v3855, %v3855
        %v3860 = vpack.c.bf16 %v3612, %v3612
        %v3861 = vpack.c.bf16 %v3613, %v3613
        %v3862 = vpack.c.bf16 %v3614, %v3614
        %v3863 = vpack.c.bf16 %v3615, %v3615
        %v3865 = vsel %vm2046, %v3856, 0
        %v3868 = vsel %vm2290, %v3860, 0
        %3870 = vmatprep.subr.bf16.mxu0 0
        %3871 = vmatpush1.bf16.msra.mxu0 %v3868
        %3872 = vmatprep.subr.bf16.mxu0 0
        %3873 = vmatpush1.bf16.msra.mxu0 0
        %3874 = vmatprep.subr.bf16.mxu0 0
        %3875 = vmatpush1.bf16.msra.mxu0 0
        %3876 = vmatprep.subr.bf16.mxu0 0
        %3877 = vmatpush1.bf16.msra.mxu0 0
        %3878 = vmatprep.subr.bf16.mxu0 0
        %3879 = vmatpush1.bf16.msra.mxu0 0
        %3880 = vmatprep.subr.bf16.mxu0 0
        %3881 = vmatpush1.bf16.msra.mxu0 0
        %3882 = vmatprep.subr.bf16.mxu0 0
        %3883 = vmatpush1.bf16.msra.mxu0 0
        %3884 = vmatprep.subr.bf16.mxu0 0
        %3885 = vmatpush1.bf16.msra.mxu0 0
        %3886 = vmatprep.subr.bf16.mxu0 0
        %3887 = vmatpush1.bf16.msra.mxu0 0
        %3888 = vmatprep.subr.bf16.mxu0 0
        %3889 = vmatpush1.bf16.msra.mxu0 0
        %3890 = vmatprep.subr.bf16.mxu0 0
        %3891 = vmatpush1.bf16.msra.mxu0 0
        %3892 = vmatprep.subr.bf16.mxu0 0
        %3893 = vmatpush1.bf16.msra.mxu0 0
        %3894 = vmatprep.subr.bf16.mxu0 0
        %3895 = vmatpush1.bf16.msra.mxu0 0
        %3896 = vmatprep.subr.bf16.mxu0 0
        %3897 = vmatpush1.bf16.msra.mxu0 0
        %3898 = vmatprep.subr.bf16.mxu0 0
        %3899 = vmatpush1.bf16.msra.mxu0 0
        %3900 = vmatprep.subr.bf16.mxu0 0
        %3901 = vmatpush1.bf16.msra.mxu0 0
        %3902 = vmatprep.mubr.bf16.mxu0 0
        %3903 = vmatmul.mubr.bf16.gmra.mrb[0].mxu0 %v3865
        %v3904 = vpop.f32.mrb[0].mxu0
        %v3905 = vadd.f32 0.0, %v3904
        %v3906 = vpop.f32.mrb[0].mxu0
        %v3907 = vpop.f32.mrb[0].mxu0
        %v3908 = vpop.f32.mrb[0].mxu0
        %3909 = vdwg.mxu0
        %v3911 = vsel %vm2046, %v3857, 0
        %v3914 = vsel %vm2290, %v3861, 0
        %3916 = vmatprep.subr.bf16.mxu0 0
        %3917 = vmatpush1.bf16.msra.mxu0 %v3914
        %3918 = vmatprep.subr.bf16.mxu0 0
        %3919 = vmatpush1.bf16.msra.mxu0 0
        %3920 = vmatprep.subr.bf16.mxu0 0
        %3921 = vmatpush1.bf16.msra.mxu0 0
        %3922 = vmatprep.subr.bf16.mxu0 0
        %3923 = vmatpush1.bf16.msra.mxu0 0
        %3924 = vmatprep.subr.bf16.mxu0 0
        %3925 = vmatpush1.bf16.msra.mxu0 0
        %3926 = vmatprep.subr.bf16.mxu0 0
        %3927 = vmatpush1.bf16.msra.mxu0 0
        %3928 = vmatprep.subr.bf16.mxu0 0
        %3929 = vmatpush1.bf16.msra.mxu0 0
        %3930 = vmatprep.subr.bf16.mxu0 0
        %3931 = vmatpush1.bf16.msra.mxu0 0
        %3932 = vmatprep.subr.bf16.mxu0 0
        %3933 = vmatpush1.bf16.msra.mxu0 0
        %3934 = vmatprep.subr.bf16.mxu0 0
        %3935 = vmatpush1.bf16.msra.mxu0 0
        %3936 = vmatprep.subr.bf16.mxu0 0
        %3937 = vmatpush1.bf16.msra.mxu0 0
        %3938 = vmatprep.subr.bf16.mxu0 0
        %3939 = vmatpush1.bf16.msra.mxu0 0
        %3940 = vmatprep.subr.bf16.mxu0 0
        %3941 = vmatpush1.bf16.msra.mxu0 0
        %3942 = vmatprep.subr.bf16.mxu0 0
        %3943 = vmatpush1.bf16.msra.mxu0 0
        %3944 = vmatprep.subr.bf16.mxu0 0
        %3945 = vmatpush1.bf16.msra.mxu0 0
        %3946 = vmatprep.subr.bf16.mxu0 0
        %3947 = vmatpush1.bf16.msra.mxu0 0
        %3948 = vmatprep.mubr.bf16.mxu0 0
        %3949 = vmatmul.mubr.bf16.gmra.mrb[0].mxu0 %v3911
        %v3950 = vpop.f32.mrb[0].mxu0
        %v3951 = vadd.f32 0.0, %v3950
        %v3952 = vpop.f32.mrb[0].mxu0
        %v3953 = vpop.f32.mrb[0].mxu0
        %v3954 = vpop.f32.mrb[0].mxu0
        %3955 = vdwg.mxu0
        %v3957 = vsel %vm2046, %v3858, 0
        %v3960 = vsel %vm2290, %v3862, 0
        %3962 = vmatprep.subr.bf16.mxu0 0
        %3963 = vmatpush1.bf16.msra.mxu0 %v3960
        %3964 = vmatprep.subr.bf16.mxu0 0
        %3965 = vmatpush1.bf16.msra.mxu0 0
        %3966 = vmatprep.subr.bf16.mxu0 0
        %3967 = vmatpush1.bf16.msra.mxu0 0
        %3968 = vmatprep.subr.bf16.mxu0 0
        %3969 = vmatpush1.bf16.msra.mxu0 0
        %3970 = vmatprep.subr.bf16.mxu0 0
        %3971 = vmatpush1.bf16.msra.mxu0 0
        %3972 = vmatprep.subr.bf16.mxu0 0
        %3973 = vmatpush1.bf16.msra.mxu0 0
        %3974 = vmatprep.subr.bf16.mxu0 0
        %3975 = vmatpush1.bf16.msra.mxu0 0
        %3976 = vmatprep.subr.bf16.mxu0 0
        %3977 = vmatpush1.bf16.msra.mxu0 0
        %3978 = vmatprep.subr.bf16.mxu0 0
        %3979 = vmatpush1.bf16.msra.mxu0 0
        %3980 = vmatprep.subr.bf16.mxu0 0
        %3981 = vmatpush1.bf16.msra.mxu0 0
        %3982 = vmatprep.subr.bf16.mxu0 0
        %3983 = vmatpush1.bf16.msra.mxu0 0
        %3984 = vmatprep.subr.bf16.mxu0 0
        %3985 = vmatpush1.bf16.msra.mxu0 0
        %3986 = vmatprep.subr.bf16.mxu0 0
        %3987 = vmatpush1.bf16.msra.mxu0 0
        %3988 = vmatprep.subr.bf16.mxu0 0
        %3989 = vmatpush1.bf16.msra.mxu0 0
        %3990 = vmatprep.subr.bf16.mxu0 0
        %3991 = vmatpush1.bf16.msra.mxu0 0
        %3992 = vmatprep.subr.bf16.mxu0 0
        %3993 = vmatpush1.bf16.msra.mxu0 0
        %3994 = vmatprep.mubr.bf16.mxu0 0
        %3995 = vmatmul.mubr.bf16.gmra.mrb[0].mxu0 %v3957
        %v3996 = vpop.f32.mrb[0].mxu0
        %v3997 = vadd.f32 0.0, %v3996
        %v3998 = vpop.f32.mrb[0].mxu0
        %v3999 = vpop.f32.mrb[0].mxu0
        %v4000 = vpop.f32.mrb[0].mxu0
        %4001 = vdwg.mxu0
        %v4003 = vsel %vm2046, %v3859, 0
        %v4006 = vsel %vm2290, %v3863, 0
        %4008 = vmatprep.subr.bf16.mxu0 0
        %4009 = vmatpush1.bf16.msra.mxu0 %v4006
        %4010 = vmatprep.subr.bf16.mxu0 0
        %4011 = vmatpush1.bf16.msra.mxu0 0
        %4012 = vmatprep.subr.bf16.mxu0 0
        %4013 = vmatpush1.bf16.msra.mxu0 0
        %4014 = vmatprep.subr.bf16.mxu0 0
        %4015 = vmatpush1.bf16.msra.mxu0 0
        %4016 = vmatprep.subr.bf16.mxu0 0
        %4017 = vmatpush1.bf16.msra.mxu0 0
        %4018 = vmatprep.subr.bf16.mxu0 0
        %4019 = vmatpush1.bf16.msra.mxu0 0
        %4020 = vmatprep.subr.bf16.mxu0 0
        %4021 = vmatpush1.bf16.msra.mxu0 0
        %4022 = vmatprep.subr.bf16.mxu0 0
        %4023 = vmatpush1.bf16.msra.mxu0 0
        %4024 = vmatprep.subr.bf16.mxu0 0
        %4025 = vmatpush1.bf16.msra.mxu0 0
        %4026 = vmatprep.subr.bf16.mxu0 0
        %4027 = vmatpush1.bf16.msra.mxu0 0
        %4028 = vmatprep.subr.bf16.mxu0 0
        %4029 = vmatpush1.bf16.msra.mxu0 0
        %4030 = vmatprep.subr.bf16.mxu0 0
        %4031 = vmatpush1.bf16.msra.mxu0 0
        %4032 = vmatprep.subr.bf16.mxu0 0
        %4033 = vmatpush1.bf16.msra.mxu0 0
        %4034 = vmatprep.subr.bf16.mxu0 0
        %4035 = vmatpush1.bf16.msra.mxu0 0
        %4036 = vmatprep.subr.bf16.mxu0 0
        %4037 = vmatpush1.bf16.msra.mxu0 0
        %4038 = vmatprep.subr.bf16.mxu0 0
        %4039 = vmatpush1.bf16.msra.mxu0 0
        %4040 = vmatprep.mubr.bf16.mxu0 0
        %4041 = vmatmul.mubr.bf16.gmra.mrb[0].mxu0 %v4003
        %v4042 = vpop.f32.mrb[0].mxu0
        %v4043 = vadd.f32 0.0, %v4042
        %v4044 = vpop.f32.mrb[0].mxu0
        %v4045 = vpop.f32.mrb[0].mxu0
        %v4046 = vpop.f32.mrb[0].mxu0
        %4047 = vdwg.mxu0
        %v4048 = vcombine.low %v3905, %v3997
        %v4049 = vcombine.high %v3905, %v3997
        %v4051 = vunpack.c.l.s4 1983009808
        %v4052 = vunpack.c.0.s8 %v4051
        %v4053 = vlaneseq
        %v4054 = vshrl.u32 %v4053, 7
        %v4055 = vsub.s32 %v4052, %v4054
        %v4056 = vrot.slane %v4048, %v4055
        %v4058 = vunpack.c.l.s4 1983009808
        %v4059 = vunpack.c.0.s8 %v4058
        %v4060 = vlaneseq
        %v4061 = vshrl.u32 %v4060, 7
        %v4062 = vsub.s32 %v4059, %v4061
        %v4063 = vrot.slane %v4049, %v4062
        %v4064 = vcombine.low %v3951, %v4043
        %v4065 = vcombine.high %v3951, %v4043
        %v4067 = vunpack.c.l.s4 1983009808
        %v4068 = vunpack.c.0.s8 %v4067
        %v4069 = vlaneseq
        %v4070 = vshrl.u32 %v4069, 7
        %v4071 = vsub.s32 %v4068, %v4070
        %v4072 = vrot.slane %v4064, %v4071
        %v4074 = vunpack.c.l.s4 1983009808
        %v4075 = vunpack.c.0.s8 %v4074
        %v4076 = vlaneseq
        %v4077 = vshrl.u32 %v4076, 7
        %v4078 = vsub.s32 %v4075, %v4077
        %v4079 = vrot.slane %v4065, %v4078
        %v4080 = vcombine.low %v4056, %v4072
        %v4081 = vcombine.high %v4056, %v4072
        %v4083 = vunpack.c.l.s4 1934713408
        %v4084 = vunpack.c.0.s8 %v4083
        %v4085 = vlaneseq
        %v4086 = vshrl.u32 %v4085, 7
        %v4087 = vsub.s32 %v4084, %v4086
        %v4088 = vrot.slane %v4080, %v4087
        %v4090 = vunpack.c.l.s4 1934713408
        %v4091 = vunpack.c.0.s8 %v4090
        %v4092 = vlaneseq
        %v4093 = vshrl.u32 %v4092, 7
        %v4094 = vsub.s32 %v4091, %v4093
        %v4095 = vrot.slane %v4081, %v4094
        %v4096 = vcombine.low %v4063, %v4079
        %v4097 = vcombine.high %v4063, %v4079
        %v4099 = vunpack.c.l.s4 1934713408
        %v4100 = vunpack.c.0.s8 %v4099
        %v4101 = vlaneseq
        %v4102 = vshrl.u32 %v4101, 7
        %v4103 = vsub.s32 %v4100, %v4102
        %v4104 = vrot.slane %v4096, %v4103
        %v4106 = vunpack.c.l.s4 1934713408
        %v4107 = vunpack.c.0.s8 %v4106
        %v4108 = vlaneseq
        %v4109 = vshrl.u32 %v4108, 7
        %v4110 = vsub.s32 %v4107, %v4109
        %v4111 = vrot.slane %v4097, %v4110
        %v4112 = vcombine.high %v4088, 0.0
        %v4113 = vcombine.high %v4095, 0.0
        %v4114 = vcombine.high %v4104, 0.0
        %v4115 = vcombine.high %v4111, 0.0
        %v4116 = vcombine.low %v4088, %v4095
        %v4118 = vunpack.c.l.s4 1983009808
        %v4119 = vunpack.c.0.s8 %v4118
        %v4120 = vlaneseq
        %v4121 = vshrl.u32 %v4120, 7
        %v4122 = vsub.s32 %v4119, %v4121
        %v4123 = vrot.slane %v4116, %v4122
        %v4124 = vcombine.low %v4112, %v4113
        %v4126 = vunpack.c.l.s4 1983009808
        %v4127 = vunpack.c.0.s8 %v4126
        %v4128 = vlaneseq
        %v4129 = vshrl.u32 %v4128, 7
        %v4130 = vsub.s32 %v4127, %v4129
        %v4131 = vrot.slane %v4124, %v4130
        %v4132 = vcombine.low %v4104, %v4111
        %v4134 = vunpack.c.l.s4 1983009808
        %v4135 = vunpack.c.0.s8 %v4134
        %v4136 = vlaneseq
        %v4137 = vshrl.u32 %v4136, 7
        %v4138 = vsub.s32 %v4135, %v4137
        %v4139 = vrot.slane %v4132, %v4138
        %v4140 = vcombine.low %v4114, %v4115
        %v4142 = vunpack.c.l.s4 1983009808
        %v4143 = vunpack.c.0.s8 %v4142
        %v4144 = vlaneseq
        %v4145 = vshrl.u32 %v4144, 7
        %v4146 = vsub.s32 %v4143, %v4145
        %v4147 = vrot.slane %v4140, %v4146
        %v4148 = vcombine.low %v4123, %v4131
        %v4149 = vcombine.high %v4123, %v4131
        %v4151 = vunpack.c.l.s4 1934713408
        %v4152 = vunpack.c.0.s8 %v4151
        %v4153 = vlaneseq
        %v4154 = vshrl.u32 %v4153, 7
        %v4155 = vsub.s32 %v4152, %v4154
        %v4156 = vrot.slane %v4148, %v4155
        %v4158 = vunpack.c.l.s4 1934713408
        %v4159 = vunpack.c.0.s8 %v4158
        %v4160 = vlaneseq
        %v4161 = vshrl.u32 %v4160, 7
        %v4162 = vsub.s32 %v4159, %v4161
        %v4163 = vrot.slane %v4149, %v4162
        %v4164 = vcombine.low %v4139, %v4147
        %v4165 = vcombine.high %v4139, %v4147
        %v4167 = vunpack.c.l.s4 1934713408
        %v4168 = vunpack.c.0.s8 %v4167
        %v4169 = vlaneseq
        %v4170 = vshrl.u32 %v4169, 7
        %v4171 = vsub.s32 %v4168, %v4170
        %v4172 = vrot.slane %v4164, %v4171
        %v4174 = vunpack.c.l.s4 1934713408
        %v4175 = vunpack.c.0.s8 %v4174
        %v4176 = vlaneseq
        %v4177 = vshrl.u32 %v4176, 7
        %v4178 = vsub.s32 %v4175, %v4177
        %v4179 = vrot.slane %v4165, %v4178
        %v4180 = vcombine.low %v4156, %v4172
        %v4181 = vcombine.high %v4156, %v4172
        %v4182 = vcombine.low %v4163, %v4179
        %v4183 = vcombine.high %v4163, %v4179
        %4185 = vrot.lane.b32.xlu0 %v4181, 8
        %v4186 = vpop.permute.xlu0 %4185
        %4189 = vrot.lane.b32.xlu0 %v4182, 16
        %v4190 = vpop.permute.xlu0 %4189
        %4193 = vrot.lane.b32.xlu0 %v4183, 24
        %v4194 = vpop.permute.xlu0 %4193
        %v4196 = vsel %vm2046, %v4180, %v4186
        %v4197 = vsel %vm2621, %v4196, %v4190
        %v4198 = vsel %vm2623, %v4197, %v4194
        %v4199 = vpack.c.bf16 %v4198, %v4198
        %v4200 = vpack.c.bf16 %v3026, %v3025
        %v4201 = vpack.c.bf16 %v3028, %v3027
        %v4203 = vlaneseq
        %v4204 = vshrl.u32 %v4203, 7
        %v4205 = vsub.s32 0, %v4204
        %v4206 = vrot.slane %v3029, %v4205
        %v4209 = vsel %vm1322, %v4199, 0
        %4211 = vmatprep.subr.bf16.mxu0 0
        %4212 = vmatpush1.bf16.msra.mxu0 %v4200
        %4213 = vmatprep.subr.bf16.mxu0 0
        %4214 = vmatpush1.bf16.msra.mxu0 %v4201
        %4215 = vmatprep.subr.bf16.mxu0 0
        %4216 = vmatpush1.bf16.msra.mxu0 0
        %4217 = vmatprep.subr.bf16.mxu0 0
        %4218 = vmatpush1.bf16.msra.mxu0 0
        %4219 = vmatprep.subr.bf16.mxu0 0
        %4220 = vmatpush1.bf16.msra.mxu0 0
        %4221 = vmatprep.subr.bf16.mxu0 0
        %4222 = vmatpush1.bf16.msra.mxu0 0
        %4223 = vmatprep.subr.bf16.mxu0 0
        %4224 = vmatpush1.bf16.msra.mxu0 0
        %4225 = vmatprep.subr.bf16.mxu0 0
        %4226 = vmatpush1.bf16.msra.mxu0 0
        %4227 = vmatprep.subr.bf16.mxu0 0
        %4228 = vmatpush1.bf16.msra.mxu0 0
        %4229 = vmatprep.subr.bf16.mxu0 0
        %4230 = vmatpush1.bf16.msra.mxu0 0
        %4231 = vmatprep.subr.bf16.mxu0 0
        %4232 = vmatpush1.bf16.msra.mxu0 0
        %4233 = vmatprep.subr.bf16.mxu0 0
        %4234 = vmatpush1.bf16.msra.mxu0 0
        %4235 = vmatprep.subr.bf16.mxu0 0
        %4236 = vmatpush1.bf16.msra.mxu0 0
        %4237 = vmatprep.subr.bf16.mxu0 0
        %4238 = vmatpush1.bf16.msra.mxu0 0
        %4239 = vmatprep.subr.bf16.mxu0 0
        %4240 = vmatpush1.bf16.msra.mxu0 0
        %4241 = vmatprep.subr.bf16.mxu0 0
        %4242 = vmatpush1.bf16.msra.mxu0 0
        %4243 = vmatprep.mubr.bf16.mxu0 0
        %4244 = vmatmul.mubr.bf16.gmra.mrb[0].mxu0 %v4209
        %v4245 = vpop.f32.mrb[0].mxu0
        %v4246 = vadd.f32 %v4206, %v4245
        %v4247 = vpop.f32.mrb[0].mxu0
        %v4248 = vpop.f32.mrb[0].mxu0
        %v4249 = vpop.f32.mrb[0].mxu0
        %4250 = vdwg.mxu0
        %v4251 = vld [vmem:[%s65] sm:$0xff]
        %v4252 = vld [vmem:[%s65 + $0x8] sm:$0xff]
        %v4253 = vld [vmem:[%s65 + $0x10] sm:$0xff]
        %v4254 = vld [vmem:[%s65 + $0x18] sm:$0xff]
        %v4255 = vpack.c.bf16 %v4252, %v4251
        %v4256 = vpack.c.bf16 %v4254, %v4253
        %v4257 = vld [vmem:[%s67] sm:$0xff]
        %v4258 = vld [vmem:[%s67 + $0x8] sm:$0xff]
        %v4259 = vld [vmem:[%s67 + $0x10] sm:$0xff]
        %v4260 = vld [vmem:[%s67 + $0x18] sm:$0xff]
        %v4261 = vpack.c.bf16 %v4246, %v4246
        %v4262 = vpack.c.bf16 %v4258, %v4257
        %v4263 = vpack.c.bf16 %v4260, %v4259
        %v4265 = vsel %vm1322, %v4261, 0
        %4267 = vmatprep.subr.bf16.mxu0 0
        %4268 = vmatpush1.bf16.msra.mxu0 %v4262
        %4269 = vmatprep.subr.bf16.mxu0 0
        %4270 = vmatpush1.bf16.msra.mxu0 %v4263
        %4271 = vmatprep.subr.bf16.mxu0 0
        %4272 = vmatpush1.bf16.msra.mxu0 0
        %4273 = vmatprep.subr.bf16.mxu0 0
        %4274 = vmatpush1.bf16.msra.mxu0 0
        %4275 = vmatprep.subr.bf16.mxu0 0
        %4276 = vmatpush1.bf16.msra.mxu0 0
        %4277 = vmatprep.subr.bf16.mxu0 0
        %4278 = vmatpush1.bf16.msra.mxu0 0
        %4279 = vmatprep.subr.bf16.mxu0 0
        %4280 = vmatpush1.bf16.msra.mxu0 0
        %4281 = vmatprep.subr.bf16.mxu0 0
        %4282 = vmatpush1.bf16.msra.mxu0 0
        %4283 = vmatprep.subr.bf16.mxu0 0
        %4284 = vmatpush1.bf16.msra.mxu0 0
        %4285 = vmatprep.subr.bf16.mxu0 0
        %4286 = vmatpush1.bf16.msra.mxu0 0
        %4287 = vmatprep.subr.bf16.mxu0 0
        %4288 = vmatpush1.bf16.msra.mxu0 0
        %4289 = vmatprep.subr.bf16.mxu0 0
        %4290 = vmatpush1.bf16.msra.mxu0 0
        %4291 = vmatprep.subr.bf16.mxu0 0
        %4292 = vmatpush1.bf16.msra.mxu0 0
        %4293 = vmatprep.subr.bf16.mxu0 0
        %4294 = vmatpush1.bf16.msra.mxu0 0
        %4295 = vmatprep.subr.bf16.mxu0 0
        %4296 = vmatpush1.bf16.msra.mxu0 0
        %4297 = vmatprep.subr.bf16.mxu0 0
        %4298 = vmatpush1.bf16.msra.mxu0 0
        %4299 = vmatprep.mubr.bf16.mxu0 0
        %4300 = vmatmul.mubr.bf16.gmra.mrb[0].mxu0 %v4265
        %v4301 = vpop.f32.mrb[0].mxu0
        %v4302 = vadd.f32 0.0, %v4301
        %v4303 = vpop.f32.mrb[0].mxu0
        %v4304 = vpop.f32.mrb[0].mxu0
        %v4305 = vpop.f32.mrb[0].mxu0
        %4306 = vdwg.mxu0
        %4307 = vmatprep.subr.bf16.mxu0 0
        %4308 = vmatpush1.bf16.msra.mxu0 %v4255
        %4309 = vmatprep.subr.bf16.mxu0 0
        %4310 = vmatpush1.bf16.msra.mxu0 %v4256
        %4311 = vmatprep.subr.bf16.mxu0 0
        %4312 = vmatpush1.bf16.msra.mxu0 0
        %4313 = vmatprep.subr.bf16.mxu0 0
        %4314 = vmatpush1.bf16.msra.mxu0 0
        %4315 = vmatprep.subr.bf16.mxu0 0
        %4316 = vmatpush1.bf16.msra.mxu0 0
        %4317 = vmatprep.subr.bf16.mxu0 0
        %4318 = vmatpush1.bf16.msra.mxu0 0
        %4319 = vmatprep.subr.bf16.mxu0 0
        %4320 = vmatpush1.bf16.msra.mxu0 0
        %4321 = vmatprep.subr.bf16.mxu0 0
        %4322 = vmatpush1.bf16.msra.mxu0 0
        %4323 = vmatprep.subr.bf16.mxu0 0
        %4324 = vmatpush1.bf16.msra.mxu0 0
        %4325 = vmatprep.subr.bf16.mxu0 0
        %4326 = vmatpush1.bf16.msra.mxu0 0
        %4327 = vmatprep.subr.bf16.mxu0 0
        %4328 = vmatpush1.bf16.msra.mxu0 0
        %4329 = vmatprep.subr.bf16.mxu0 0
        %4330 = vmatpush1.bf16.msra.mxu0 0
        %4331 = vmatprep.subr.bf16.mxu0 0
        %4332 = vmatpush1.bf16.msra.mxu0 0
        %4333 = vmatprep.subr.bf16.mxu0 0
        %4334 = vmatpush1.bf16.msra.mxu0 0
        %4335 = vmatprep.subr.bf16.mxu0 0
        %4336 = vmatpush1.bf16.msra.mxu0 0
        %4337 = vmatprep.subr.bf16.mxu0 0
        %4338 = vmatpush1.bf16.msra.mxu0 0
        %4339 = vmatprep.mubr.bf16.mxu0 0
        %4340 = vmatmul.mubr.bf16.gmra.mrb[0].mxu0 %v3040
        %v4341 = vpop.f32.mrb[0].mxu0
        %v4342 = vadd.f32 %v4302, %v4341
        %v4343 = vpop.f32.mrb[0].mxu0
        %v4344 = vpop.f32.mrb[0].mxu0
        %v4345 = vpop.f32.mrb[0].mxu0
        %4346 = vdwg.mxu0
        %v4347 = vadd.f32 %v4342, %v3005
        %v4348 = vld [vmem:[%s69] sm:$0x1]
        %v4350 = vlaneseq
        %v4351 = vshrl.u32 %v4350, 7
        %v4352 = vsub.s32 0, %v4351
        %v4353 = vrot.slane %v4348, %v4352
        %v4355 = vadd.f32 %v4347, %v4353
        %v4356 = vxor.u32 %v4355, 2147483648
        %v4357 = vmul.f32 %v4356, 1.442695
        %v4358 = vpow.pop %v4357
        %v4359 = vadd.f32 %v4358, 1.0
        %v4360 = vrcp.pop %v4359
        %v4361 = vmul.f32 1.0, %v4360
        %vm4362 = vcmask 80896
        %4363 = vst.msk [vmem:[%s1301] sm:$0xff] %vm4362, %v4361
        %p4364 = scmp.lt.s32.totalorder %s107, 1
        %s4365 = scalar_select %p4364, %s107, 1
        %s4366 = smul.addr %s4365, 8
        %s4367 = scalar_lea.vmem %s71, %s4366
        %s4368 = sand.u32 %s844, 1
        %s4369 = scalar_lea.sflag [#allocation7], %s4368
        %s4370 = sand.u32 %s844, 1
        %s4371 = smul.addr %s4370, 8
        %s4372 = scalar_lea.vmem [#allocation32], %s4371
        // Predicated region
        $region221: #{tpu_custom_call.1} parent=151 // pred_check
          %p4373 = pneg %p828
        $region222: #{tpu_custom_call.1} parent=151 // pred_check_branch
          %4375 = sbr.rel (%p4373) target = $region224
        $region223: #{tpu_custom_call.1} parent=151 // pred_region
          _
        $region224: #{tpu_custom_call.1} parent=151 // pred_fallthru
          _
        // Predicated region
        $region225: #{tpu_custom_call.1} parent=151 // pred_check
          %p4376 = pneg %p854
        $region226: #{tpu_custom_call.1} parent=151 // pred_check_branch
          %4378 = sbr.rel (%p4376) target = $region228
        $region227: #{tpu_custom_call.1} parent=151 // pred_region
          %s4380 = ssub.s32 128, 128
          %4381 = vsyncadd %s4369, %s4380
          %s4382 = smul.addr %s107, 128
          %s4383 = scalar_lea.hbm %s73, %s4382
          %s4385 = sshll.u32 %s4372, 4
          %s4386 = int_to_ptr.vmem [resolvable:$true] %s4385
          %4388 = dma.vmem_to_hbm [thread:$0]  %s4386, 128, %s4383, %s4369
        $region228: #{tpu_custom_call.1} parent=151 // pred_fallthru
          _
      $region152: #{tpu_custom_call.1} parent=5 // pred_fallthru
        _
      %p4389 = scmp.le.s32.totalorder 2, %s102
      // Predicated region
      $region229: #{tpu_custom_call.1} parent=5 // pred_check
        %p4390 = pneg %p4389
      $region230: #{tpu_custom_call.1} parent=5 // pred_check_branch
        %4392 = sbr.rel (%p4390) target = $region232
      $region231: #{tpu_custom_call.1} parent=5 // pred_region
        %s4393 = ssub.s32 %s102, 2
        // Predicated region
        $region233: #{tpu_custom_call.1} parent=231 // pred_check
          %p4394 = pneg %p834
        $region234: #{tpu_custom_call.1} parent=231 // pred_check_branch
          %4396 = sbr.rel (%p4394) target = $region236
        $region235: #{tpu_custom_call.1} parent=231 // pred_region
          %p4397 = scmp.lt.s32.totalorder %s108, 1
          %s4398 = scalar_select %p4397, %s108, 1
          %s4399 = smul.addr %s4398, 8
          %s4400 = scalar_lea.vmem %s71, %s4399
        $region236: #{tpu_custom_call.1} parent=231 // pred_fallthru
          _
        // Predicated region
        $region237: #{tpu_custom_call.1} parent=231 // pred_check
          %p4401 = pneg %p860
        $region238: #{tpu_custom_call.1} parent=231 // pred_check_branch
          %4403 = sbr.rel (%p4401) target = $region240
        $region239: #{tpu_custom_call.1} parent=231 // pred_region
          %s4404 = sand.u32 %s845, 1
          %s4405 = scalar_lea.sflag [#allocation7], %s4404
          %s4406 = sand.u32 %s845, 1
          %s4407 = smul.addr %s4406, 8
          %s4408 = scalar_lea.vmem [#allocation32], %s4407
          %4409 = dma.done %s4405, 128
        $region240: #{tpu_custom_call.1} parent=231 // pred_fallthru
          _
      $region232: #{tpu_custom_call.1} parent=5 // pred_fallthru
        _
    $region6: #{tpu_custom_call.1} parent=1 // loop_footer
      %s106 = sadd.s32 1, %s102
    $region7: #{tpu_custom_call.1} parent=1 // loop_footer_branch
      %101 = sbr.rel target = $region3
    $region8: #{tpu_custom_call.1} parent=1 // loop_exit
      _
    %4410 = vsyncpa [#allocation6], 1
    %s4411 = scalar_lea.sflag [#allocation6], 1
    %4412 = vsyncpa %s4411, 1
    %4413 = vsyncpa [#allocation9], 1
    %s4414 = scalar_lea.sflag [#allocation9], 1
    %4415 = vsyncpa %s4414, 1
    %4416 = vsyncpa [#allocation12], 1
    %4417 = vsyncpa [#allocation15], 1
    %4418 = vsyncpa [#allocation18], 1
    %4419 = vsyncpa [#allocation21], 1
    %4420 = vsyncpa [#allocation24], 1
    %4421 = vsyncpa [#allocation27], 1
    %4422 = vsyncpa [#allocation30], 1
    %4423 = vsyncpa [#allocation7], 1
    %s4424 = scalar_lea.sflag [#allocation7], 1
    %4425 = vsyncpa %s4424, 1

</llo_original>
